<compile_context>
chip_gen: v6e
topology: v6e:2x2x1
jax: 0.10.0
libtpu: 0.0.40
codegen_flags: <defaults>
</compile_context>

<pallas_src>
import jax
import jax.numpy as jnp
from jax.experimental import pallas as pl
from jax.experimental.pallas import tpu as pltpu

# ------------------- module hyper-parameters (small, synthetic) -------------------
COND_SIZE = 8
PRED_SIZE = 4
D_HIDDEN = 32
N_ROLLS = 2
N_OUTPUT = 2
P_OUT = N_OUTPUT * PRED_SIZE               # 8

M = 2                                      # query series
N = 3                                      # reference series
LQ = 23                                    # query length
LR = 27                                    # reference length

TQ = LQ - COND_SIZE + 1                    # 16 query windows / series
TK = LR - PRED_SIZE - COND_SIZE + 1        # 16 key windows / series
RQ = M * TQ                                # 32
RK = N * TK                                # 48
RKP = RK + 8                               # 56: score lanes, lane RK = m_score
DATA_ROWS = RQ + RK + RK                   # 128
PP_ROWS = 40                               # packed-parameter rows

F32 = jnp.float32
HIGH = jax.lax.Precision.HIGHEST
NEG = -1e30                                # finite "-inf" (scores are O(1))


# =============================== fused Pallas kernel ===============================
def _fused_kernel(data_ref, pp_ref, out_ref):
    # -------- parameter unpack: sublane slices from ONE packed VMEM block ----------
    wq = pp_ref[0:8, :]                    # (cond, H)
    wk = pp_ref[8:16, :]                   # (cond, H)
    mkb = pp_ref[16:24, :]                 # (8, H): row 0 = m_key, rows 1:7 = 0
    wvo = pp_ref[24:32, :]                 # (8, H): [0:4, 0:P_OUT] = wv@wo_t, rest 0
    bvo = pp_ref[32:33, :]                 # (1, H): cols 0:P_OUT = bv@wo_t + bo
    bq = pp_ref[33:34, :]                  # (1, H)
    bk = pp_ref[34:35, :]                  # (1, H)

    # -------- q path: per-window min/max normalize + project -----------------------
    qw = data_ref[0:RQ, :]                                         # (RQ, cond)
    q_off = jnp.min(qw, axis=1, keepdims=True)
    q_scale = jnp.max(qw, axis=1, keepdims=True) - q_off
    q_scale = jnp.where(q_scale == 0.0, 1.0, q_scale)
    qn = (qw - q_off) * (1.0 / q_scale)
    q = jnp.dot(qn, wq, precision=HIGH, preferred_element_type=F32) + bq   # (RQ, H)

    # -------- k path (+ m_key appended as an extra, bias-free key row) -------------
    kw = data_ref[RQ:RQ + RK, :]                                   # (RK, cond)
    k_off = jnp.min(kw, axis=1, keepdims=True)
    k_scale = jnp.max(kw, axis=1, keepdims=True) - k_off
    k_scale = jnp.where(k_scale == 0.0, 1.0, k_scale)
    inv_k = 1.0 / k_scale                                          # shared reciprocal
    kn = (kw - k_off) * inv_k
    k = jnp.dot(kn, wk, precision=HIGH, preferred_element_type=F32) + bk   # (RK, H)
    k_aug = jnp.concatenate([k, mkb], axis=0)                      # (RKP, H)

    # -------- values (offset 0, scale k_scale) folded with the output projection ---
    vw = data_ref[RQ + RK:DATA_ROWS, :]                            # (RK, 8), cols 4:7 = 0
    vn = vw * inv_k
    vo = jnp.dot(vn, wvo, precision=HIGH, preferred_element_type=F32) + bvo  # (RK, H)
    vo = jnp.concatenate([vo, jnp.zeros((RKP - RK, D_HIDDEN), F32)], axis=0)  # (RKP, H)

    # -------- scores: ONE MXU pass; lane RK holds m_score ---------------------------
    scores = jax.lax.dot_general(q, k_aug, (((1,), (1,)), ((), ())),
                                 precision=HIGH,
                                 preferred_element_type=F32)       # (RQ, RKP)

    lane = jax.lax.broadcasted_iota(jnp.int32, (RQ, RKP), 1)
    lanef = lane.astype(F32)
    m_score = jnp.max(jnp.where(lane == RK, scores, NEG), axis=1, keepdims=True)

    # -------- semi-hard attention, full-width masked ops (no lane slices) -----------
    wsel_rolls = []
    for skip in range(N_ROLLS):
        t_lim = TK - PRED_SIZE * skip
        mx, idx = [], []
        for n in range(N):
            lo = n * TK
            msk = (lane >= lo) & (lane < lo + t_lim)
            sn = jnp.where(msk, scores, NEG)
            mx_n = jnp.max(sn, axis=1, keepdims=True)              # (RQ, 1)
            # first-argmax (matches jnp.argmax / torch.max tie-breaking)
            idx_n = jnp.min(jnp.where(sn == mx_n, lanef, float(RKP)),
                            axis=1, keepdims=True)
            mx.append(mx_n)
            idx.append(idx_n)

        # softmax over [mx_0 .. mx_{N-1}, m_score]; only the N ref weights are used
        # (the PyTorch semi_hard_attention never adds the m bias to the result).
        mtot = m_score
        for x in mx:
            mtot = jnp.maximum(mtot, x)
        es = [jnp.exp(x - mtot) for x in mx]
        em = jnp.exp(m_score - mtot)
        inv_den = 1.0 / (sum(es) + em)

        wsel = jnp.zeros((RQ, RKP), F32)
        for n in range(N):
            wsel = wsel + jnp.where(lanef == idx[n], es[n] * inv_den, 0.0)
        wsel_rolls.append(wsel)

    # -------- one stacked matmul for both rolls, scale, store -----------------------
    W = jnp.concatenate(wsel_rolls, axis=0)                        # (2*RQ, RKP)
    p = jnp.dot(W, vo, precision=HIGH, preferred_element_type=F32)  # (2*RQ, H)
    out_ref[...] = p * jnp.concatenate([q_scale, q_scale], axis=0)


def fused_attention(data, packed_params):
    return pl.pallas_call(
        _fused_kernel,
        grid=(1,),
        in_specs=[
            pl.BlockSpec((DATA_ROWS, COND_SIZE), lambda i: (0, 0)),
            pl.BlockSpec((PP_ROWS, D_HIDDEN), lambda i: (0, 0)),
        ],
        out_specs=pl.BlockSpec((2 * RQ, D_HIDDEN), lambda i: (0, 0)),
        out_shape=jax.ShapeDtypeStruct((2 * RQ, D_HIDDEN), F32),
        compiler_params=pltpu.CompilerParams(dimension_semantics=("arbitrary",)),
    )(data, packed_params)


# =============================== glue (plain JAX) ==================================
def unfold(x, ksize):
    """(..., L) -> (..., L-ksize+1, ksize) sliding windows via static slices."""
    T = x.shape[-1] - ksize + 1
    return jnp.stack([x[..., i:i + ksize] for i in range(T)], axis=-2)


def pack_params(p):
    """Fold wv@wo_t / bv@wo_t+bo host-side and pack all parameters into ONE block."""
    wvo = p["wv"] @ p["wo_t"]                                   # (pred, P_OUT)
    bvo = p["bv"] @ p["wo_t"] + p["bo"]                         # (1, P_OUT)
    pp = jnp.zeros((PP_ROWS, D_HIDDEN), F32)
    pp = pp.at[0:8].set(p["wq"])
    pp = pp.at[8:16].set(p["wk"])
    pp = pp.at[16].set(p["m_key"][0])
    pp = pp.at[24:24 + PRED_SIZE, 0:P_OUT].set(wvo)
    pp = pp.at[32, 0:P_OUT].set(bvo[0])
    pp = pp.at[33].set(p["bq"][0])
    pp = pp.at[34].set(p["bk"][0])
    return pp


def xseries_attention_forward(packed_params, query, ref):
    """query: (M, LQ), ref: (N, LR)  ->  (M, Tq, n_output, pred_size*n_rolls)."""
    q_win = unfold(jnp.cumsum(query, axis=1), COND_SIZE).reshape(RQ, COND_SIZE)
    k_win = unfold(jnp.cumsum(ref, axis=1)[:, :LR - PRED_SIZE],
                   COND_SIZE).reshape(RK, COND_SIZE)
    v_win = unfold(ref[:, COND_SIZE:], PRED_SIZE).reshape(RK, PRED_SIZE)
    v_pad = jnp.pad(v_win, ((0, 0), (0, COND_SIZE - PRED_SIZE)))
    data = jnp.concatenate([q_win, k_win, v_pad], axis=0)       # (128, 8): one DMA

    out = fused_attention(data, packed_params)                  # (64, 32)

    p = out[:, :P_OUT]                                          # (2*RQ, 8)
    p = p.reshape(N_ROLLS, M, TQ, N_OUTPUT, PRED_SIZE)
    p = jnp.transpose(p, (1, 2, 3, 0, 4))                       # free host relayout
    return p.reshape(M, TQ, N_OUTPUT, N_ROLLS * PRED_SIZE)


# ======================== deterministic parameter init ============================
def init_params(key):
    ks = jax.random.split(key, 4)

    def xavier(k, shape, fan_in, fan_out):
        std = (2.0 / (fan_in + fan_out)) ** 0.5
        return std * jax.random.normal(k, shape, F32)

    q_weight = xavier(ks[0], (D_HIDDEN, 1, COND_SIZE), COND_SIZE, D_HIDDEN * COND_SIZE)
    k_weight = xavier(ks[1], (D_HIDDEN, 1, COND_SIZE), COND_SIZE, D_HIDDEN * COND_SIZE)
    # orthogonal init (cum_value=False): v_weight = orth, o_weight = orth.T tiled
    a = jax.random.normal(ks[2], (D_HIDDEN, PRED_SIZE), F32)
    orth, _ = jnp.linalg.qr(a)                                   # (H, pred)
    o_weight = jnp.tile(orth.T, (N_OUTPUT, 1))                   # (n_output*pred, H)
    m_key = xavier(ks[3], (1, 1, D_HIDDEN), D_HIDDEN, D_HIDDEN)

    return {
        "wq": q_weight.reshape(D_HIDDEN, COND_SIZE).T,           # (cond, H)
        "bq": jnp.zeros((1, D_HIDDEN), F32),
        "wk": k_weight.reshape(D_HIDDEN, COND_SIZE).T,           # (cond, H)
        "bk": jnp.zeros((1, D_HIDDEN), F32),
        "wv": orth.T,                                            # (pred, H)
        "bv": jnp.zeros((1, D_HIDDEN), F32),
        "wo_t": o_weight.T,                                      # (H, P_OUT)
        "bo": jnp.zeros((1, P_OUT), F32),
        "m_key": m_key.reshape(1, D_HIDDEN),
    }


# =============================== pure-JAX reference ================================
def reference_forward(params, query, ref):
    def mmconv(xw, w, b, offset=None, scale=None):
        if offset is None:
            offset = xw.min(axis=2)
        if scale is None:
            scale = xw.max(axis=2) - offset
            scale = jnp.where(scale == 0.0, 1.0, scale)
        xn = (xw - offset[..., None]) / scale[..., None]
        y = jnp.einsum("btk,kh->bth", xn, w, precision=HIGH) + b[0]
        return y, offset, scale

    q_win = unfold(jnp.cumsum(query, axis=1), COND_SIZE)
    k_win = unfold(jnp.cumsum(ref, axis=1)[:, :LR - PRED_SIZE], COND_SIZE)
    v_win = unfold(ref[:, COND_SIZE:], PRED_SIZE)

    q, _, q_scale = mmconv(q_win, params["wq"], params["bq"])
    k, _, k_scale = mmconv(k_win, params["wk"], params["bk"])
    v, _, _ = mmconv(v_win, params["wv"], params["bv"],            # (pred, H) weights
                     offset=jnp.zeros_like(k_scale), scale=k_scale)

    full_score = jnp.einsum("mqh,nkh->mqkn", q, k, precision=HIGH)
    m_score = jnp.sum(q * params["m_key"][0], axis=-1, keepdims=True)   # (M,Tq,1)

    o_w = params["wo_t"].T
    o_b = params["bo"][0]
    preds = []
    for skip in range(N_ROLLS):
        ss = PRED_SIZE * skip
        score = full_score[:, :, :TK - ss, :]
        ref_score = score.max(axis=2)                        # (M,Tq,N)
        idx = score.argmax(axis=2)                           # (M,Tq,N)
        sel_v = v[jnp.arange(N)[None, None, :], idx]         # (M,Tq,N,H)
        sel_vo = jnp.einsum("mqnh,ph->mqnp", sel_v, o_w, precision=HIGH) + o_b
        cat = jnp.concatenate([ref_score, m_score], axis=-1)
        w_soft = jax.nn.softmax(cat, axis=-1)
        p = jnp.sum(w_soft[..., :N, None] * sel_vo, axis=-2)
        preds.append(p.reshape(M, TQ, N_OUTPUT, PRED_SIZE))
    pr = jnp.concatenate(preds, axis=3)
    return pr * q_scale[:, :, None, None]


# ==================================== main =========================================
if __name__ == "__main__":
    key = jax.random.PRNGKey(0)
    kp, kq, kr = jax.random.split(key, 3)
    params = init_params(kp)
    packed = pack_params(params)
    query = jax.random.uniform(kq, (M, LQ), F32)
    ref = jax.random.uniform(kr, (N, LR), F32)

    out = jax.block_until_ready(xseries_attention_forward(packed, query, ref))
    expect = jax.block_until_ready(reference_forward(params, query, ref))

    assert out.shape == (M, TQ, N_OUTPUT, PRED_SIZE * N_ROLLS), out.shape
    assert bool(jnp.all(jnp.isfinite(out)))
    err = float(jnp.max(jnp.abs(out - expect)))
    if err > 5e-2:
        raise AssertionError(f"kernel/reference mismatch, max|diff|={err}")
    print("KERNEL_OK")
</pallas_src>

<mosaic_0001>
module attributes {stable_mosaic.version = 11 : i64} {
  func.func @_fused_kernel(%arg0: i32, %arg1: memref<128x8xf32, #tpu.memory_space<vmem>>, %arg2: memref<40x32xf32, #tpu.memory_space<vmem>>, %arg3: memref<64x32xf32, #tpu.memory_space<vmem>>) attributes {dimension_semantics = [#tpu.dimension_semantics<arbitrary>], iteration_bounds = array<i64: 1>, scalar_prefetch = 0 : i64, scratch_operands = 0 : i64, tpu.core_type = #tpu.core_type<tc>, window_params = [{pipeline_mode = #tpu.pipeline_mode<synchronous>, transform_indices = @transform_0, window_bounds = array<i64: 128, 8>}, {pipeline_mode = #tpu.pipeline_mode<synchronous>, transform_indices = @transform_1, window_bounds = array<i64: 40, 32>}, {pipeline_mode = #tpu.pipeline_mode<synchronous>, transform_indices = @transform_2, window_bounds = array<i64: 64, 32>}]} {
    %c0 = arith.constant 0 : index
    %c0_0 = arith.constant 0 : index
    %0 = vector.load %arg2[%c0, %c0_0] : memref<40x32xf32, #tpu.memory_space<vmem>>, vector<8x32xf32>
    %c8 = arith.constant 8 : index
    %c0_1 = arith.constant 0 : index
    %1 = vector.load %arg2[%c8, %c0_1] : memref<40x32xf32, #tpu.memory_space<vmem>>, vector<8x32xf32>
    %c16 = arith.constant 16 : index
    %c0_2 = arith.constant 0 : index
    %2 = vector.load %arg2[%c16, %c0_2] : memref<40x32xf32, #tpu.memory_space<vmem>>, vector<8x32xf32>
    %c24 = arith.constant 24 : index
    %c0_3 = arith.constant 0 : index
    %3 = vector.load %arg2[%c24, %c0_3] : memref<40x32xf32, #tpu.memory_space<vmem>>, vector<8x32xf32>
    %c32 = arith.constant 32 : index
    %c0_4 = arith.constant 0 : index
    %4 = vector.load %arg2[%c32, %c0_4] : memref<40x32xf32, #tpu.memory_space<vmem>>, vector<1x32xf32>
    %c33 = arith.constant 33 : index
    %c0_5 = arith.constant 0 : index
    %5 = vector.load %arg2[%c33, %c0_5] : memref<40x32xf32, #tpu.memory_space<vmem>>, vector<1x32xf32>
    %c34 = arith.constant 34 : index
    %c0_6 = arith.constant 0 : index
    %6 = vector.load %arg2[%c34, %c0_6] : memref<40x32xf32, #tpu.memory_space<vmem>>, vector<1x32xf32>
    %c0_7 = arith.constant 0 : index
    %c0_8 = arith.constant 0 : index
    %7 = vector.load %arg1[%c0_7, %c0_8] : memref<128x8xf32, #tpu.memory_space<vmem>>, vector<32x8xf32>
    %cst = arith.constant dense<0x7F800000> : vector<32xf32>
    %8 = vector.multi_reduction <minimumf>, %7, %cst [1] : vector<32x8xf32> to vector<32xf32>
    %9 = vector.shape_cast %8 : vector<32xf32> to vector<32x1xf32>
    %cst_9 = arith.constant dense<0xFF800000> : vector<32xf32>
    %10 = vector.multi_reduction <maximumf>, %7, %cst_9 [1] : vector<32x8xf32> to vector<32xf32>
    %11 = vector.shape_cast %10 : vector<32xf32> to vector<32x1xf32>
    %12 = arith.subf %11, %9 : vector<32x1xf32>
    %cst_10 = arith.constant 0.000000e+00 : f32
    %13 = vector.broadcast %cst_10 : f32 to vector<32x1xf32>
    %14 = arith.cmpf oeq, %12, %13 : vector<32x1xf32>
    %cst_11 = arith.constant 1.000000e+00 : f32
    %15 = vector.broadcast %cst_11 : f32 to vector<32x1xf32>
    %16 = arith.select %14, %15, %12 : vector<32x1xi1>, vector<32x1xf32>
    %17 = vector.broadcast %9 : vector<32x1xf32> to vector<32x8xf32>
    %18 = arith.subf %7, %17 : vector<32x8xf32>
    %cst_12 = arith.constant 1.000000e+00 : f32
    %19 = vector.broadcast %cst_12 : f32 to vector<32x1xf32>
    %20 = arith.divf %19, %16 : vector<32x1xf32>
    %21 = vector.broadcast %20 : vector<32x1xf32> to vector<32x8xf32>
    %22 = arith.mulf %18, %21 : vector<32x8xf32>
    %cst_13 = arith.constant dense<0.000000e+00> : vector<32x32xf32>
    %23 = tpu.matmul %22, %0, %cst_13 {dimension_numbers = #tpu.dot_dimension_numbers<[1], [0], [0], [1], [0, 0, 1, 1], [], []>, precision = #tpu.contract_precision<fp32>} : vector<32x8xf32>, vector<8x32xf32>, vector<32x32xf32> -> vector<32x32xf32>
    %24 = vector.broadcast %5 : vector<1x32xf32> to vector<32x32xf32>
    %25 = arith.addf %23, %24 : vector<32x32xf32>
    %c32_14 = arith.constant 32 : index
    %c0_15 = arith.constant 0 : index
    %26 = vector.load %arg1[%c32_14, %c0_15] : memref<128x8xf32, #tpu.memory_space<vmem>>, vector<48x8xf32>
    %cst_16 = arith.constant dense<0x7F800000> : vector<48xf32>
    %27 = vector.multi_reduction <minimumf>, %26, %cst_16 [1] : vector<48x8xf32> to vector<48xf32>
    %28 = vector.shape_cast %27 : vector<48xf32> to vector<48x1xf32>
    %cst_17 = arith.constant dense<0xFF800000> : vector<48xf32>
    %29 = vector.multi_reduction <maximumf>, %26, %cst_17 [1] : vector<48x8xf32> to vector<48xf32>
    %30 = vector.shape_cast %29 : vector<48xf32> to vector<48x1xf32>
    %31 = arith.subf %30, %28 : vector<48x1xf32>
    %cst_18 = arith.constant 0.000000e+00 : f32
    %32 = vector.broadcast %cst_18 : f32 to vector<48x1xf32>
    %33 = arith.cmpf oeq, %31, %32 : vector<48x1xf32>
    %cst_19 = arith.constant 1.000000e+00 : f32
    %34 = vector.broadcast %cst_19 : f32 to vector<48x1xf32>
    %35 = arith.select %33, %34, %31 : vector<48x1xi1>, vector<48x1xf32>
    %cst_20 = arith.constant 1.000000e+00 : f32
    %36 = vector.broadcast %cst_20 : f32 to vector<48x1xf32>
    %37 = arith.divf %36, %35 : vector<48x1xf32>
    %38 = vector.broadcast %28 : vector<48x1xf32> to vector<48x8xf32>
    %39 = arith.subf %26, %38 : vector<48x8xf32>
    %40 = vector.broadcast %37 : vector<48x1xf32> to vector<48x8xf32>
    %41 = arith.mulf %39, %40 : vector<48x8xf32>
    %cst_21 = arith.constant dense<0.000000e+00> : vector<48x32xf32>
    %42 = tpu.matmul %41, %1, %cst_21 {dimension_numbers = #tpu.dot_dimension_numbers<[1], [0], [0], [1], [0, 0, 1, 1], [], []>, precision = #tpu.contract_precision<fp32>} : vector<48x8xf32>, vector<8x32xf32>, vector<48x32xf32> -> vector<48x32xf32>
    %43 = vector.broadcast %6 : vector<1x32xf32> to vector<48x32xf32>
    %44 = arith.addf %42, %43 : vector<48x32xf32>
    %45 = tpu.concatenate %44, %2 in 0 : vector<48x32xf32>, vector<8x32xf32> -> vector<56x32xf32>
    %c80 = arith.constant 80 : index
    %c0_22 = arith.constant 0 : index
    %46 = vector.load %arg1[%c80, %c0_22] : memref<128x8xf32, #tpu.memory_space<vmem>>, vector<48x8xf32>
    %47 = vector.broadcast %37 : vector<48x1xf32> to vector<48x8xf32>
    %48 = arith.mulf %46, %47 : vector<48x8xf32>
    %cst_23 = arith.constant dense<0.000000e+00> : vector<48x32xf32>
    %49 = tpu.matmul %48, %3, %cst_23 {dimension_numbers = #tpu.dot_dimension_numbers<[1], [0], [0], [1], [0, 0, 1, 1], [], []>, precision = #tpu.contract_precision<fp32>} : vector<48x8xf32>, vector<8x32xf32>, vector<48x32xf32> -> vector<48x32xf32>
    %50 = vector.broadcast %4 : vector<1x32xf32> to vector<48x32xf32>
    %51 = arith.addf %49, %50 : vector<48x32xf32>
    %cst_24 = arith.constant 0.000000e+00 : f32
    %52 = vector.broadcast %cst_24 : f32 to vector<8x32xf32>
    %53 = tpu.concatenate %51, %52 in 0 : vector<48x32xf32>, vector<8x32xf32> -> vector<56x32xf32>
    %cst_25 = arith.constant dense<0.000000e+00> : vector<32x56xf32>
    %54 = tpu.matmul %25, %45, %cst_25 {dimension_numbers = #tpu.dot_dimension_numbers<[1], [1], [0], [0], [0, 0, 1, 0], [], []>, precision = #tpu.contract_precision<fp32>} : vector<32x32xf32>, vector<56x32xf32>, vector<32x56xf32> -> vector<32x56xf32>
    %55 = tpu.iota {dimensions = array<i32: 1>} : vector<32x56xi32>
    %56 = arith.sitofp %55 : vector<32x56xi32> to vector<32x56xf32>
    %c48_i32 = arith.constant 48 : i32
    %57 = vector.broadcast %c48_i32 : i32 to vector<32x56xi32>
    %58 = arith.cmpi eq, %55, %57 : vector<32x56xi32>
    %cst_26 = arith.constant -1.000000e+30 : f32
    %59 = vector.broadcast %cst_26 : f32 to vector<32x56xf32>
    %60 = arith.select %58, %54, %59 : vector<32x56xi1>, vector<32x56xf32>
    %cst_27 = arith.constant dense<0xFF800000> : vector<32xf32>
    %61 = vector.multi_reduction <maximumf>, %60, %cst_27 [1] : vector<32x56xf32> to vector<32xf32>
    %62 = vector.shape_cast %61 : vector<32xf32> to vector<32x1xf32>
    %c0_i32 = arith.constant 0 : i32
    %63 = vector.broadcast %c0_i32 : i32 to vector<32x56xi32>
    %64 = arith.cmpi sge, %55, %63 : vector<32x56xi32>
    %c16_i32 = arith.constant 16 : i32
    %65 = vector.broadcast %c16_i32 : i32 to vector<32x56xi32>
    %66 = arith.cmpi slt, %55, %65 : vector<32x56xi32>
    %67 = arith.andi %64, %66 : vector<32x56xi1>
    %cst_28 = arith.constant -1.000000e+30 : f32
    %68 = vector.broadcast %cst_28 : f32 to vector<32x56xf32>
    %69 = arith.select %67, %54, %68 : vector<32x56xi1>, vector<32x56xf32>
    %cst_29 = arith.constant dense<0xFF800000> : vector<32xf32>
    %70 = vector.multi_reduction <maximumf>, %69, %cst_29 [1] : vector<32x56xf32> to vector<32xf32>
    %71 = vector.shape_cast %70 : vector<32xf32> to vector<32x1xf32>
    %72 = vector.broadcast %71 : vector<32x1xf32> to vector<32x56xf32>
    %73 = arith.cmpf oeq, %69, %72 : vector<32x56xf32>
    %cst_30 = arith.constant 5.600000e+01 : f32
    %74 = vector.broadcast %cst_30 : f32 to vector<32x56xf32>
    %75 = arith.select %73, %56, %74 : vector<32x56xi1>, vector<32x56xf32>
    %cst_31 = arith.constant dense<0x7F800000> : vector<32xf32>
    %76 = vector.multi_reduction <minimumf>, %75, %cst_31 [1] : vector<32x56xf32> to vector<32xf32>
    %77 = vector.shape_cast %76 : vector<32xf32> to vector<32x1xf32>
    %c16_i32_32 = arith.constant 16 : i32
    %78 = vector.broadcast %c16_i32_32 : i32 to vector<32x56xi32>
    %79 = arith.cmpi sge, %55, %78 : vector<32x56xi32>
    %c32_i32 = arith.constant 32 : i32
    %80 = vector.broadcast %c32_i32 : i32 to vector<32x56xi32>
    %81 = arith.cmpi slt, %55, %80 : vector<32x56xi32>
    %82 = arith.andi %79, %81 : vector<32x56xi1>
    %cst_33 = arith.constant -1.000000e+30 : f32
    %83 = vector.broadcast %cst_33 : f32 to vector<32x56xf32>
    %84 = arith.select %82, %54, %83 : vector<32x56xi1>, vector<32x56xf32>
    %cst_34 = arith.constant dense<0xFF800000> : vector<32xf32>
    %85 = vector.multi_reduction <maximumf>, %84, %cst_34 [1] : vector<32x56xf32> to vector<32xf32>
    %86 = vector.shape_cast %85 : vector<32xf32> to vector<32x1xf32>
    %87 = vector.broadcast %86 : vector<32x1xf32> to vector<32x56xf32>
    %88 = arith.cmpf oeq, %84, %87 : vector<32x56xf32>
    %cst_35 = arith.constant 5.600000e+01 : f32
    %89 = vector.broadcast %cst_35 : f32 to vector<32x56xf32>
    %90 = arith.select %88, %56, %89 : vector<32x56xi1>, vector<32x56xf32>
    %cst_36 = arith.constant dense<0x7F800000> : vector<32xf32>
    %91 = vector.multi_reduction <minimumf>, %90, %cst_36 [1] : vector<32x56xf32> to vector<32xf32>
    %92 = vector.shape_cast %91 : vector<32xf32> to vector<32x1xf32>
    %c32_i32_37 = arith.constant 32 : i32
    %93 = vector.broadcast %c32_i32_37 : i32 to vector<32x56xi32>
    %94 = arith.cmpi sge, %55, %93 : vector<32x56xi32>
    %c48_i32_38 = arith.constant 48 : i32
    %95 = vector.broadcast %c48_i32_38 : i32 to vector<32x56xi32>
    %96 = arith.cmpi slt, %55, %95 : vector<32x56xi32>
    %97 = arith.andi %94, %96 : vector<32x56xi1>
    %cst_39 = arith.constant -1.000000e+30 : f32
    %98 = vector.broadcast %cst_39 : f32 to vector<32x56xf32>
    %99 = arith.select %97, %54, %98 : vector<32x56xi1>, vector<32x56xf32>
    %cst_40 = arith.constant dense<0xFF800000> : vector<32xf32>
    %100 = vector.multi_reduction <maximumf>, %99, %cst_40 [1] : vector<32x56xf32> to vector<32xf32>
    %101 = vector.shape_cast %100 : vector<32xf32> to vector<32x1xf32>
    %102 = vector.broadcast %101 : vector<32x1xf32> to vector<32x56xf32>
    %103 = arith.cmpf oeq, %99, %102 : vector<32x56xf32>
    %cst_41 = arith.constant 5.600000e+01 : f32
    %104 = vector.broadcast %cst_41 : f32 to vector<32x56xf32>
    %105 = arith.select %103, %56, %104 : vector<32x56xi1>, vector<32x56xf32>
    %cst_42 = arith.constant dense<0x7F800000> : vector<32xf32>
    %106 = vector.multi_reduction <minimumf>, %105, %cst_42 [1] : vector<32x56xf32> to vector<32xf32>
    %107 = vector.shape_cast %106 : vector<32xf32> to vector<32x1xf32>
    %108 = arith.maximumf %62, %71 : vector<32x1xf32>
    %109 = arith.maximumf %108, %86 : vector<32x1xf32>
    %110 = arith.maximumf %109, %101 : vector<32x1xf32>
    %111 = arith.subf %71, %110 : vector<32x1xf32>
    %112 = math.exp %111 : vector<32x1xf32>
    %113 = arith.subf %86, %110 : vector<32x1xf32>
    %114 = math.exp %113 : vector<32x1xf32>
    %115 = arith.subf %101, %110 : vector<32x1xf32>
    %116 = math.exp %115 : vector<32x1xf32>
    %117 = arith.subf %62, %110 : vector<32x1xf32>
    %118 = math.exp %117 : vector<32x1xf32>
    %cst_43 = arith.constant 0.000000e+00 : f32
    %119 = vector.broadcast %cst_43 : f32 to vector<32x1xf32>
    %120 = arith.addf %119, %112 : vector<32x1xf32>
    %121 = arith.addf %120, %114 : vector<32x1xf32>
    %122 = arith.addf %121, %116 : vector<32x1xf32>
    %123 = arith.addf %122, %118 : vector<32x1xf32>
    %cst_44 = arith.constant 1.000000e+00 : f32
    %124 = vector.broadcast %cst_44 : f32 to vector<32x1xf32>
    %125 = arith.divf %124, %123 : vector<32x1xf32>
    %cst_45 = arith.constant 0.000000e+00 : f32
    %126 = vector.broadcast %cst_45 : f32 to vector<32x56xf32>
    %127 = vector.broadcast %77 : vector<32x1xf32> to vector<32x56xf32>
    %128 = arith.cmpf oeq, %56, %127 : vector<32x56xf32>
    %129 = arith.mulf %112, %125 : vector<32x1xf32>
    %cst_46 = arith.constant 0.000000e+00 : f32
    %130 = vector.shape_cast %129 : vector<32x1xf32> to vector<32x1xf32>
    %131 = vector.broadcast %130 : vector<32x1xf32> to vector<32x56xf32>
    %132 = vector.broadcast %cst_46 : f32 to vector<32x56xf32>
    %133 = arith.select %128, %131, %132 : vector<32x56xi1>, vector<32x56xf32>
    %134 = arith.addf %126, %133 : vector<32x56xf32>
    %135 = vector.broadcast %92 : vector<32x1xf32> to vector<32x56xf32>
    %136 = arith.cmpf oeq, %56, %135 : vector<32x56xf32>
    %137 = arith.mulf %114, %125 : vector<32x1xf32>
    %cst_47 = arith.constant 0.000000e+00 : f32
    %138 = vector.shape_cast %137 : vector<32x1xf32> to vector<32x1xf32>
    %139 = vector.broadcast %138 : vector<32x1xf32> to vector<32x56xf32>
    %140 = vector.broadcast %cst_47 : f32 to vector<32x56xf32>
    %141 = arith.select %136, %139, %140 : vector<32x56xi1>, vector<32x56xf32>
    %142 = arith.addf %134, %141 : vector<32x56xf32>
    %143 = vector.broadcast %107 : vector<32x1xf32> to vector<32x56xf32>
    %144 = arith.cmpf oeq, %56, %143 : vector<32x56xf32>
    %145 = arith.mulf %116, %125 : vector<32x1xf32>
    %cst_48 = arith.constant 0.000000e+00 : f32
    %146 = vector.shape_cast %145 : vector<32x1xf32> to vector<32x1xf32>
    %147 = vector.broadcast %146 : vector<32x1xf32> to vector<32x56xf32>
    %148 = vector.broadcast %cst_48 : f32 to vector<32x56xf32>
    %149 = arith.select %144, %147, %148 : vector<32x56xi1>, vector<32x56xf32>
    %150 = arith.addf %142, %149 : vector<32x56xf32>
    %c0_i32_49 = arith.constant 0 : i32
    %151 = vector.broadcast %c0_i32_49 : i32 to vector<32x56xi32>
    %152 = arith.cmpi sge, %55, %151 : vector<32x56xi32>
    %c12_i32 = arith.constant 12 : i32
    %153 = vector.broadcast %c12_i32 : i32 to vector<32x56xi32>
    %154 = arith.cmpi slt, %55, %153 : vector<32x56xi32>
    %155 = arith.andi %152, %154 : vector<32x56xi1>
    %cst_50 = arith.constant -1.000000e+30 : f32
    %156 = vector.broadcast %cst_50 : f32 to vector<32x56xf32>
    %157 = arith.select %155, %54, %156 : vector<32x56xi1>, vector<32x56xf32>
    %cst_51 = arith.constant dense<0xFF800000> : vector<32xf32>
    %158 = vector.multi_reduction <maximumf>, %157, %cst_51 [1] : vector<32x56xf32> to vector<32xf32>
    %159 = vector.shape_cast %158 : vector<32xf32> to vector<32x1xf32>
    %160 = vector.broadcast %159 : vector<32x1xf32> to vector<32x56xf32>
    %161 = arith.cmpf oeq, %157, %160 : vector<32x56xf32>
    %cst_52 = arith.constant 5.600000e+01 : f32
    %162 = vector.broadcast %cst_52 : f32 to vector<32x56xf32>
    %163 = arith.select %161, %56, %162 : vector<32x56xi1>, vector<32x56xf32>
    %cst_53 = arith.constant dense<0x7F800000> : vector<32xf32>
    %164 = vector.multi_reduction <minimumf>, %163, %cst_53 [1] : vector<32x56xf32> to vector<32xf32>
    %165 = vector.shape_cast %164 : vector<32xf32> to vector<32x1xf32>
    %c16_i32_54 = arith.constant 16 : i32
    %166 = vector.broadcast %c16_i32_54 : i32 to vector<32x56xi32>
    %167 = arith.cmpi sge, %55, %166 : vector<32x56xi32>
    %c28_i32 = arith.constant 28 : i32
    %168 = vector.broadcast %c28_i32 : i32 to vector<32x56xi32>
    %169 = arith.cmpi slt, %55, %168 : vector<32x56xi32>
    %170 = arith.andi %167, %169 : vector<32x56xi1>
    %cst_55 = arith.constant -1.000000e+30 : f32
    %171 = vector.broadcast %cst_55 : f32 to vector<32x56xf32>
    %172 = arith.select %170, %54, %171 : vector<32x56xi1>, vector<32x56xf32>
    %cst_56 = arith.constant dense<0xFF800000> : vector<32xf32>
    %173 = vector.multi_reduction <maximumf>, %172, %cst_56 [1] : vector<32x56xf32> to vector<32xf32>
    %174 = vector.shape_cast %173 : vector<32xf32> to vector<32x1xf32>
    %175 = vector.broadcast %174 : vector<32x1xf32> to vector<32x56xf32>
    %176 = arith.cmpf oeq, %172, %175 : vector<32x56xf32>
    %cst_57 = arith.constant 5.600000e+01 : f32
    %177 = vector.broadcast %cst_57 : f32 to vector<32x56xf32>
    %178 = arith.select %176, %56, %177 : vector<32x56xi1>, vector<32x56xf32>
    %cst_58 = arith.constant dense<0x7F800000> : vector<32xf32>
    %179 = vector.multi_reduction <minimumf>, %178, %cst_58 [1] : vector<32x56xf32> to vector<32xf32>
    %180 = vector.shape_cast %179 : vector<32xf32> to vector<32x1xf32>
    %c32_i32_59 = arith.constant 32 : i32
    %181 = vector.broadcast %c32_i32_59 : i32 to vector<32x56xi32>
    %182 = arith.cmpi sge, %55, %181 : vector<32x56xi32>
    %c44_i32 = arith.constant 44 : i32
    %183 = vector.broadcast %c44_i32 : i32 to vector<32x56xi32>
    %184 = arith.cmpi slt, %55, %183 : vector<32x56xi32>
    %185 = arith.andi %182, %184 : vector<32x56xi1>
    %cst_60 = arith.constant -1.000000e+30 : f32
    %186 = vector.broadcast %cst_60 : f32 to vector<32x56xf32>
    %187 = arith.select %185, %54, %186 : vector<32x56xi1>, vector<32x56xf32>
    %cst_61 = arith.constant dense<0xFF800000> : vector<32xf32>
    %188 = vector.multi_reduction <maximumf>, %187, %cst_61 [1] : vector<32x56xf32> to vector<32xf32>
    %189 = vector.shape_cast %188 : vector<32xf32> to vector<32x1xf32>
    %190 = vector.broadcast %189 : vector<32x1xf32> to vector<32x56xf32>
    %191 = arith.cmpf oeq, %187, %190 : vector<32x56xf32>
    %cst_62 = arith.constant 5.600000e+01 : f32
    %192 = vector.broadcast %cst_62 : f32 to vector<32x56xf32>
    %193 = arith.select %191, %56, %192 : vector<32x56xi1>, vector<32x56xf32>
    %cst_63 = arith.constant dense<0x7F800000> : vector<32xf32>
    %194 = vector.multi_reduction <minimumf>, %193, %cst_63 [1] : vector<32x56xf32> to vector<32xf32>
    %195 = vector.shape_cast %194 : vector<32xf32> to vector<32x1xf32>
    %196 = arith.maximumf %62, %159 : vector<32x1xf32>
    %197 = arith.maximumf %196, %174 : vector<32x1xf32>
    %198 = arith.maximumf %197, %189 : vector<32x1xf32>
    %199 = arith.subf %159, %198 : vector<32x1xf32>
    %200 = math.exp %199 : vector<32x1xf32>
    %201 = arith.subf %174, %198 : vector<32x1xf32>
    %202 = math.exp %201 : vector<32x1xf32>
    %203 = arith.subf %189, %198 : vector<32x1xf32>
    %204 = math.exp %203 : vector<32x1xf32>
    %205 = arith.subf %62, %198 : vector<32x1xf32>
    %206 = math.exp %205 : vector<32x1xf32>
    %cst_64 = arith.constant 0.000000e+00 : f32
    %207 = vector.broadcast %cst_64 : f32 to vector<32x1xf32>
    %208 = arith.addf %207, %200 : vector<32x1xf32>
    %209 = arith.addf %208, %202 : vector<32x1xf32>
    %210 = arith.addf %209, %204 : vector<32x1xf32>
    %211 = arith.addf %210, %206 : vector<32x1xf32>
    %cst_65 = arith.constant 1.000000e+00 : f32
    %212 = vector.broadcast %cst_65 : f32 to vector<32x1xf32>
    %213 = arith.divf %212, %211 : vector<32x1xf32>
    %cst_66 = arith.constant 0.000000e+00 : f32
    %214 = vector.broadcast %cst_66 : f32 to vector<32x56xf32>
    %215 = vector.broadcast %165 : vector<32x1xf32> to vector<32x56xf32>
    %216 = arith.cmpf oeq, %56, %215 : vector<32x56xf32>
    %217 = arith.mulf %200, %213 : vector<32x1xf32>
    %cst_67 = arith.constant 0.000000e+00 : f32
    %218 = vector.shape_cast %217 : vector<32x1xf32> to vector<32x1xf32>
    %219 = vector.broadcast %218 : vector<32x1xf32> to vector<32x56xf32>
    %220 = vector.broadcast %cst_67 : f32 to vector<32x56xf32>
    %221 = arith.select %216, %219, %220 : vector<32x56xi1>, vector<32x56xf32>
    %222 = arith.addf %214, %221 : vector<32x56xf32>
    %223 = vector.broadcast %180 : vector<32x1xf32> to vector<32x56xf32>
    %224 = arith.cmpf oeq, %56, %223 : vector<32x56xf32>
    %225 = arith.mulf %202, %213 : vector<32x1xf32>
    %cst_68 = arith.constant 0.000000e+00 : f32
    %226 = vector.shape_cast %225 : vector<32x1xf32> to vector<32x1xf32>
    %227 = vector.broadcast %226 : vector<32x1xf32> to vector<32x56xf32>
    %228 = vector.broadcast %cst_68 : f32 to vector<32x56xf32>
    %229 = arith.select %224, %227, %228 : vector<32x56xi1>, vector<32x56xf32>
    %230 = arith.addf %222, %229 : vector<32x56xf32>
    %231 = vector.broadcast %195 : vector<32x1xf32> to vector<32x56xf32>
    %232 = arith.cmpf oeq, %56, %231 : vector<32x56xf32>
    %233 = arith.mulf %204, %213 : vector<32x1xf32>
    %cst_69 = arith.constant 0.000000e+00 : f32
    %234 = vector.shape_cast %233 : vector<32x1xf32> to vector<32x1xf32>
    %235 = vector.broadcast %234 : vector<32x1xf32> to vector<32x56xf32>
    %236 = vector.broadcast %cst_69 : f32 to vector<32x56xf32>
    %237 = arith.select %232, %235, %236 : vector<32x56xi1>, vector<32x56xf32>
    %238 = arith.addf %230, %237 : vector<32x56xf32>
    %239 = tpu.concatenate %150, %238 in 0 : vector<32x56xf32>, vector<32x56xf32> -> vector<64x56xf32>
    %cst_70 = arith.constant dense<0.000000e+00> : vector<64x32xf32>
    %240 = tpu.matmul %239, %53, %cst_70 {dimension_numbers = #tpu.dot_dimension_numbers<[1], [0], [0], [1], [0, 0, 1, 1], [], []>, precision = #tpu.contract_precision<fp32>} : vector<64x56xf32>, vector<56x32xf32>, vector<64x32xf32> -> vector<64x32xf32>
    %241 = tpu.concatenate %16, %16 in 0 : vector<32x1xf32>, vector<32x1xf32> -> vector<64x1xf32>
    %242 = vector.broadcast %241 : vector<64x1xf32> to vector<64x32xf32>
    %243 = arith.mulf %240, %242 : vector<64x32xf32>
    %c0_71 = arith.constant 0 : index
    %c0_72 = arith.constant 0 : index
    %244 = vector.load %arg3[%c0_71, %c0_72] : memref<64x32xf32, #tpu.memory_space<vmem>>, vector<64x32xf32>
    tpu.vector_store %arg3[%c0_71, %c0_72], %243 {strides = array<i32>} : memref<64x32xf32, #tpu.memory_space<vmem>>, vector<64x32xf32>,
    return
  }
  func.func @transform_0(%arg0: i32) -> (i32, i32) {
    %c0_i32 = arith.constant 0 : i32
    %c0_i32_0 = arith.constant 0 : i32
    %c0_i32_1 = arith.constant 0 : i32
    return %c0_i32, %c0_i32_0 : i32, i32
  }
  func.func @transform_1(%arg0: i32) -> (i32, i32) {
    %c0_i32 = arith.constant 0 : i32
    %c0_i32_0 = arith.constant 0 : i32
    %c0_i32_1 = arith.constant 0 : i32
    return %c0_i32, %c0_i32_0 : i32, i32
  }
  func.func @transform_2(%arg0: i32) -> (i32, i32) {
    %c0_i32 = arith.constant 0 : i32
    %c0_i32_0 = arith.constant 0 : i32
    %c0_i32_1 = arith.constant 0 : i32
    return %c0_i32, %c0_i32_0 : i32, i32
  }
}

</mosaic_0001>

<llo_original>
// kernel: tpu_custom_call.1
$region0: #{tpu_custom_call.1}
  #allocation0 [shape = 'u32[]', space=smem, size = 0x4, offset = 0x4, fixed_abs, tag = 'smem constant byte address 0x4 - core index']
  #allocation1 [shape = 'u32[144,128]{1,0:T(1,128)}', space=vmem, size = 0x12000, scoped, tag = 'internal scratch']
  %s0 = inlined_call_operand.vmem [shape: f32[128,8], index: 0, kind: input, shape index: {}]
  %s1 = inlined_call_operand.vmem [shape: f32[40,32], index: 1, kind: input, shape index: {}]
  %s2 = inlined_call_operand.vmem [shape: f32[64,32], index: 2, kind: output, shape index: {}]
  %s3 = sld [smem:[#allocation0]]
  $region18: #{tpu_custom_call.1} parent=0
    _
  %s5 = ssub.s32 1, %s3
  %s6 = scalar_select 0, %s5, %s3
  // Predicated region
  $region2: #{tpu_custom_call.1} parent=0 // pred_check
    _
  $region3: #{tpu_custom_call.1} parent=0 // pred_check_branch
    %8 = sbr.rel (0) target = $region5
  $region4: #{tpu_custom_call.1} parent=0 // pred_region
    _
  $region5: #{tpu_custom_call.1} parent=0 // pred_fallthru
    _
  // Predicated region
  $region6: #{tpu_custom_call.1} parent=0 // pred_check
    _
  $region7: #{tpu_custom_call.1} parent=0 // pred_check_branch
    %10 = sbr.rel (0) target = $region9
  $region8: #{tpu_custom_call.1} parent=0 // pred_region
    _
  $region9: #{tpu_custom_call.1} parent=0 // pred_fallthru
    _
  %v11 = vld [vmem:[%s1] sm:$0xff]
  %v12 = vld [vmem:[%s1 + $0x8] sm:$0xff]
  %v13 = vld [vmem:[%s1 + $0x10] sm:$0xff]
  %v14 = vld [vmem:[%s1 + $0x18] sm:$0xff]
  %v15 = vld [vmem:[%s1 + $0x20] sm:$0x1]
  %v16 = vld [vmem:[%s1 + $0x21] sm:$0x1]
  %v17 = vld [vmem:[%s1 + $0x22] sm:$0x1]
  %v18 = vld [vmem:[%s0] sm:$0xff]
  %v19 = vld [vmem:[%s0 + $0x8] sm:$0xff]
  %v20 = vld [vmem:[%s0 + $0x10] sm:$0xff]
  %v21 = vld [vmem:[%s0 + $0x18] sm:$0xff]
  %vm22 = vcmask 64512
  %v23 = vsel %vm22, %v18, inf
  %24 = vmin.xlane.f32.xlu0 %v23
  %v25 = vpop.xlane.xlu0 %24
  %v26 = vsel %vm22, %v19, inf
  %27 = vmin.xlane.f32.xlu0 %v26
  %v28 = vpop.xlane.xlu0 %27
  %v29 = vsel %vm22, %v20, inf
  %30 = vmin.xlane.f32.xlu0 %v29
  %v31 = vpop.xlane.xlu0 %30
  %v32 = vsel %vm22, %v21, inf
  %33 = vmin.xlane.f32.xlu0 %v32
  %v34 = vpop.xlane.xlu0 %33
  %v35 = vsel %vm22, %v18, -inf
  %36 = vmax.xlane.f32.xlu0 %v35
  %v37 = vpop.xlane.xlu0 %36
  %v38 = vsel %vm22, %v19, -inf
  %39 = vmax.xlane.f32.xlu0 %v38
  %v40 = vpop.xlane.xlu0 %39
  %v41 = vsel %vm22, %v20, -inf
  %42 = vmax.xlane.f32.xlu0 %v41
  %v43 = vpop.xlane.xlu0 %42
  %v44 = vsel %vm22, %v21, -inf
  %45 = vmax.xlane.f32.xlu0 %v44
  %v46 = vpop.xlane.xlu0 %45
  %v47 = vsub.f32 %v37, %v25
  %v48 = vsub.f32 %v40, %v28
  %v49 = vsub.f32 %v43, %v31
  %v50 = vsub.f32 %v46, %v34
  %vm51 = vcmp.eq.f32.partialorder %v47, 0.0
  %vm52 = vcmp.eq.f32.partialorder %v48, 0.0
  %vm53 = vcmp.eq.f32.partialorder %v49, 0.0
  %vm54 = vcmp.eq.f32.partialorder %v50, 0.0
  %v55 = vsel %vm51, 1.0, %v47
  %v56 = vsel %vm52, 1.0, %v48
  %v57 = vsel %vm53, 1.0, %v49
  %v58 = vsel %vm54, 1.0, %v50
  %v59 = vsub.f32 %v18, %v25
  %v60 = vsub.f32 %v19, %v28
  %v61 = vsub.f32 %v20, %v31
  %v62 = vsub.f32 %v21, %v34
  %v63 = vrcp.pop %v55
  %v64 = vmul.f32 1.0, %v63
  %v65 = vrcp.pop %v56
  %v66 = vmul.f32 1.0, %v65
  %v67 = vrcp.pop %v57
  %v68 = vmul.f32 1.0, %v67
  %v69 = vrcp.pop %v58
  %v70 = vmul.f32 1.0, %v69
  %v71 = vmul.f32 %v59, %v64
  %v72 = vmul.f32 %v60, %v66
  %v73 = vmul.f32 %v61, %v68
  %v74 = vmul.f32 %v62, %v70
  %v75 = vlaneseq
  %v76 = vshrl.u32 %v75, 7
  %v77 = vsub.s32 0, %v76
  %v78 = vrot.slane %v16, %v77
  %v80 = vsel %vm22, %v71, 0
  %v83 = vsel %vm22, %v72, 0
  %v86 = vsel %vm22, %v73, 0
  %v89 = vsel %vm22, %v74, 0
  %91 = vmatprep.subr.mxu0 0.0
  %92 = vmatpush1.msra.mxu0 0.0
  %93 = vmatprep.subr.mxu0 0.0
  %94 = vmatpush1.msra.mxu0 0.0
  %95 = vmatprep.subr.mxu0 0.0
  %96 = vmatpush1.msra.mxu0 0.0
  %97 = vmatprep.subr.mxu0 0.0
  %98 = vmatpush1.msra.mxu0 0.0
  %99 = vmatprep.subr.mxu0 0.0
  %100 = vmatpush1.msra.mxu0 0.0
  %101 = vmatprep.subr.mxu0 0.0
  %102 = vmatpush1.msra.mxu0 0.0
  %103 = vmatprep.subr.mxu0 0.0
  %104 = vmatpush1.msra.mxu0 0.0
  %105 = vmatprep.subr.mxu0 0.0
  %106 = vmatpush1.msra.mxu0 0.0
  %107 = vmatprep.subr.mxu0 0.0
  %108 = vmatpush1.msra.mxu0 0.0
  %109 = vmatprep.subr.mxu0 0.0
  %110 = vmatpush1.msra.mxu0 0.0
  %111 = vmatprep.subr.mxu0 0.0
  %112 = vmatpush1.msra.mxu0 0.0
  %113 = vmatprep.subr.mxu0 0.0
  %114 = vmatpush1.msra.mxu0 0.0
  %115 = vmatprep.subr.mxu0 0.0
  %116 = vmatpush1.msra.mxu0 0.0
  %117 = vmatprep.subr.mxu0 0.0
  %118 = vmatpush1.msra.mxu0 0.0
  %119 = vmatprep.subr.mxu0 0.0
  %120 = vmatpush1.msra.mxu0 0.0
  %121 = vmatprep.subr.mxu0 0.0
  %v122 = vand.u32 %v11, 4294901760
  %123 = vmatpush1.msra.mxu0 %v122
  %124 = vmatprep.subr.mxu0 0.0
  %125 = vmatpush2.msra.mxu0 0.0
  %126 = vmatprep.subr.mxu0 0.0
  %127 = vmatpush2.msra.mxu0 0.0
  %128 = vmatprep.subr.mxu0 0.0
  %129 = vmatpush2.msra.mxu0 0.0
  %130 = vmatprep.subr.mxu0 0.0
  %131 = vmatpush2.msra.mxu0 0.0
  %132 = vmatprep.subr.mxu0 0.0
  %133 = vmatpush2.msra.mxu0 0.0
  %134 = vmatprep.subr.mxu0 0.0
  %135 = vmatpush2.msra.mxu0 0.0
  %136 = vmatprep.subr.mxu0 0.0
  %137 = vmatpush2.msra.mxu0 0.0
  %138 = vmatprep.subr.mxu0 0.0
  %139 = vmatpush2.msra.mxu0 0.0
  %140 = vmatprep.subr.mxu0 0.0
  %141 = vmatpush2.msra.mxu0 0.0
  %142 = vmatprep.subr.mxu0 0.0
  %143 = vmatpush2.msra.mxu0 0.0
  %144 = vmatprep.subr.mxu0 0.0
  %145 = vmatpush2.msra.mxu0 0.0
  %146 = vmatprep.subr.mxu0 0.0
  %147 = vmatpush2.msra.mxu0 0.0
  %148 = vmatprep.subr.mxu0 0.0
  %149 = vmatpush2.msra.mxu0 0.0
  %150 = vmatprep.subr.mxu0 0.0
  %151 = vmatpush2.msra.mxu0 0.0
  %152 = vmatprep.subr.mxu0 0.0
  %153 = vmatpush2.msra.mxu0 0.0
  %154 = vmatprep.subr.mxu0 0.0
  %155 = vmatpush2.msra.mxu0 0.0
  %156 = vmatprep.mubr.f32.mxu0 0.0
  %v157 = vand.u32 %v80, 4294901760
  %v158 = vsub.f32 %v80, %v157
  %v159 = vand.u32 %v158, 4294901760
  %v160 = vsub.f32 %v158, %v159
  %v161 = vand.u32 %v160, 4294901760
  %162 = vmatmul.mubr.f32.gmra.mxu0 %v161
  %v163 = vpop.f32.mrf.mxu0
  %v164 = vadd.f32 %v78, %v163
  %v165 = vpop.f32.mrf.mxu0
  %166 = vmatprep.mubr.f32.mxu0 0.0
  %v167 = vand.u32 %v83, 4294901760
  %v168 = vsub.f32 %v83, %v167
  %v169 = vand.u32 %v168, 4294901760
  %v170 = vsub.f32 %v168, %v169
  %v171 = vand.u32 %v170, 4294901760
  %172 = vmatmul.mubr.f32.gmra.mxu0 %v171
  %v173 = vpop.f32.mrf.mxu0
  %v174 = vadd.f32 %v78, %v173
  %v175 = vpop.f32.mrf.mxu0
  %176 = vmatprep.mubr.f32.mxu0 0.0
  %v177 = vand.u32 %v86, 4294901760
  %v178 = vsub.f32 %v86, %v177
  %v179 = vand.u32 %v178, 4294901760
  %v180 = vsub.f32 %v178, %v179
  %v181 = vand.u32 %v180, 4294901760
  %182 = vmatmul.mubr.f32.gmra.mxu0 %v181
  %v183 = vpop.f32.mrf.mxu0
  %v184 = vadd.f32 %v78, %v183
  %v185 = vpop.f32.mrf.mxu0
  %186 = vmatprep.mubr.f32.mxu0 0.0
  %v187 = vand.u32 %v89, 4294901760
  %v188 = vsub.f32 %v89, %v187
  %v189 = vand.u32 %v188, 4294901760
  %v190 = vsub.f32 %v188, %v189
  %v191 = vand.u32 %v190, 4294901760
  %192 = vmatmul.mubr.f32.gmra.mxu0 %v191
  %v193 = vpop.f32.mrf.mxu0
  %v194 = vadd.f32 %v78, %v193
  %v195 = vpop.f32.mrf.mxu0
  %196 = vdwg.mxu0
  %197 = vmatprep.subr.mxu0 0.0
  %198 = vmatpush1.msra.mxu0 0.0
  %199 = vmatprep.subr.mxu0 0.0
  %200 = vmatpush1.msra.mxu0 0.0
  %201 = vmatprep.subr.mxu0 0.0
  %202 = vmatpush1.msra.mxu0 0.0
  %203 = vmatprep.subr.mxu0 0.0
  %204 = vmatpush1.msra.mxu0 0.0
  %205 = vmatprep.subr.mxu0 0.0
  %206 = vmatpush1.msra.mxu0 0.0
  %207 = vmatprep.subr.mxu0 0.0
  %208 = vmatpush1.msra.mxu0 0.0
  %209 = vmatprep.subr.mxu0 0.0
  %210 = vmatpush1.msra.mxu0 0.0
  %211 = vmatprep.subr.mxu0 0.0
  %212 = vmatpush1.msra.mxu0 0.0
  %213 = vmatprep.subr.mxu0 0.0
  %214 = vmatpush1.msra.mxu0 0.0
  %215 = vmatprep.subr.mxu0 0.0
  %216 = vmatpush1.msra.mxu0 0.0
  %217 = vmatprep.subr.mxu0 0.0
  %218 = vmatpush1.msra.mxu0 0.0
  %219 = vmatprep.subr.mxu0 0.0
  %220 = vmatpush1.msra.mxu0 0.0
  %221 = vmatprep.subr.mxu0 0.0
  %222 = vmatpush1.msra.mxu0 0.0
  %223 = vmatprep.subr.mxu0 0.0
  %224 = vmatpush1.msra.mxu0 0.0
  %225 = vmatprep.subr.mxu0 0.0
  %226 = vmatpush1.msra.mxu0 0.0
  %227 = vmatprep.subr.mxu0 0.0
  %v228 = vand.u32 %v11, 4294901760
  %v229 = vsub.f32 %v11, %v228
  %v230 = vand.u32 %v229, 4294901760
  %v231 = vsub.f32 %v229, %v230
  %v232 = vand.u32 %v231, 4294901760
  %233 = vmatpush1.msra.mxu0 %v232
  %234 = vmatprep.subr.mxu0 0.0
  %235 = vmatpush2.msra.mxu0 0.0
  %236 = vmatprep.subr.mxu0 0.0
  %237 = vmatpush2.msra.mxu0 0.0
  %238 = vmatprep.subr.mxu0 0.0
  %239 = vmatpush2.msra.mxu0 0.0
  %240 = vmatprep.subr.mxu0 0.0
  %241 = vmatpush2.msra.mxu0 0.0
  %242 = vmatprep.subr.mxu0 0.0
  %243 = vmatpush2.msra.mxu0 0.0
  %244 = vmatprep.subr.mxu0 0.0
  %245 = vmatpush2.msra.mxu0 0.0
  %246 = vmatprep.subr.mxu0 0.0
  %247 = vmatpush2.msra.mxu0 0.0
  %248 = vmatprep.subr.mxu0 0.0
  %249 = vmatpush2.msra.mxu0 0.0
  %250 = vmatprep.subr.mxu0 0.0
  %251 = vmatpush2.msra.mxu0 0.0
  %252 = vmatprep.subr.mxu0 0.0
  %253 = vmatpush2.msra.mxu0 0.0
  %254 = vmatprep.subr.mxu0 0.0
  %255 = vmatpush2.msra.mxu0 0.0
  %256 = vmatprep.subr.mxu0 0.0
  %257 = vmatpush2.msra.mxu0 0.0
  %258 = vmatprep.subr.mxu0 0.0
  %259 = vmatpush2.msra.mxu0 0.0
  %260 = vmatprep.subr.mxu0 0.0
  %261 = vmatpush2.msra.mxu0 0.0
  %262 = vmatprep.subr.mxu0 0.0
  %263 = vmatpush2.msra.mxu0 0.0
  %264 = vmatprep.subr.mxu0 0.0
  %265 = vmatpush2.msra.mxu0 0.0
  %266 = vmatprep.mubr.f32.mxu0 0.0
  %v267 = vand.u32 %v80, 4294901760
  %268 = vmatmul.mubr.f32.gmra.mxu0 %v267
  %v269 = vpop.f32.mrf.mxu0
  %v270 = vadd.f32 %v164, %v269
  %v271 = vpop.f32.mrf.mxu0
  %272 = vmatprep.mubr.f32.mxu0 0.0
  %v273 = vand.u32 %v83, 4294901760
  %274 = vmatmul.mubr.f32.gmra.mxu0 %v273
  %v275 = vpop.f32.mrf.mxu0
  %v276 = vadd.f32 %v174, %v275
  %v277 = vpop.f32.mrf.mxu0
  %278 = vmatprep.mubr.f32.mxu0 0.0
  %v279 = vand.u32 %v86, 4294901760
  %280 = vmatmul.mubr.f32.gmra.mxu0 %v279
  %v281 = vpop.f32.mrf.mxu0
  %v282 = vadd.f32 %v184, %v281
  %v283 = vpop.f32.mrf.mxu0
  %284 = vmatprep.mubr.f32.mxu0 0.0
  %v285 = vand.u32 %v89, 4294901760
  %286 = vmatmul.mubr.f32.gmra.mxu0 %v285
  %v287 = vpop.f32.mrf.mxu0
  %v288 = vadd.f32 %v194, %v287
  %v289 = vpop.f32.mrf.mxu0
  %290 = vdwg.mxu0
  %291 = vmatprep.subr.mxu0 0.0
  %292 = vmatpush1.msra.mxu0 0.0
  %293 = vmatprep.subr.mxu0 0.0
  %294 = vmatpush1.msra.mxu0 0.0
  %295 = vmatprep.subr.mxu0 0.0
  %296 = vmatpush1.msra.mxu0 0.0
  %297 = vmatprep.subr.mxu0 0.0
  %298 = vmatpush1.msra.mxu0 0.0
  %299 = vmatprep.subr.mxu0 0.0
  %300 = vmatpush1.msra.mxu0 0.0
  %301 = vmatprep.subr.mxu0 0.0
  %302 = vmatpush1.msra.mxu0 0.0
  %303 = vmatprep.subr.mxu0 0.0
  %304 = vmatpush1.msra.mxu0 0.0
  %305 = vmatprep.subr.mxu0 0.0
  %306 = vmatpush1.msra.mxu0 0.0
  %307 = vmatprep.subr.mxu0 0.0
  %308 = vmatpush1.msra.mxu0 0.0
  %309 = vmatprep.subr.mxu0 0.0
  %310 = vmatpush1.msra.mxu0 0.0
  %311 = vmatprep.subr.mxu0 0.0
  %312 = vmatpush1.msra.mxu0 0.0
  %313 = vmatprep.subr.mxu0 0.0
  %314 = vmatpush1.msra.mxu0 0.0
  %315 = vmatprep.subr.mxu0 0.0
  %316 = vmatpush1.msra.mxu0 0.0
  %317 = vmatprep.subr.mxu0 0.0
  %318 = vmatpush1.msra.mxu0 0.0
  %319 = vmatprep.subr.mxu0 0.0
  %320 = vmatpush1.msra.mxu0 0.0
  %321 = vmatprep.subr.mxu0 0.0
  %v322 = vand.u32 %v11, 4294901760
  %v323 = vsub.f32 %v11, %v322
  %324 = vmatpush1.msra.mxu0 %v323
  %325 = vmatprep.subr.mxu0 0.0
  %326 = vmatpush2.msra.mxu0 0.0
  %327 = vmatprep.subr.mxu0 0.0
  %328 = vmatpush2.msra.mxu0 0.0
  %329 = vmatprep.subr.mxu0 0.0
  %330 = vmatpush2.msra.mxu0 0.0
  %331 = vmatprep.subr.mxu0 0.0
  %332 = vmatpush2.msra.mxu0 0.0
  %333 = vmatprep.subr.mxu0 0.0
  %334 = vmatpush2.msra.mxu0 0.0
  %335 = vmatprep.subr.mxu0 0.0
  %336 = vmatpush2.msra.mxu0 0.0
  %337 = vmatprep.subr.mxu0 0.0
  %338 = vmatpush2.msra.mxu0 0.0
  %339 = vmatprep.subr.mxu0 0.0
  %340 = vmatpush2.msra.mxu0 0.0
  %341 = vmatprep.subr.mxu0 0.0
  %342 = vmatpush2.msra.mxu0 0.0
  %343 = vmatprep.subr.mxu0 0.0
  %344 = vmatpush2.msra.mxu0 0.0
  %345 = vmatprep.subr.mxu0 0.0
  %346 = vmatpush2.msra.mxu0 0.0
  %347 = vmatprep.subr.mxu0 0.0
  %348 = vmatpush2.msra.mxu0 0.0
  %349 = vmatprep.subr.mxu0 0.0
  %350 = vmatpush2.msra.mxu0 0.0
  %351 = vmatprep.subr.mxu0 0.0
  %352 = vmatpush2.msra.mxu0 0.0
  %353 = vmatprep.subr.mxu0 0.0
  %354 = vmatpush2.msra.mxu0 0.0
  %355 = vmatprep.subr.mxu0 0.0
  %356 = vmatpush2.msra.mxu0 0.0
  %357 = vmatprep.mubr.f32.mxu0 0.0
  %v358 = vand.u32 %v80, 4294901760
  %v359 = vsub.f32 %v80, %v358
  %360 = vmatmul.mubr.f32.gmra.mxu0 %v359
  %v361 = vpop.f32.mrf.mxu0
  %v362 = vadd.f32 %v270, %v361
  %v363 = vpop.f32.mrf.mxu0
  %364 = vmatprep.mubr.f32.mxu0 0.0
  %v365 = vand.u32 %v83, 4294901760
  %v366 = vsub.f32 %v83, %v365
  %367 = vmatmul.mubr.f32.gmra.mxu0 %v366
  %v368 = vpop.f32.mrf.mxu0
  %v369 = vadd.f32 %v276, %v368
  %v370 = vpop.f32.mrf.mxu0
  %371 = vmatprep.mubr.f32.mxu0 0.0
  %v372 = vand.u32 %v86, 4294901760
  %v373 = vsub.f32 %v86, %v372
  %374 = vmatmul.mubr.f32.gmra.mxu0 %v373
  %v375 = vpop.f32.mrf.mxu0
  %v376 = vadd.f32 %v282, %v375
  %v377 = vpop.f32.mrf.mxu0
  %378 = vmatprep.mubr.f32.mxu0 0.0
  %v379 = vand.u32 %v89, 4294901760
  %v380 = vsub.f32 %v89, %v379
  %381 = vmatmul.mubr.f32.gmra.mxu0 %v380
  %v382 = vpop.f32.mrf.mxu0
  %v383 = vadd.f32 %v288, %v382
  %v384 = vpop.f32.mrf.mxu0
  %385 = vdwg.mxu0
  %386 = vmatprep.subr.mxu0 0.0
  %387 = vmatpush1.msra.mxu0 0.0
  %388 = vmatprep.subr.mxu0 0.0
  %389 = vmatpush1.msra.mxu0 0.0
  %390 = vmatprep.subr.mxu0 0.0
  %391 = vmatpush1.msra.mxu0 0.0
  %392 = vmatprep.subr.mxu0 0.0
  %393 = vmatpush1.msra.mxu0 0.0
  %394 = vmatprep.subr.mxu0 0.0
  %395 = vmatpush1.msra.mxu0 0.0
  %396 = vmatprep.subr.mxu0 0.0
  %397 = vmatpush1.msra.mxu0 0.0
  %398 = vmatprep.subr.mxu0 0.0
  %399 = vmatpush1.msra.mxu0 0.0
  %400 = vmatprep.subr.mxu0 0.0
  %401 = vmatpush1.msra.mxu0 0.0
  %402 = vmatprep.subr.mxu0 0.0
  %403 = vmatpush1.msra.mxu0 0.0
  %404 = vmatprep.subr.mxu0 0.0
  %405 = vmatpush1.msra.mxu0 0.0
  %406 = vmatprep.subr.mxu0 0.0
  %407 = vmatpush1.msra.mxu0 0.0
  %408 = vmatprep.subr.mxu0 0.0
  %409 = vmatpush1.msra.mxu0 0.0
  %410 = vmatprep.subr.mxu0 0.0
  %411 = vmatpush1.msra.mxu0 0.0
  %412 = vmatprep.subr.mxu0 0.0
  %413 = vmatpush1.msra.mxu0 0.0
  %414 = vmatprep.subr.mxu0 0.0
  %415 = vmatpush1.msra.mxu0 0.0
  %416 = vmatprep.subr.mxu0 0.0
  %v417 = vand.u32 %v11, 4294901760
  %418 = vmatpush1.msra.mxu0 %v417
  %419 = vmatprep.subr.mxu0 0.0
  %420 = vmatpush2.msra.mxu0 0.0
  %421 = vmatprep.subr.mxu0 0.0
  %422 = vmatpush2.msra.mxu0 0.0
  %423 = vmatprep.subr.mxu0 0.0
  %424 = vmatpush2.msra.mxu0 0.0
  %425 = vmatprep.subr.mxu0 0.0
  %426 = vmatpush2.msra.mxu0 0.0
  %427 = vmatprep.subr.mxu0 0.0
  %428 = vmatpush2.msra.mxu0 0.0
  %429 = vmatprep.subr.mxu0 0.0
  %430 = vmatpush2.msra.mxu0 0.0
  %431 = vmatprep.subr.mxu0 0.0
  %432 = vmatpush2.msra.mxu0 0.0
  %433 = vmatprep.subr.mxu0 0.0
  %434 = vmatpush2.msra.mxu0 0.0
  %435 = vmatprep.subr.mxu0 0.0
  %436 = vmatpush2.msra.mxu0 0.0
  %437 = vmatprep.subr.mxu0 0.0
  %438 = vmatpush2.msra.mxu0 0.0
  %439 = vmatprep.subr.mxu0 0.0
  %440 = vmatpush2.msra.mxu0 0.0
  %441 = vmatprep.subr.mxu0 0.0
  %442 = vmatpush2.msra.mxu0 0.0
  %443 = vmatprep.subr.mxu0 0.0
  %444 = vmatpush2.msra.mxu0 0.0
  %445 = vmatprep.subr.mxu0 0.0
  %446 = vmatpush2.msra.mxu0 0.0
  %447 = vmatprep.subr.mxu0 0.0
  %448 = vmatpush2.msra.mxu0 0.0
  %449 = vmatprep.subr.mxu0 0.0
  %450 = vmatpush2.msra.mxu0 0.0
  %451 = vmatprep.mubr.f32.mxu0 0.0
  %v452 = vand.u32 %v80, 4294901760
  %v453 = vsub.f32 %v80, %v452
  %v454 = vand.u32 %v453, 4294901760
  %455 = vmatmul.mubr.f32.gmra.mxu0 %v454
  %v456 = vpop.f32.mrf.mxu0
  %v457 = vadd.f32 %v362, %v456
  %v458 = vpop.f32.mrf.mxu0
  %459 = vmatprep.mubr.f32.mxu0 0.0
  %v460 = vand.u32 %v83, 4294901760
  %v461 = vsub.f32 %v83, %v460
  %v462 = vand.u32 %v461, 4294901760
  %463 = vmatmul.mubr.f32.gmra.mxu0 %v462
  %v464 = vpop.f32.mrf.mxu0
  %v465 = vadd.f32 %v369, %v464
  %v466 = vpop.f32.mrf.mxu0
  %467 = vmatprep.mubr.f32.mxu0 0.0
  %v468 = vand.u32 %v86, 4294901760
  %v469 = vsub.f32 %v86, %v468
  %v470 = vand.u32 %v469, 4294901760
  %471 = vmatmul.mubr.f32.gmra.mxu0 %v470
  %v472 = vpop.f32.mrf.mxu0
  %v473 = vadd.f32 %v376, %v472
  %v474 = vpop.f32.mrf.mxu0
  %475 = vmatprep.mubr.f32.mxu0 0.0
  %v476 = vand.u32 %v89, 4294901760
  %v477 = vsub.f32 %v89, %v476
  %v478 = vand.u32 %v477, 4294901760
  %479 = vmatmul.mubr.f32.gmra.mxu0 %v478
  %v480 = vpop.f32.mrf.mxu0
  %v481 = vadd.f32 %v383, %v480
  %v482 = vpop.f32.mrf.mxu0
  %483 = vdwg.mxu0
  %484 = vmatprep.subr.mxu0 0.0
  %485 = vmatpush1.msra.mxu0 0.0
  %486 = vmatprep.subr.mxu0 0.0
  %487 = vmatpush1.msra.mxu0 0.0
  %488 = vmatprep.subr.mxu0 0.0
  %489 = vmatpush1.msra.mxu0 0.0
  %490 = vmatprep.subr.mxu0 0.0
  %491 = vmatpush1.msra.mxu0 0.0
  %492 = vmatprep.subr.mxu0 0.0
  %493 = vmatpush1.msra.mxu0 0.0
  %494 = vmatprep.subr.mxu0 0.0
  %495 = vmatpush1.msra.mxu0 0.0
  %496 = vmatprep.subr.mxu0 0.0
  %497 = vmatpush1.msra.mxu0 0.0
  %498 = vmatprep.subr.mxu0 0.0
  %499 = vmatpush1.msra.mxu0 0.0
  %500 = vmatprep.subr.mxu0 0.0
  %501 = vmatpush1.msra.mxu0 0.0
  %502 = vmatprep.subr.mxu0 0.0
  %503 = vmatpush1.msra.mxu0 0.0
  %504 = vmatprep.subr.mxu0 0.0
  %505 = vmatpush1.msra.mxu0 0.0
  %506 = vmatprep.subr.mxu0 0.0
  %507 = vmatpush1.msra.mxu0 0.0
  %508 = vmatprep.subr.mxu0 0.0
  %509 = vmatpush1.msra.mxu0 0.0
  %510 = vmatprep.subr.mxu0 0.0
  %511 = vmatpush1.msra.mxu0 0.0
  %512 = vmatprep.subr.mxu0 0.0
  %513 = vmatpush1.msra.mxu0 0.0
  %514 = vmatprep.subr.mxu0 0.0
  %v515 = vand.u32 %v11, 4294901760
  %v516 = vsub.f32 %v11, %v515
  %v517 = vand.u32 %v516, 4294901760
  %518 = vmatpush1.msra.mxu0 %v517
  %519 = vmatprep.subr.mxu0 0.0
  %520 = vmatpush2.msra.mxu0 0.0
  %521 = vmatprep.subr.mxu0 0.0
  %522 = vmatpush2.msra.mxu0 0.0
  %523 = vmatprep.subr.mxu0 0.0
  %524 = vmatpush2.msra.mxu0 0.0
  %525 = vmatprep.subr.mxu0 0.0
  %526 = vmatpush2.msra.mxu0 0.0
  %527 = vmatprep.subr.mxu0 0.0
  %528 = vmatpush2.msra.mxu0 0.0
  %529 = vmatprep.subr.mxu0 0.0
  %530 = vmatpush2.msra.mxu0 0.0
  %531 = vmatprep.subr.mxu0 0.0
  %532 = vmatpush2.msra.mxu0 0.0
  %533 = vmatprep.subr.mxu0 0.0
  %534 = vmatpush2.msra.mxu0 0.0
  %535 = vmatprep.subr.mxu0 0.0
  %536 = vmatpush2.msra.mxu0 0.0
  %537 = vmatprep.subr.mxu0 0.0
  %538 = vmatpush2.msra.mxu0 0.0
  %539 = vmatprep.subr.mxu0 0.0
  %540 = vmatpush2.msra.mxu0 0.0
  %541 = vmatprep.subr.mxu0 0.0
  %542 = vmatpush2.msra.mxu0 0.0
  %543 = vmatprep.subr.mxu0 0.0
  %544 = vmatpush2.msra.mxu0 0.0
  %545 = vmatprep.subr.mxu0 0.0
  %546 = vmatpush2.msra.mxu0 0.0
  %547 = vmatprep.subr.mxu0 0.0
  %548 = vmatpush2.msra.mxu0 0.0
  %549 = vmatprep.subr.mxu0 0.0
  %550 = vmatpush2.msra.mxu0 0.0
  %551 = vmatprep.mubr.f32.mxu0 0.0
  %v552 = vand.u32 %v80, 4294901760
  %553 = vmatmul.mubr.f32.gmra.mxu0 %v552
  %v554 = vpop.f32.mrf.mxu0
  %v555 = vadd.f32 %v457, %v554
  %v556 = vpop.f32.mrf.mxu0
  %557 = vmatprep.mubr.f32.mxu0 0.0
  %v558 = vand.u32 %v83, 4294901760
  %559 = vmatmul.mubr.f32.gmra.mxu0 %v558
  %v560 = vpop.f32.mrf.mxu0
  %v561 = vadd.f32 %v465, %v560
  %v562 = vpop.f32.mrf.mxu0
  %563 = vmatprep.mubr.f32.mxu0 0.0
  %v564 = vand.u32 %v86, 4294901760
  %565 = vmatmul.mubr.f32.gmra.mxu0 %v564
  %v566 = vpop.f32.mrf.mxu0
  %v567 = vadd.f32 %v473, %v566
  %v568 = vpop.f32.mrf.mxu0
  %569 = vmatprep.mubr.f32.mxu0 0.0
  %v570 = vand.u32 %v89, 4294901760
  %571 = vmatmul.mubr.f32.gmra.mxu0 %v570
  %v572 = vpop.f32.mrf.mxu0
  %v573 = vadd.f32 %v481, %v572
  %v574 = vpop.f32.mrf.mxu0
  %575 = vdwg.mxu0
  %576 = vmatprep.subr.mxu0 0.0
  %577 = vmatpush1.msra.mxu0 0.0
  %578 = vmatprep.subr.mxu0 0.0
  %579 = vmatpush1.msra.mxu0 0.0
  %580 = vmatprep.subr.mxu0 0.0
  %581 = vmatpush1.msra.mxu0 0.0
  %582 = vmatprep.subr.mxu0 0.0
  %583 = vmatpush1.msra.mxu0 0.0
  %584 = vmatprep.subr.mxu0 0.0
  %585 = vmatpush1.msra.mxu0 0.0
  %586 = vmatprep.subr.mxu0 0.0
  %587 = vmatpush1.msra.mxu0 0.0
  %588 = vmatprep.subr.mxu0 0.0
  %589 = vmatpush1.msra.mxu0 0.0
  %590 = vmatprep.subr.mxu0 0.0
  %591 = vmatpush1.msra.mxu0 0.0
  %592 = vmatprep.subr.mxu0 0.0
  %593 = vmatpush1.msra.mxu0 0.0
  %594 = vmatprep.subr.mxu0 0.0
  %595 = vmatpush1.msra.mxu0 0.0
  %596 = vmatprep.subr.mxu0 0.0
  %597 = vmatpush1.msra.mxu0 0.0
  %598 = vmatprep.subr.mxu0 0.0
  %599 = vmatpush1.msra.mxu0 0.0
  %600 = vmatprep.subr.mxu0 0.0
  %601 = vmatpush1.msra.mxu0 0.0
  %602 = vmatprep.subr.mxu0 0.0
  %603 = vmatpush1.msra.mxu0 0.0
  %604 = vmatprep.subr.mxu0 0.0
  %605 = vmatpush1.msra.mxu0 0.0
  %606 = vmatprep.subr.mxu0 0.0
  %v607 = vand.u32 %v11, 4294901760
  %608 = vmatpush1.msra.mxu0 %v607
  %609 = vmatprep.subr.mxu0 0.0
  %610 = vmatpush2.msra.mxu0 0.0
  %611 = vmatprep.subr.mxu0 0.0
  %612 = vmatpush2.msra.mxu0 0.0
  %613 = vmatprep.subr.mxu0 0.0
  %614 = vmatpush2.msra.mxu0 0.0
  %615 = vmatprep.subr.mxu0 0.0
  %616 = vmatpush2.msra.mxu0 0.0
  %617 = vmatprep.subr.mxu0 0.0
  %618 = vmatpush2.msra.mxu0 0.0
  %619 = vmatprep.subr.mxu0 0.0
  %620 = vmatpush2.msra.mxu0 0.0
  %621 = vmatprep.subr.mxu0 0.0
  %622 = vmatpush2.msra.mxu0 0.0
  %623 = vmatprep.subr.mxu0 0.0
  %624 = vmatpush2.msra.mxu0 0.0
  %625 = vmatprep.subr.mxu0 0.0
  %626 = vmatpush2.msra.mxu0 0.0
  %627 = vmatprep.subr.mxu0 0.0
  %628 = vmatpush2.msra.mxu0 0.0
  %629 = vmatprep.subr.mxu0 0.0
  %630 = vmatpush2.msra.mxu0 0.0
  %631 = vmatprep.subr.mxu0 0.0
  %632 = vmatpush2.msra.mxu0 0.0
  %633 = vmatprep.subr.mxu0 0.0
  %634 = vmatpush2.msra.mxu0 0.0
  %635 = vmatprep.subr.mxu0 0.0
  %636 = vmatpush2.msra.mxu0 0.0
  %637 = vmatprep.subr.mxu0 0.0
  %638 = vmatpush2.msra.mxu0 0.0
  %639 = vmatprep.subr.mxu0 0.0
  %640 = vmatpush2.msra.mxu0 0.0
  %641 = vmatprep.mubr.f32.mxu0 0.0
  %v642 = vand.u32 %v80, 4294901760
  %643 = vmatmul.mubr.f32.gmra.mxu0 %v642
  %v644 = vpop.f32.mrf.mxu0
  %v645 = vadd.f32 %v555, %v644
  %v646 = vpop.f32.mrf.mxu0
  %647 = vmatprep.mubr.f32.mxu0 0.0
  %v648 = vand.u32 %v83, 4294901760
  %649 = vmatmul.mubr.f32.gmra.mxu0 %v648
  %v650 = vpop.f32.mrf.mxu0
  %v651 = vadd.f32 %v561, %v650
  %v652 = vpop.f32.mrf.mxu0
  %653 = vmatprep.mubr.f32.mxu0 0.0
  %v654 = vand.u32 %v86, 4294901760
  %655 = vmatmul.mubr.f32.gmra.mxu0 %v654
  %v656 = vpop.f32.mrf.mxu0
  %v657 = vadd.f32 %v567, %v656
  %v658 = vpop.f32.mrf.mxu0
  %659 = vmatprep.mubr.f32.mxu0 0.0
  %v660 = vand.u32 %v89, 4294901760
  %661 = vmatmul.mubr.f32.gmra.mxu0 %v660
  %v662 = vpop.f32.mrf.mxu0
  %v663 = vadd.f32 %v573, %v662
  %v664 = vpop.f32.mrf.mxu0
  %665 = vdwg.mxu0
  %v666 = vld [vmem:[%s0 + $0x20] sm:$0xff]
  %v667 = vld [vmem:[%s0 + $0x28] sm:$0xff]
  %v668 = vld [vmem:[%s0 + $0x30] sm:$0xff]
  %v669 = vld [vmem:[%s0 + $0x38] sm:$0xff]
  %v670 = vld [vmem:[%s0 + $0x40] sm:$0xff]
  %v671 = vld [vmem:[%s0 + $0x48] sm:$0xff]
  %v672 = vsel %vm22, %v666, inf
  %673 = vmin.xlane.f32.xlu0 %v672
  %v674 = vpop.xlane.xlu0 %673
  %v675 = vsel %vm22, %v667, inf
  %676 = vmin.xlane.f32.xlu0 %v675
  %v677 = vpop.xlane.xlu0 %676
  %v678 = vsel %vm22, %v668, inf
  %679 = vmin.xlane.f32.xlu0 %v678
  %v680 = vpop.xlane.xlu0 %679
  %v681 = vsel %vm22, %v669, inf
  %682 = vmin.xlane.f32.xlu0 %v681
  %v683 = vpop.xlane.xlu0 %682
  %v684 = vsel %vm22, %v670, inf
  %685 = vmin.xlane.f32.xlu0 %v684
  %v686 = vpop.xlane.xlu0 %685
  %v687 = vsel %vm22, %v671, inf
  %688 = vmin.xlane.f32.xlu0 %v687
  %v689 = vpop.xlane.xlu0 %688
  %v690 = vsel %vm22, %v666, -inf
  %691 = vmax.xlane.f32.xlu0 %v690
  %v692 = vpop.xlane.xlu0 %691
  %v693 = vsel %vm22, %v667, -inf
  %694 = vmax.xlane.f32.xlu0 %v693
  %v695 = vpop.xlane.xlu0 %694
  %v696 = vsel %vm22, %v668, -inf
  %697 = vmax.xlane.f32.xlu0 %v696
  %v698 = vpop.xlane.xlu0 %697
  %v699 = vsel %vm22, %v669, -inf
  %700 = vmax.xlane.f32.xlu0 %v699
  %v701 = vpop.xlane.xlu0 %700
  %v702 = vsel %vm22, %v670, -inf
  %703 = vmax.xlane.f32.xlu0 %v702
  %v704 = vpop.xlane.xlu0 %703
  %v705 = vsel %vm22, %v671, -inf
  %706 = vmax.xlane.f32.xlu0 %v705
  %v707 = vpop.xlane.xlu0 %706
  %v708 = vsub.f32 %v692, %v674
  %v709 = vsub.f32 %v695, %v677
  %v710 = vsub.f32 %v698, %v680
  %v711 = vsub.f32 %v701, %v683
  %v712 = vsub.f32 %v704, %v686
  %v713 = vsub.f32 %v707, %v689
  %vm714 = vcmp.eq.f32.partialorder %v708, 0.0
  %vm715 = vcmp.eq.f32.partialorder %v709, 0.0
  %vm716 = vcmp.eq.f32.partialorder %v710, 0.0
  %vm717 = vcmp.eq.f32.partialorder %v711, 0.0
  %vm718 = vcmp.eq.f32.partialorder %v712, 0.0
  %vm719 = vcmp.eq.f32.partialorder %v713, 0.0
  %v720 = vsel %vm714, 1.0, %v708
  %v721 = vsel %vm715, 1.0, %v709
  %v722 = vsel %vm716, 1.0, %v710
  %v723 = vsel %vm717, 1.0, %v711
  %v724 = vsel %vm718, 1.0, %v712
  %v725 = vsel %vm719, 1.0, %v713
  %v726 = vrcp.pop %v720
  %v727 = vmul.f32 1.0, %v726
  %v728 = vrcp.pop %v721
  %v729 = vmul.f32 1.0, %v728
  %v730 = vrcp.pop %v722
  %v731 = vmul.f32 1.0, %v730
  %v732 = vrcp.pop %v723
  %v733 = vmul.f32 1.0, %v732
  %v734 = vrcp.pop %v724
  %v735 = vmul.f32 1.0, %v734
  %v736 = vrcp.pop %v725
  %v737 = vmul.f32 1.0, %v736
  %v738 = vsub.f32 %v666, %v674
  %v739 = vsub.f32 %v667, %v677
  %v740 = vsub.f32 %v668, %v680
  %v741 = vsub.f32 %v669, %v683
  %v742 = vsub.f32 %v670, %v686
  %v743 = vsub.f32 %v671, %v689
  %v744 = vmul.f32 %v738, %v727
  %v745 = vmul.f32 %v739, %v729
  %v746 = vmul.f32 %v740, %v731
  %v747 = vmul.f32 %v741, %v733
  %v748 = vmul.f32 %v742, %v735
  %v749 = vmul.f32 %v743, %v737
  %v750 = vlaneseq
  %v751 = vshrl.u32 %v750, 7
  %v752 = vsub.s32 0, %v751
  %v753 = vrot.slane %v17, %v752
  %v755 = vsel %vm22, %v744, 0
  %v758 = vsel %vm22, %v745, 0
  %v761 = vsel %vm22, %v746, 0
  %v764 = vsel %vm22, %v747, 0
  %v767 = vsel %vm22, %v748, 0
  %v770 = vsel %vm22, %v749, 0
  %772 = vmatprep.subr.mxu0 0.0
  %773 = vmatpush1.msra.mxu0 0.0
  %774 = vmatprep.subr.mxu0 0.0
  %775 = vmatpush1.msra.mxu0 0.0
  %776 = vmatprep.subr.mxu0 0.0
  %777 = vmatpush1.msra.mxu0 0.0
  %778 = vmatprep.subr.mxu0 0.0
  %779 = vmatpush1.msra.mxu0 0.0
  %780 = vmatprep.subr.mxu0 0.0
  %781 = vmatpush1.msra.mxu0 0.0
  %782 = vmatprep.subr.mxu0 0.0
  %783 = vmatpush1.msra.mxu0 0.0
  %784 = vmatprep.subr.mxu0 0.0
  %785 = vmatpush1.msra.mxu0 0.0
  %786 = vmatprep.subr.mxu0 0.0
  %787 = vmatpush1.msra.mxu0 0.0
  %788 = vmatprep.subr.mxu0 0.0
  %789 = vmatpush1.msra.mxu0 0.0
  %790 = vmatprep.subr.mxu0 0.0
  %791 = vmatpush1.msra.mxu0 0.0
  %792 = vmatprep.subr.mxu0 0.0
  %793 = vmatpush1.msra.mxu0 0.0
  %794 = vmatprep.subr.mxu0 0.0
  %795 = vmatpush1.msra.mxu0 0.0
  %796 = vmatprep.subr.mxu0 0.0
  %797 = vmatpush1.msra.mxu0 0.0
  %798 = vmatprep.subr.mxu0 0.0
  %799 = vmatpush1.msra.mxu0 0.0
  %800 = vmatprep.subr.mxu0 0.0
  %801 = vmatpush1.msra.mxu0 0.0
  %802 = vmatprep.subr.mxu0 0.0
  %v803 = vand.u32 %v12, 4294901760
  %804 = vmatpush1.msra.mxu0 %v803
  %805 = vmatprep.subr.mxu0 0.0
  %806 = vmatpush2.msra.mxu0 0.0
  %807 = vmatprep.subr.mxu0 0.0
  %808 = vmatpush2.msra.mxu0 0.0
  %809 = vmatprep.subr.mxu0 0.0
  %810 = vmatpush2.msra.mxu0 0.0
  %811 = vmatprep.subr.mxu0 0.0
  %812 = vmatpush2.msra.mxu0 0.0
  %813 = vmatprep.subr.mxu0 0.0
  %814 = vmatpush2.msra.mxu0 0.0
  %815 = vmatprep.subr.mxu0 0.0
  %816 = vmatpush2.msra.mxu0 0.0
  %817 = vmatprep.subr.mxu0 0.0
  %818 = vmatpush2.msra.mxu0 0.0
  %819 = vmatprep.subr.mxu0 0.0
  %820 = vmatpush2.msra.mxu0 0.0
  %821 = vmatprep.subr.mxu0 0.0
  %822 = vmatpush2.msra.mxu0 0.0
  %823 = vmatprep.subr.mxu0 0.0
  %824 = vmatpush2.msra.mxu0 0.0
  %825 = vmatprep.subr.mxu0 0.0
  %826 = vmatpush2.msra.mxu0 0.0
  %827 = vmatprep.subr.mxu0 0.0
  %828 = vmatpush2.msra.mxu0 0.0
  %829 = vmatprep.subr.mxu0 0.0
  %830 = vmatpush2.msra.mxu0 0.0
  %831 = vmatprep.subr.mxu0 0.0
  %832 = vmatpush2.msra.mxu0 0.0
  %833 = vmatprep.subr.mxu0 0.0
  %834 = vmatpush2.msra.mxu0 0.0
  %835 = vmatprep.subr.mxu0 0.0
  %836 = vmatpush2.msra.mxu0 0.0
  %837 = vmatprep.mubr.f32.mxu0 0.0
  %v838 = vand.u32 %v755, 4294901760
  %v839 = vsub.f32 %v755, %v838
  %v840 = vand.u32 %v839, 4294901760
  %v841 = vsub.f32 %v839, %v840
  %v842 = vand.u32 %v841, 4294901760
  %843 = vmatmul.mubr.f32.gmra.mxu0 %v842
  %v844 = vpop.f32.mrf.mxu0
  %v845 = vadd.f32 %v753, %v844
  %v846 = vpop.f32.mrf.mxu0
  %847 = vmatprep.mubr.f32.mxu0 0.0
  %v848 = vand.u32 %v758, 4294901760
  %v849 = vsub.f32 %v758, %v848
  %v850 = vand.u32 %v849, 4294901760
  %v851 = vsub.f32 %v849, %v850
  %v852 = vand.u32 %v851, 4294901760
  %853 = vmatmul.mubr.f32.gmra.mxu0 %v852
  %v854 = vpop.f32.mrf.mxu0
  %v855 = vadd.f32 %v753, %v854
  %v856 = vpop.f32.mrf.mxu0
  %857 = vmatprep.mubr.f32.mxu0 0.0
  %v858 = vand.u32 %v761, 4294901760
  %v859 = vsub.f32 %v761, %v858
  %v860 = vand.u32 %v859, 4294901760
  %v861 = vsub.f32 %v859, %v860
  %v862 = vand.u32 %v861, 4294901760
  %863 = vmatmul.mubr.f32.gmra.mxu0 %v862
  %v864 = vpop.f32.mrf.mxu0
  %v865 = vadd.f32 %v753, %v864
  %v866 = vpop.f32.mrf.mxu0
  %867 = vmatprep.mubr.f32.mxu0 0.0
  %v868 = vand.u32 %v764, 4294901760
  %v869 = vsub.f32 %v764, %v868
  %v870 = vand.u32 %v869, 4294901760
  %v871 = vsub.f32 %v869, %v870
  %v872 = vand.u32 %v871, 4294901760
  %873 = vmatmul.mubr.f32.gmra.mxu0 %v872
  %v874 = vpop.f32.mrf.mxu0
  %v875 = vadd.f32 %v753, %v874
  %v876 = vpop.f32.mrf.mxu0
  %877 = vmatprep.mubr.f32.mxu0 0.0
  %v878 = vand.u32 %v767, 4294901760
  %v879 = vsub.f32 %v767, %v878
  %v880 = vand.u32 %v879, 4294901760
  %v881 = vsub.f32 %v879, %v880
  %v882 = vand.u32 %v881, 4294901760
  %883 = vmatmul.mubr.f32.gmra.mxu0 %v882
  %v884 = vpop.f32.mrf.mxu0
  %v885 = vadd.f32 %v753, %v884
  %v886 = vpop.f32.mrf.mxu0
  %887 = vmatprep.mubr.f32.mxu0 0.0
  %v888 = vand.u32 %v770, 4294901760
  %v889 = vsub.f32 %v770, %v888
  %v890 = vand.u32 %v889, 4294901760
  %v891 = vsub.f32 %v889, %v890
  %v892 = vand.u32 %v891, 4294901760
  %893 = vmatmul.mubr.f32.gmra.mxu0 %v892
  %v894 = vpop.f32.mrf.mxu0
  %v895 = vadd.f32 %v753, %v894
  %v896 = vpop.f32.mrf.mxu0
  %897 = vdwg.mxu0
  %898 = vmatprep.subr.mxu0 0.0
  %899 = vmatpush1.msra.mxu0 0.0
  %900 = vmatprep.subr.mxu0 0.0
  %901 = vmatpush1.msra.mxu0 0.0
  %902 = vmatprep.subr.mxu0 0.0
  %903 = vmatpush1.msra.mxu0 0.0
  %904 = vmatprep.subr.mxu0 0.0
  %905 = vmatpush1.msra.mxu0 0.0
  %906 = vmatprep.subr.mxu0 0.0
  %907 = vmatpush1.msra.mxu0 0.0
  %908 = vmatprep.subr.mxu0 0.0
  %909 = vmatpush1.msra.mxu0 0.0
  %910 = vmatprep.subr.mxu0 0.0
  %911 = vmatpush1.msra.mxu0 0.0
  %912 = vmatprep.subr.mxu0 0.0
  %913 = vmatpush1.msra.mxu0 0.0
  %914 = vmatprep.subr.mxu0 0.0
  %915 = vmatpush1.msra.mxu0 0.0
  %916 = vmatprep.subr.mxu0 0.0
  %917 = vmatpush1.msra.mxu0 0.0
  %918 = vmatprep.subr.mxu0 0.0
  %919 = vmatpush1.msra.mxu0 0.0
  %920 = vmatprep.subr.mxu0 0.0
  %921 = vmatpush1.msra.mxu0 0.0
  %922 = vmatprep.subr.mxu0 0.0
  %923 = vmatpush1.msra.mxu0 0.0
  %924 = vmatprep.subr.mxu0 0.0
  %925 = vmatpush1.msra.mxu0 0.0
  %926 = vmatprep.subr.mxu0 0.0
  %927 = vmatpush1.msra.mxu0 0.0
  %928 = vmatprep.subr.mxu0 0.0
  %v929 = vand.u32 %v12, 4294901760
  %v930 = vsub.f32 %v12, %v929
  %v931 = vand.u32 %v930, 4294901760
  %v932 = vsub.f32 %v930, %v931
  %v933 = vand.u32 %v932, 4294901760
  %934 = vmatpush1.msra.mxu0 %v933
  %935 = vmatprep.subr.mxu0 0.0
  %936 = vmatpush2.msra.mxu0 0.0
  %937 = vmatprep.subr.mxu0 0.0
  %938 = vmatpush2.msra.mxu0 0.0
  %939 = vmatprep.subr.mxu0 0.0
  %940 = vmatpush2.msra.mxu0 0.0
  %941 = vmatprep.subr.mxu0 0.0
  %942 = vmatpush2.msra.mxu0 0.0
  %943 = vmatprep.subr.mxu0 0.0
  %944 = vmatpush2.msra.mxu0 0.0
  %945 = vmatprep.subr.mxu0 0.0
  %946 = vmatpush2.msra.mxu0 0.0
  %947 = vmatprep.subr.mxu0 0.0
  %948 = vmatpush2.msra.mxu0 0.0
  %949 = vmatprep.subr.mxu0 0.0
  %950 = vmatpush2.msra.mxu0 0.0
  %951 = vmatprep.subr.mxu0 0.0
  %952 = vmatpush2.msra.mxu0 0.0
  %953 = vmatprep.subr.mxu0 0.0
  %954 = vmatpush2.msra.mxu0 0.0
  %955 = vmatprep.subr.mxu0 0.0
  %956 = vmatpush2.msra.mxu0 0.0
  %957 = vmatprep.subr.mxu0 0.0
  %958 = vmatpush2.msra.mxu0 0.0
  %959 = vmatprep.subr.mxu0 0.0
  %960 = vmatpush2.msra.mxu0 0.0
  %961 = vmatprep.subr.mxu0 0.0
  %962 = vmatpush2.msra.mxu0 0.0
  %963 = vmatprep.subr.mxu0 0.0
  %964 = vmatpush2.msra.mxu0 0.0
  %965 = vmatprep.subr.mxu0 0.0
  %966 = vmatpush2.msra.mxu0 0.0
  %967 = vmatprep.mubr.f32.mxu0 0.0
  %v968 = vand.u32 %v755, 4294901760
  %969 = vmatmul.mubr.f32.gmra.mxu0 %v968
  %v970 = vpop.f32.mrf.mxu0
  %v971 = vadd.f32 %v845, %v970
  %v972 = vpop.f32.mrf.mxu0
  %973 = vmatprep.mubr.f32.mxu0 0.0
  %v974 = vand.u32 %v758, 4294901760
  %975 = vmatmul.mubr.f32.gmra.mxu0 %v974
  %v976 = vpop.f32.mrf.mxu0
  %v977 = vadd.f32 %v855, %v976
  %v978 = vpop.f32.mrf.mxu0
  %979 = vmatprep.mubr.f32.mxu0 0.0
  %v980 = vand.u32 %v761, 4294901760
  %981 = vmatmul.mubr.f32.gmra.mxu0 %v980
  %v982 = vpop.f32.mrf.mxu0
  %v983 = vadd.f32 %v865, %v982
  %v984 = vpop.f32.mrf.mxu0
  %985 = vmatprep.mubr.f32.mxu0 0.0
  %v986 = vand.u32 %v764, 4294901760
  %987 = vmatmul.mubr.f32.gmra.mxu0 %v986
  %v988 = vpop.f32.mrf.mxu0
  %v989 = vadd.f32 %v875, %v988
  %v990 = vpop.f32.mrf.mxu0
  %991 = vmatprep.mubr.f32.mxu0 0.0
  %v992 = vand.u32 %v767, 4294901760
  %993 = vmatmul.mubr.f32.gmra.mxu0 %v992
  %v994 = vpop.f32.mrf.mxu0
  %v995 = vadd.f32 %v885, %v994
  %v996 = vpop.f32.mrf.mxu0
  %997 = vmatprep.mubr.f32.mxu0 0.0
  %v998 = vand.u32 %v770, 4294901760
  %999 = vmatmul.mubr.f32.gmra.mxu0 %v998
  %v1000 = vpop.f32.mrf.mxu0
  %v1001 = vadd.f32 %v895, %v1000
  %v1002 = vpop.f32.mrf.mxu0
  %1003 = vdwg.mxu0
  %1004 = vmatprep.subr.mxu0 0.0
  %1005 = vmatpush1.msra.mxu0 0.0
  %1006 = vmatprep.subr.mxu0 0.0
  %1007 = vmatpush1.msra.mxu0 0.0
  %1008 = vmatprep.subr.mxu0 0.0
  %1009 = vmatpush1.msra.mxu0 0.0
  %1010 = vmatprep.subr.mxu0 0.0
  %1011 = vmatpush1.msra.mxu0 0.0
  %1012 = vmatprep.subr.mxu0 0.0
  %1013 = vmatpush1.msra.mxu0 0.0
  %1014 = vmatprep.subr.mxu0 0.0
  %1015 = vmatpush1.msra.mxu0 0.0
  %1016 = vmatprep.subr.mxu0 0.0
  %1017 = vmatpush1.msra.mxu0 0.0
  %1018 = vmatprep.subr.mxu0 0.0
  %1019 = vmatpush1.msra.mxu0 0.0
  %1020 = vmatprep.subr.mxu0 0.0
  %1021 = vmatpush1.msra.mxu0 0.0
  %1022 = vmatprep.subr.mxu0 0.0
  %1023 = vmatpush1.msra.mxu0 0.0
  %1024 = vmatprep.subr.mxu0 0.0
  %1025 = vmatpush1.msra.mxu0 0.0
  %1026 = vmatprep.subr.mxu0 0.0
  %1027 = vmatpush1.msra.mxu0 0.0
  %1028 = vmatprep.subr.mxu0 0.0
  %1029 = vmatpush1.msra.mxu0 0.0
  %1030 = vmatprep.subr.mxu0 0.0
  %1031 = vmatpush1.msra.mxu0 0.0
  %1032 = vmatprep.subr.mxu0 0.0
  %1033 = vmatpush1.msra.mxu0 0.0
  %1034 = vmatprep.subr.mxu0 0.0
  %v1035 = vand.u32 %v12, 4294901760
  %v1036 = vsub.f32 %v12, %v1035
  %1037 = vmatpush1.msra.mxu0 %v1036
  %1038 = vmatprep.subr.mxu0 0.0
  %1039 = vmatpush2.msra.mxu0 0.0
  %1040 = vmatprep.subr.mxu0 0.0
  %1041 = vmatpush2.msra.mxu0 0.0
  %1042 = vmatprep.subr.mxu0 0.0
  %1043 = vmatpush2.msra.mxu0 0.0
  %1044 = vmatprep.subr.mxu0 0.0
  %1045 = vmatpush2.msra.mxu0 0.0
  %1046 = vmatprep.subr.mxu0 0.0
  %1047 = vmatpush2.msra.mxu0 0.0
  %1048 = vmatprep.subr.mxu0 0.0
  %1049 = vmatpush2.msra.mxu0 0.0
  %1050 = vmatprep.subr.mxu0 0.0
  %1051 = vmatpush2.msra.mxu0 0.0
  %1052 = vmatprep.subr.mxu0 0.0
  %1053 = vmatpush2.msra.mxu0 0.0
  %1054 = vmatprep.subr.mxu0 0.0
  %1055 = vmatpush2.msra.mxu0 0.0
  %1056 = vmatprep.subr.mxu0 0.0
  %1057 = vmatpush2.msra.mxu0 0.0
  %1058 = vmatprep.subr.mxu0 0.0
  %1059 = vmatpush2.msra.mxu0 0.0
  %1060 = vmatprep.subr.mxu0 0.0
  %1061 = vmatpush2.msra.mxu0 0.0
  %1062 = vmatprep.subr.mxu0 0.0
  %1063 = vmatpush2.msra.mxu0 0.0
  %1064 = vmatprep.subr.mxu0 0.0
  %1065 = vmatpush2.msra.mxu0 0.0
  %1066 = vmatprep.subr.mxu0 0.0
  %1067 = vmatpush2.msra.mxu0 0.0
  %1068 = vmatprep.subr.mxu0 0.0
  %1069 = vmatpush2.msra.mxu0 0.0
  %1070 = vmatprep.mubr.f32.mxu0 0.0
  %v1071 = vand.u32 %v755, 4294901760
  %v1072 = vsub.f32 %v755, %v1071
  %1073 = vmatmul.mubr.f32.gmra.mxu0 %v1072
  %v1074 = vpop.f32.mrf.mxu0
  %v1075 = vadd.f32 %v971, %v1074
  %v1076 = vpop.f32.mrf.mxu0
  %1077 = vmatprep.mubr.f32.mxu0 0.0
  %v1078 = vand.u32 %v758, 4294901760
  %v1079 = vsub.f32 %v758, %v1078
  %1080 = vmatmul.mubr.f32.gmra.mxu0 %v1079
  %v1081 = vpop.f32.mrf.mxu0
  %v1082 = vadd.f32 %v977, %v1081
  %v1083 = vpop.f32.mrf.mxu0
  %1084 = vmatprep.mubr.f32.mxu0 0.0
  %v1085 = vand.u32 %v761, 4294901760
  %v1086 = vsub.f32 %v761, %v1085
  %1087 = vmatmul.mubr.f32.gmra.mxu0 %v1086
  %v1088 = vpop.f32.mrf.mxu0
  %v1089 = vadd.f32 %v983, %v1088
  %v1090 = vpop.f32.mrf.mxu0
  %1091 = vmatprep.mubr.f32.mxu0 0.0
  %v1092 = vand.u32 %v764, 4294901760
  %v1093 = vsub.f32 %v764, %v1092
  %1094 = vmatmul.mubr.f32.gmra.mxu0 %v1093
  %v1095 = vpop.f32.mrf.mxu0
  %v1096 = vadd.f32 %v989, %v1095
  %v1097 = vpop.f32.mrf.mxu0
  %1098 = vmatprep.mubr.f32.mxu0 0.0
  %v1099 = vand.u32 %v767, 4294901760
  %v1100 = vsub.f32 %v767, %v1099
  %1101 = vmatmul.mubr.f32.gmra.mxu0 %v1100
  %v1102 = vpop.f32.mrf.mxu0
  %v1103 = vadd.f32 %v995, %v1102
  %v1104 = vpop.f32.mrf.mxu0
  %1105 = vmatprep.mubr.f32.mxu0 0.0
  %v1106 = vand.u32 %v770, 4294901760
  %v1107 = vsub.f32 %v770, %v1106
  %1108 = vmatmul.mubr.f32.gmra.mxu0 %v1107
  %v1109 = vpop.f32.mrf.mxu0
  %v1110 = vadd.f32 %v1001, %v1109
  %v1111 = vpop.f32.mrf.mxu0
  %1112 = vdwg.mxu0
  %1113 = vmatprep.subr.mxu0 0.0
  %1114 = vmatpush1.msra.mxu0 0.0
  %1115 = vmatprep.subr.mxu0 0.0
  %1116 = vmatpush1.msra.mxu0 0.0
  %1117 = vmatprep.subr.mxu0 0.0
  %1118 = vmatpush1.msra.mxu0 0.0
  %1119 = vmatprep.subr.mxu0 0.0
  %1120 = vmatpush1.msra.mxu0 0.0
  %1121 = vmatprep.subr.mxu0 0.0
  %1122 = vmatpush1.msra.mxu0 0.0
  %1123 = vmatprep.subr.mxu0 0.0
  %1124 = vmatpush1.msra.mxu0 0.0
  %1125 = vmatprep.subr.mxu0 0.0
  %1126 = vmatpush1.msra.mxu0 0.0
  %1127 = vmatprep.subr.mxu0 0.0
  %1128 = vmatpush1.msra.mxu0 0.0
  %1129 = vmatprep.subr.mxu0 0.0
  %1130 = vmatpush1.msra.mxu0 0.0
  %1131 = vmatprep.subr.mxu0 0.0
  %1132 = vmatpush1.msra.mxu0 0.0
  %1133 = vmatprep.subr.mxu0 0.0
  %1134 = vmatpush1.msra.mxu0 0.0
  %1135 = vmatprep.subr.mxu0 0.0
  %1136 = vmatpush1.msra.mxu0 0.0
  %1137 = vmatprep.subr.mxu0 0.0
  %1138 = vmatpush1.msra.mxu0 0.0
  %1139 = vmatprep.subr.mxu0 0.0
  %1140 = vmatpush1.msra.mxu0 0.0
  %1141 = vmatprep.subr.mxu0 0.0
  %1142 = vmatpush1.msra.mxu0 0.0
  %1143 = vmatprep.subr.mxu0 0.0
  %v1144 = vand.u32 %v12, 4294901760
  %1145 = vmatpush1.msra.mxu0 %v1144
  %1146 = vmatprep.subr.mxu0 0.0
  %1147 = vmatpush2.msra.mxu0 0.0
  %1148 = vmatprep.subr.mxu0 0.0
  %1149 = vmatpush2.msra.mxu0 0.0
  %1150 = vmatprep.subr.mxu0 0.0
  %1151 = vmatpush2.msra.mxu0 0.0
  %1152 = vmatprep.subr.mxu0 0.0
  %1153 = vmatpush2.msra.mxu0 0.0
  %1154 = vmatprep.subr.mxu0 0.0
  %1155 = vmatpush2.msra.mxu0 0.0
  %1156 = vmatprep.subr.mxu0 0.0
  %1157 = vmatpush2.msra.mxu0 0.0
  %1158 = vmatprep.subr.mxu0 0.0
  %1159 = vmatpush2.msra.mxu0 0.0
  %1160 = vmatprep.subr.mxu0 0.0
  %1161 = vmatpush2.msra.mxu0 0.0
  %1162 = vmatprep.subr.mxu0 0.0
  %1163 = vmatpush2.msra.mxu0 0.0
  %1164 = vmatprep.subr.mxu0 0.0
  %1165 = vmatpush2.msra.mxu0 0.0
  %1166 = vmatprep.subr.mxu0 0.0
  %1167 = vmatpush2.msra.mxu0 0.0
  %1168 = vmatprep.subr.mxu0 0.0
  %1169 = vmatpush2.msra.mxu0 0.0
  %1170 = vmatprep.subr.mxu0 0.0
  %1171 = vmatpush2.msra.mxu0 0.0
  %1172 = vmatprep.subr.mxu0 0.0
  %1173 = vmatpush2.msra.mxu0 0.0
  %1174 = vmatprep.subr.mxu0 0.0
  %1175 = vmatpush2.msra.mxu0 0.0
  %1176 = vmatprep.subr.mxu0 0.0
  %1177 = vmatpush2.msra.mxu0 0.0
  %1178 = vmatprep.mubr.f32.mxu0 0.0
  %v1179 = vand.u32 %v755, 4294901760
  %v1180 = vsub.f32 %v755, %v1179
  %v1181 = vand.u32 %v1180, 4294901760
  %1182 = vmatmul.mubr.f32.gmra.mxu0 %v1181
  %v1183 = vpop.f32.mrf.mxu0
  %v1184 = vadd.f32 %v1075, %v1183
  %v1185 = vpop.f32.mrf.mxu0
  %1186 = vmatprep.mubr.f32.mxu0 0.0
  %v1187 = vand.u32 %v758, 4294901760
  %v1188 = vsub.f32 %v758, %v1187
  %v1189 = vand.u32 %v1188, 4294901760
  %1190 = vmatmul.mubr.f32.gmra.mxu0 %v1189
  %v1191 = vpop.f32.mrf.mxu0
  %v1192 = vadd.f32 %v1082, %v1191
  %v1193 = vpop.f32.mrf.mxu0
  %1194 = vmatprep.mubr.f32.mxu0 0.0
  %v1195 = vand.u32 %v761, 4294901760
  %v1196 = vsub.f32 %v761, %v1195
  %v1197 = vand.u32 %v1196, 4294901760
  %1198 = vmatmul.mubr.f32.gmra.mxu0 %v1197
  %v1199 = vpop.f32.mrf.mxu0
  %v1200 = vadd.f32 %v1089, %v1199
  %v1201 = vpop.f32.mrf.mxu0
  %1202 = vmatprep.mubr.f32.mxu0 0.0
  %v1203 = vand.u32 %v764, 4294901760
  %v1204 = vsub.f32 %v764, %v1203
  %v1205 = vand.u32 %v1204, 4294901760
  %1206 = vmatmul.mubr.f32.gmra.mxu0 %v1205
  %v1207 = vpop.f32.mrf.mxu0
  %v1208 = vadd.f32 %v1096, %v1207
  %v1209 = vpop.f32.mrf.mxu0
  %1210 = vmatprep.mubr.f32.mxu0 0.0
  %v1211 = vand.u32 %v767, 4294901760
  %v1212 = vsub.f32 %v767, %v1211
  %v1213 = vand.u32 %v1212, 4294901760
  %1214 = vmatmul.mubr.f32.gmra.mxu0 %v1213
  %v1215 = vpop.f32.mrf.mxu0
  %v1216 = vadd.f32 %v1103, %v1215
  %v1217 = vpop.f32.mrf.mxu0
  %1218 = vmatprep.mubr.f32.mxu0 0.0
  %v1219 = vand.u32 %v770, 4294901760
  %v1220 = vsub.f32 %v770, %v1219
  %v1221 = vand.u32 %v1220, 4294901760
  %1222 = vmatmul.mubr.f32.gmra.mxu0 %v1221
  %v1223 = vpop.f32.mrf.mxu0
  %v1224 = vadd.f32 %v1110, %v1223
  %v1225 = vpop.f32.mrf.mxu0
  %1226 = vdwg.mxu0
  %1227 = vmatprep.subr.mxu0 0.0
  %1228 = vmatpush1.msra.mxu0 0.0
  %1229 = vmatprep.subr.mxu0 0.0
  %1230 = vmatpush1.msra.mxu0 0.0
  %1231 = vmatprep.subr.mxu0 0.0
  %1232 = vmatpush1.msra.mxu0 0.0
  %1233 = vmatprep.subr.mxu0 0.0
  %1234 = vmatpush1.msra.mxu0 0.0
  %1235 = vmatprep.subr.mxu0 0.0
  %1236 = vmatpush1.msra.mxu0 0.0
  %1237 = vmatprep.subr.mxu0 0.0
  %1238 = vmatpush1.msra.mxu0 0.0
  %1239 = vmatprep.subr.mxu0 0.0
  %1240 = vmatpush1.msra.mxu0 0.0
  %1241 = vmatprep.subr.mxu0 0.0
  %1242 = vmatpush1.msra.mxu0 0.0
  %1243 = vmatprep.subr.mxu0 0.0
  %1244 = vmatpush1.msra.mxu0 0.0
  %1245 = vmatprep.subr.mxu0 0.0
  %1246 = vmatpush1.msra.mxu0 0.0
  %1247 = vmatprep.subr.mxu0 0.0
  %1248 = vmatpush1.msra.mxu0 0.0
  %1249 = vmatprep.subr.mxu0 0.0
  %1250 = vmatpush1.msra.mxu0 0.0
  %1251 = vmatprep.subr.mxu0 0.0
  %1252 = vmatpush1.msra.mxu0 0.0
  %1253 = vmatprep.subr.mxu0 0.0
  %1254 = vmatpush1.msra.mxu0 0.0
  %1255 = vmatprep.subr.mxu0 0.0
  %1256 = vmatpush1.msra.mxu0 0.0
  %1257 = vmatprep.subr.mxu0 0.0
  %v1258 = vand.u32 %v12, 4294901760
  %v1259 = vsub.f32 %v12, %v1258
  %v1260 = vand.u32 %v1259, 4294901760
  %1261 = vmatpush1.msra.mxu0 %v1260
  %1262 = vmatprep.subr.mxu0 0.0
  %1263 = vmatpush2.msra.mxu0 0.0
  %1264 = vmatprep.subr.mxu0 0.0
  %1265 = vmatpush2.msra.mxu0 0.0
  %1266 = vmatprep.subr.mxu0 0.0
  %1267 = vmatpush2.msra.mxu0 0.0
  %1268 = vmatprep.subr.mxu0 0.0
  %1269 = vmatpush2.msra.mxu0 0.0
  %1270 = vmatprep.subr.mxu0 0.0
  %1271 = vmatpush2.msra.mxu0 0.0
  %1272 = vmatprep.subr.mxu0 0.0
  %1273 = vmatpush2.msra.mxu0 0.0
  %1274 = vmatprep.subr.mxu0 0.0
  %1275 = vmatpush2.msra.mxu0 0.0
  %1276 = vmatprep.subr.mxu0 0.0
  %1277 = vmatpush2.msra.mxu0 0.0
  %1278 = vmatprep.subr.mxu0 0.0
  %1279 = vmatpush2.msra.mxu0 0.0
  %1280 = vmatprep.subr.mxu0 0.0
  %1281 = vmatpush2.msra.mxu0 0.0
  %1282 = vmatprep.subr.mxu0 0.0
  %1283 = vmatpush2.msra.mxu0 0.0
  %1284 = vmatprep.subr.mxu0 0.0
  %1285 = vmatpush2.msra.mxu0 0.0
  %1286 = vmatprep.subr.mxu0 0.0
  %1287 = vmatpush2.msra.mxu0 0.0
  %1288 = vmatprep.subr.mxu0 0.0
  %1289 = vmatpush2.msra.mxu0 0.0
  %1290 = vmatprep.subr.mxu0 0.0
  %1291 = vmatpush2.msra.mxu0 0.0
  %1292 = vmatprep.subr.mxu0 0.0
  %1293 = vmatpush2.msra.mxu0 0.0
  %1294 = vmatprep.mubr.f32.mxu0 0.0
  %v1295 = vand.u32 %v755, 4294901760
  %1296 = vmatmul.mubr.f32.gmra.mxu0 %v1295
  %v1297 = vpop.f32.mrf.mxu0
  %v1298 = vadd.f32 %v1184, %v1297
  %v1299 = vpop.f32.mrf.mxu0
  %1300 = vmatprep.mubr.f32.mxu0 0.0
  %v1301 = vand.u32 %v758, 4294901760
  %1302 = vmatmul.mubr.f32.gmra.mxu0 %v1301
  %v1303 = vpop.f32.mrf.mxu0
  %v1304 = vadd.f32 %v1192, %v1303
  %v1305 = vpop.f32.mrf.mxu0
  %1306 = vmatprep.mubr.f32.mxu0 0.0
  %v1307 = vand.u32 %v761, 4294901760
  %1308 = vmatmul.mubr.f32.gmra.mxu0 %v1307
  %v1309 = vpop.f32.mrf.mxu0
  %v1310 = vadd.f32 %v1200, %v1309
  %v1311 = vpop.f32.mrf.mxu0
  %1312 = vmatprep.mubr.f32.mxu0 0.0
  %v1313 = vand.u32 %v764, 4294901760
  %1314 = vmatmul.mubr.f32.gmra.mxu0 %v1313
  %v1315 = vpop.f32.mrf.mxu0
  %v1316 = vadd.f32 %v1208, %v1315
  %v1317 = vpop.f32.mrf.mxu0
  %1318 = vmatprep.mubr.f32.mxu0 0.0
  %v1319 = vand.u32 %v767, 4294901760
  %1320 = vmatmul.mubr.f32.gmra.mxu0 %v1319
  %v1321 = vpop.f32.mrf.mxu0
  %v1322 = vadd.f32 %v1216, %v1321
  %v1323 = vpop.f32.mrf.mxu0
  %1324 = vmatprep.mubr.f32.mxu0 0.0
  %v1325 = vand.u32 %v770, 4294901760
  %1326 = vmatmul.mubr.f32.gmra.mxu0 %v1325
  %v1327 = vpop.f32.mrf.mxu0
  %v1328 = vadd.f32 %v1224, %v1327
  %v1329 = vpop.f32.mrf.mxu0
  %1330 = vdwg.mxu0
  %1331 = vmatprep.subr.mxu0 0.0
  %1332 = vmatpush1.msra.mxu0 0.0
  %1333 = vmatprep.subr.mxu0 0.0
  %1334 = vmatpush1.msra.mxu0 0.0
  %1335 = vmatprep.subr.mxu0 0.0
  %1336 = vmatpush1.msra.mxu0 0.0
  %1337 = vmatprep.subr.mxu0 0.0
  %1338 = vmatpush1.msra.mxu0 0.0
  %1339 = vmatprep.subr.mxu0 0.0
  %1340 = vmatpush1.msra.mxu0 0.0
  %1341 = vmatprep.subr.mxu0 0.0
  %1342 = vmatpush1.msra.mxu0 0.0
  %1343 = vmatprep.subr.mxu0 0.0
  %1344 = vmatpush1.msra.mxu0 0.0
  %1345 = vmatprep.subr.mxu0 0.0
  %1346 = vmatpush1.msra.mxu0 0.0
  %1347 = vmatprep.subr.mxu0 0.0
  %1348 = vmatpush1.msra.mxu0 0.0
  %1349 = vmatprep.subr.mxu0 0.0
  %1350 = vmatpush1.msra.mxu0 0.0
  %1351 = vmatprep.subr.mxu0 0.0
  %1352 = vmatpush1.msra.mxu0 0.0
  %1353 = vmatprep.subr.mxu0 0.0
  %1354 = vmatpush1.msra.mxu0 0.0
  %1355 = vmatprep.subr.mxu0 0.0
  %1356 = vmatpush1.msra.mxu0 0.0
  %1357 = vmatprep.subr.mxu0 0.0
  %1358 = vmatpush1.msra.mxu0 0.0
  %1359 = vmatprep.subr.mxu0 0.0
  %1360 = vmatpush1.msra.mxu0 0.0
  %1361 = vmatprep.subr.mxu0 0.0
  %v1362 = vand.u32 %v12, 4294901760
  %1363 = vmatpush1.msra.mxu0 %v1362
  %1364 = vmatprep.subr.mxu0 0.0
  %1365 = vmatpush2.msra.mxu0 0.0
  %1366 = vmatprep.subr.mxu0 0.0
  %1367 = vmatpush2.msra.mxu0 0.0
  %1368 = vmatprep.subr.mxu0 0.0
  %1369 = vmatpush2.msra.mxu0 0.0
  %1370 = vmatprep.subr.mxu0 0.0
  %1371 = vmatpush2.msra.mxu0 0.0
  %1372 = vmatprep.subr.mxu0 0.0
  %1373 = vmatpush2.msra.mxu0 0.0
  %1374 = vmatprep.subr.mxu0 0.0
  %1375 = vmatpush2.msra.mxu0 0.0
  %1376 = vmatprep.subr.mxu0 0.0
  %1377 = vmatpush2.msra.mxu0 0.0
  %1378 = vmatprep.subr.mxu0 0.0
  %1379 = vmatpush2.msra.mxu0 0.0
  %1380 = vmatprep.subr.mxu0 0.0
  %1381 = vmatpush2.msra.mxu0 0.0
  %1382 = vmatprep.subr.mxu0 0.0
  %1383 = vmatpush2.msra.mxu0 0.0
  %1384 = vmatprep.subr.mxu0 0.0
  %1385 = vmatpush2.msra.mxu0 0.0
  %1386 = vmatprep.subr.mxu0 0.0
  %1387 = vmatpush2.msra.mxu0 0.0
  %1388 = vmatprep.subr.mxu0 0.0
  %1389 = vmatpush2.msra.mxu0 0.0
  %1390 = vmatprep.subr.mxu0 0.0
  %1391 = vmatpush2.msra.mxu0 0.0
  %1392 = vmatprep.subr.mxu0 0.0
  %1393 = vmatpush2.msra.mxu0 0.0
  %1394 = vmatprep.subr.mxu0 0.0
  %1395 = vmatpush2.msra.mxu0 0.0
  %1396 = vmatprep.mubr.f32.mxu0 0.0
  %v1397 = vand.u32 %v755, 4294901760
  %1398 = vmatmul.mubr.f32.gmra.mxu0 %v1397
  %v1399 = vpop.f32.mrf.mxu0
  %v1400 = vadd.f32 %v1298, %v1399
  %v1401 = vpop.f32.mrf.mxu0
  %1402 = vmatprep.mubr.f32.mxu0 0.0
  %v1403 = vand.u32 %v758, 4294901760
  %1404 = vmatmul.mubr.f32.gmra.mxu0 %v1403
  %v1405 = vpop.f32.mrf.mxu0
  %v1406 = vadd.f32 %v1304, %v1405
  %v1407 = vpop.f32.mrf.mxu0
  %1408 = vmatprep.mubr.f32.mxu0 0.0
  %v1409 = vand.u32 %v761, 4294901760
  %1410 = vmatmul.mubr.f32.gmra.mxu0 %v1409
  %v1411 = vpop.f32.mrf.mxu0
  %v1412 = vadd.f32 %v1310, %v1411
  %v1413 = vpop.f32.mrf.mxu0
  %1414 = vmatprep.mubr.f32.mxu0 0.0
  %v1415 = vand.u32 %v764, 4294901760
  %1416 = vmatmul.mubr.f32.gmra.mxu0 %v1415
  %v1417 = vpop.f32.mrf.mxu0
  %v1418 = vadd.f32 %v1316, %v1417
  %v1419 = vpop.f32.mrf.mxu0
  %1420 = vmatprep.mubr.f32.mxu0 0.0
  %v1421 = vand.u32 %v767, 4294901760
  %1422 = vmatmul.mubr.f32.gmra.mxu0 %v1421
  %v1423 = vpop.f32.mrf.mxu0
  %v1424 = vadd.f32 %v1322, %v1423
  %v1425 = vpop.f32.mrf.mxu0
  %1426 = vmatprep.mubr.f32.mxu0 0.0
  %v1427 = vand.u32 %v770, 4294901760
  %1428 = vmatmul.mubr.f32.gmra.mxu0 %v1427
  %v1429 = vpop.f32.mrf.mxu0
  %v1430 = vadd.f32 %v1328, %v1429
  %v1431 = vpop.f32.mrf.mxu0
  %1432 = vdwg.mxu0
  %v1433 = vld [vmem:[%s0 + $0x50] sm:$0xff]
  %v1434 = vld [vmem:[%s0 + $0x58] sm:$0xff]
  %v1435 = vld [vmem:[%s0 + $0x60] sm:$0xff]
  %v1436 = vld [vmem:[%s0 + $0x68] sm:$0xff]
  %v1437 = vld [vmem:[%s0 + $0x70] sm:$0xff]
  %v1438 = vld [vmem:[%s0 + $0x78] sm:$0xff]
  %v1439 = vmul.f32 %v1433, %v727
  %v1440 = vmul.f32 %v1434, %v729
  %v1441 = vmul.f32 %v1435, %v731
  %v1442 = vmul.f32 %v1436, %v733
  %v1443 = vmul.f32 %v1437, %v735
  %v1444 = vmul.f32 %v1438, %v737
  %v1445 = vlaneseq
  %v1446 = vshrl.u32 %v1445, 7
  %v1447 = vsub.s32 0, %v1446
  %v1448 = vrot.slane %v15, %v1447
  %v1450 = vsel %vm22, %v1439, 0
  %v1453 = vsel %vm22, %v1440, 0
  %v1456 = vsel %vm22, %v1441, 0
  %v1459 = vsel %vm22, %v1442, 0
  %v1462 = vsel %vm22, %v1443, 0
  %v1465 = vsel %vm22, %v1444, 0
  %1467 = vmatprep.subr.mxu0 0.0
  %1468 = vmatpush1.msra.mxu0 0.0
  %1469 = vmatprep.subr.mxu0 0.0
  %1470 = vmatpush1.msra.mxu0 0.0
  %1471 = vmatprep.subr.mxu0 0.0
  %1472 = vmatpush1.msra.mxu0 0.0
  %1473 = vmatprep.subr.mxu0 0.0
  %1474 = vmatpush1.msra.mxu0 0.0
  %1475 = vmatprep.subr.mxu0 0.0
  %1476 = vmatpush1.msra.mxu0 0.0
  %1477 = vmatprep.subr.mxu0 0.0
  %1478 = vmatpush1.msra.mxu0 0.0
  %1479 = vmatprep.subr.mxu0 0.0
  %1480 = vmatpush1.msra.mxu0 0.0
  %1481 = vmatprep.subr.mxu0 0.0
  %1482 = vmatpush1.msra.mxu0 0.0
  %1483 = vmatprep.subr.mxu0 0.0
  %1484 = vmatpush1.msra.mxu0 0.0
  %1485 = vmatprep.subr.mxu0 0.0
  %1486 = vmatpush1.msra.mxu0 0.0
  %1487 = vmatprep.subr.mxu0 0.0
  %1488 = vmatpush1.msra.mxu0 0.0
  %1489 = vmatprep.subr.mxu0 0.0
  %1490 = vmatpush1.msra.mxu0 0.0
  %1491 = vmatprep.subr.mxu0 0.0
  %1492 = vmatpush1.msra.mxu0 0.0
  %1493 = vmatprep.subr.mxu0 0.0
  %1494 = vmatpush1.msra.mxu0 0.0
  %1495 = vmatprep.subr.mxu0 0.0
  %1496 = vmatpush1.msra.mxu0 0.0
  %1497 = vmatprep.subr.mxu0 0.0
  %v1498 = vand.u32 %v14, 4294901760
  %1499 = vmatpush1.msra.mxu0 %v1498
  %1500 = vmatprep.subr.mxu0 0.0
  %1501 = vmatpush2.msra.mxu0 0.0
  %1502 = vmatprep.subr.mxu0 0.0
  %1503 = vmatpush2.msra.mxu0 0.0
  %1504 = vmatprep.subr.mxu0 0.0
  %1505 = vmatpush2.msra.mxu0 0.0
  %1506 = vmatprep.subr.mxu0 0.0
  %1507 = vmatpush2.msra.mxu0 0.0
  %1508 = vmatprep.subr.mxu0 0.0
  %1509 = vmatpush2.msra.mxu0 0.0
  %1510 = vmatprep.subr.mxu0 0.0
  %1511 = vmatpush2.msra.mxu0 0.0
  %1512 = vmatprep.subr.mxu0 0.0
  %1513 = vmatpush2.msra.mxu0 0.0
  %1514 = vmatprep.subr.mxu0 0.0
  %1515 = vmatpush2.msra.mxu0 0.0
  %1516 = vmatprep.subr.mxu0 0.0
  %1517 = vmatpush2.msra.mxu0 0.0
  %1518 = vmatprep.subr.mxu0 0.0
  %1519 = vmatpush2.msra.mxu0 0.0
  %1520 = vmatprep.subr.mxu0 0.0
  %1521 = vmatpush2.msra.mxu0 0.0
  %1522 = vmatprep.subr.mxu0 0.0
  %1523 = vmatpush2.msra.mxu0 0.0
  %1524 = vmatprep.subr.mxu0 0.0
  %1525 = vmatpush2.msra.mxu0 0.0
  %1526 = vmatprep.subr.mxu0 0.0
  %1527 = vmatpush2.msra.mxu0 0.0
  %1528 = vmatprep.subr.mxu0 0.0
  %1529 = vmatpush2.msra.mxu0 0.0
  %1530 = vmatprep.subr.mxu0 0.0
  %1531 = vmatpush2.msra.mxu0 0.0
  %1532 = vmatprep.mubr.f32.mxu0 0.0
  %v1533 = vand.u32 %v1450, 4294901760
  %v1534 = vsub.f32 %v1450, %v1533
  %v1535 = vand.u32 %v1534, 4294901760
  %v1536 = vsub.f32 %v1534, %v1535
  %v1537 = vand.u32 %v1536, 4294901760
  %1538 = vmatmul.mubr.f32.gmra.mxu0 %v1537
  %v1539 = vpop.f32.mrf.mxu0
  %v1540 = vadd.f32 %v1448, %v1539
  %v1541 = vpop.f32.mrf.mxu0
  %1542 = vmatprep.mubr.f32.mxu0 0.0
  %v1543 = vand.u32 %v1453, 4294901760
  %v1544 = vsub.f32 %v1453, %v1543
  %v1545 = vand.u32 %v1544, 4294901760
  %v1546 = vsub.f32 %v1544, %v1545
  %v1547 = vand.u32 %v1546, 4294901760
  %1548 = vmatmul.mubr.f32.gmra.mxu0 %v1547
  %v1549 = vpop.f32.mrf.mxu0
  %v1550 = vadd.f32 %v1448, %v1549
  %v1551 = vpop.f32.mrf.mxu0
  %1552 = vmatprep.mubr.f32.mxu0 0.0
  %v1553 = vand.u32 %v1456, 4294901760
  %v1554 = vsub.f32 %v1456, %v1553
  %v1555 = vand.u32 %v1554, 4294901760
  %v1556 = vsub.f32 %v1554, %v1555
  %v1557 = vand.u32 %v1556, 4294901760
  %1558 = vmatmul.mubr.f32.gmra.mxu0 %v1557
  %v1559 = vpop.f32.mrf.mxu0
  %v1560 = vadd.f32 %v1448, %v1559
  %v1561 = vpop.f32.mrf.mxu0
  %1562 = vmatprep.mubr.f32.mxu0 0.0
  %v1563 = vand.u32 %v1459, 4294901760
  %v1564 = vsub.f32 %v1459, %v1563
  %v1565 = vand.u32 %v1564, 4294901760
  %v1566 = vsub.f32 %v1564, %v1565
  %v1567 = vand.u32 %v1566, 4294901760
  %1568 = vmatmul.mubr.f32.gmra.mxu0 %v1567
  %v1569 = vpop.f32.mrf.mxu0
  %v1570 = vadd.f32 %v1448, %v1569
  %v1571 = vpop.f32.mrf.mxu0
  %1572 = vmatprep.mubr.f32.mxu0 0.0
  %v1573 = vand.u32 %v1462, 4294901760
  %v1574 = vsub.f32 %v1462, %v1573
  %v1575 = vand.u32 %v1574, 4294901760
  %v1576 = vsub.f32 %v1574, %v1575
  %v1577 = vand.u32 %v1576, 4294901760
  %1578 = vmatmul.mubr.f32.gmra.mxu0 %v1577
  %v1579 = vpop.f32.mrf.mxu0
  %v1580 = vadd.f32 %v1448, %v1579
  %v1581 = vpop.f32.mrf.mxu0
  %1582 = vmatprep.mubr.f32.mxu0 0.0
  %v1583 = vand.u32 %v1465, 4294901760
  %v1584 = vsub.f32 %v1465, %v1583
  %v1585 = vand.u32 %v1584, 4294901760
  %v1586 = vsub.f32 %v1584, %v1585
  %v1587 = vand.u32 %v1586, 4294901760
  %1588 = vmatmul.mubr.f32.gmra.mxu0 %v1587
  %v1589 = vpop.f32.mrf.mxu0
  %v1590 = vadd.f32 %v1448, %v1589
  %v1591 = vpop.f32.mrf.mxu0
  %1592 = vdwg.mxu0
  %1593 = vmatprep.subr.mxu0 0.0
  %1594 = vmatpush1.msra.mxu0 0.0
  %1595 = vmatprep.subr.mxu0 0.0
  %1596 = vmatpush1.msra.mxu0 0.0
  %1597 = vmatprep.subr.mxu0 0.0
  %1598 = vmatpush1.msra.mxu0 0.0
  %1599 = vmatprep.subr.mxu0 0.0
  %1600 = vmatpush1.msra.mxu0 0.0
  %1601 = vmatprep.subr.mxu0 0.0
  %1602 = vmatpush1.msra.mxu0 0.0
  %1603 = vmatprep.subr.mxu0 0.0
  %1604 = vmatpush1.msra.mxu0 0.0
  %1605 = vmatprep.subr.mxu0 0.0
  %1606 = vmatpush1.msra.mxu0 0.0
  %1607 = vmatprep.subr.mxu0 0.0
  %1608 = vmatpush1.msra.mxu0 0.0
  %1609 = vmatprep.subr.mxu0 0.0
  %1610 = vmatpush1.msra.mxu0 0.0
  %1611 = vmatprep.subr.mxu0 0.0
  %1612 = vmatpush1.msra.mxu0 0.0
  %1613 = vmatprep.subr.mxu0 0.0
  %1614 = vmatpush1.msra.mxu0 0.0
  %1615 = vmatprep.subr.mxu0 0.0
  %1616 = vmatpush1.msra.mxu0 0.0
  %1617 = vmatprep.subr.mxu0 0.0
  %1618 = vmatpush1.msra.mxu0 0.0
  %1619 = vmatprep.subr.mxu0 0.0
  %1620 = vmatpush1.msra.mxu0 0.0
  %1621 = vmatprep.subr.mxu0 0.0
  %1622 = vmatpush1.msra.mxu0 0.0
  %1623 = vmatprep.subr.mxu0 0.0
  %v1624 = vand.u32 %v14, 4294901760
  %v1625 = vsub.f32 %v14, %v1624
  %v1626 = vand.u32 %v1625, 4294901760
  %v1627 = vsub.f32 %v1625, %v1626
  %v1628 = vand.u32 %v1627, 4294901760
  %1629 = vmatpush1.msra.mxu0 %v1628
  %1630 = vmatprep.subr.mxu0 0.0
  %1631 = vmatpush2.msra.mxu0 0.0
  %1632 = vmatprep.subr.mxu0 0.0
  %1633 = vmatpush2.msra.mxu0 0.0
  %1634 = vmatprep.subr.mxu0 0.0
  %1635 = vmatpush2.msra.mxu0 0.0
  %1636 = vmatprep.subr.mxu0 0.0
  %1637 = vmatpush2.msra.mxu0 0.0
  %1638 = vmatprep.subr.mxu0 0.0
  %1639 = vmatpush2.msra.mxu0 0.0
  %1640 = vmatprep.subr.mxu0 0.0
  %1641 = vmatpush2.msra.mxu0 0.0
  %1642 = vmatprep.subr.mxu0 0.0
  %1643 = vmatpush2.msra.mxu0 0.0
  %1644 = vmatprep.subr.mxu0 0.0
  %1645 = vmatpush2.msra.mxu0 0.0
  %1646 = vmatprep.subr.mxu0 0.0
  %1647 = vmatpush2.msra.mxu0 0.0
  %1648 = vmatprep.subr.mxu0 0.0
  %1649 = vmatpush2.msra.mxu0 0.0
  %1650 = vmatprep.subr.mxu0 0.0
  %1651 = vmatpush2.msra.mxu0 0.0
  %1652 = vmatprep.subr.mxu0 0.0
  %1653 = vmatpush2.msra.mxu0 0.0
  %1654 = vmatprep.subr.mxu0 0.0
  %1655 = vmatpush2.msra.mxu0 0.0
  %1656 = vmatprep.subr.mxu0 0.0
  %1657 = vmatpush2.msra.mxu0 0.0
  %1658 = vmatprep.subr.mxu0 0.0
  %1659 = vmatpush2.msra.mxu0 0.0
  %1660 = vmatprep.subr.mxu0 0.0
  %1661 = vmatpush2.msra.mxu0 0.0
  %1662 = vmatprep.mubr.f32.mxu0 0.0
  %v1663 = vand.u32 %v1450, 4294901760
  %1664 = vmatmul.mubr.f32.gmra.mxu0 %v1663
  %v1665 = vpop.f32.mrf.mxu0
  %v1666 = vadd.f32 %v1540, %v1665
  %v1667 = vpop.f32.mrf.mxu0
  %1668 = vmatprep.mubr.f32.mxu0 0.0
  %v1669 = vand.u32 %v1453, 4294901760
  %1670 = vmatmul.mubr.f32.gmra.mxu0 %v1669
  %v1671 = vpop.f32.mrf.mxu0
  %v1672 = vadd.f32 %v1550, %v1671
  %v1673 = vpop.f32.mrf.mxu0
  %1674 = vmatprep.mubr.f32.mxu0 0.0
  %v1675 = vand.u32 %v1456, 4294901760
  %1676 = vmatmul.mubr.f32.gmra.mxu0 %v1675
  %v1677 = vpop.f32.mrf.mxu0
  %v1678 = vadd.f32 %v1560, %v1677
  %v1679 = vpop.f32.mrf.mxu0
  %1680 = vmatprep.mubr.f32.mxu0 0.0
  %v1681 = vand.u32 %v1459, 4294901760
  %1682 = vmatmul.mubr.f32.gmra.mxu0 %v1681
  %v1683 = vpop.f32.mrf.mxu0
  %v1684 = vadd.f32 %v1570, %v1683
  %v1685 = vpop.f32.mrf.mxu0
  %1686 = vmatprep.mubr.f32.mxu0 0.0
  %v1687 = vand.u32 %v1462, 4294901760
  %1688 = vmatmul.mubr.f32.gmra.mxu0 %v1687
  %v1689 = vpop.f32.mrf.mxu0
  %v1690 = vadd.f32 %v1580, %v1689
  %v1691 = vpop.f32.mrf.mxu0
  %1692 = vmatprep.mubr.f32.mxu0 0.0
  %v1693 = vand.u32 %v1465, 4294901760
  %1694 = vmatmul.mubr.f32.gmra.mxu0 %v1693
  %v1695 = vpop.f32.mrf.mxu0
  %v1696 = vadd.f32 %v1590, %v1695
  %v1697 = vpop.f32.mrf.mxu0
  %1698 = vdwg.mxu0
  %1699 = vmatprep.subr.mxu0 0.0
  %1700 = vmatpush1.msra.mxu0 0.0
  %1701 = vmatprep.subr.mxu0 0.0
  %1702 = vmatpush1.msra.mxu0 0.0
  %1703 = vmatprep.subr.mxu0 0.0
  %1704 = vmatpush1.msra.mxu0 0.0
  %1705 = vmatprep.subr.mxu0 0.0
  %1706 = vmatpush1.msra.mxu0 0.0
  %1707 = vmatprep.subr.mxu0 0.0
  %1708 = vmatpush1.msra.mxu0 0.0
  %1709 = vmatprep.subr.mxu0 0.0
  %1710 = vmatpush1.msra.mxu0 0.0
  %1711 = vmatprep.subr.mxu0 0.0
  %1712 = vmatpush1.msra.mxu0 0.0
  %1713 = vmatprep.subr.mxu0 0.0
  %1714 = vmatpush1.msra.mxu0 0.0
  %1715 = vmatprep.subr.mxu0 0.0
  %1716 = vmatpush1.msra.mxu0 0.0
  %1717 = vmatprep.subr.mxu0 0.0
  %1718 = vmatpush1.msra.mxu0 0.0
  %1719 = vmatprep.subr.mxu0 0.0
  %1720 = vmatpush1.msra.mxu0 0.0
  %1721 = vmatprep.subr.mxu0 0.0
  %1722 = vmatpush1.msra.mxu0 0.0
  %1723 = vmatprep.subr.mxu0 0.0
  %1724 = vmatpush1.msra.mxu0 0.0
  %1725 = vmatprep.subr.mxu0 0.0
  %1726 = vmatpush1.msra.mxu0 0.0
  %1727 = vmatprep.subr.mxu0 0.0
  %1728 = vmatpush1.msra.mxu0 0.0
  %1729 = vmatprep.subr.mxu0 0.0
  %v1730 = vand.u32 %v14, 4294901760
  %v1731 = vsub.f32 %v14, %v1730
  %1732 = vmatpush1.msra.mxu0 %v1731
  %1733 = vmatprep.subr.mxu0 0.0
  %1734 = vmatpush2.msra.mxu0 0.0
  %1735 = vmatprep.subr.mxu0 0.0
  %1736 = vmatpush2.msra.mxu0 0.0
  %1737 = vmatprep.subr.mxu0 0.0
  %1738 = vmatpush2.msra.mxu0 0.0
  %1739 = vmatprep.subr.mxu0 0.0
  %1740 = vmatpush2.msra.mxu0 0.0
  %1741 = vmatprep.subr.mxu0 0.0
  %1742 = vmatpush2.msra.mxu0 0.0
  %1743 = vmatprep.subr.mxu0 0.0
  %1744 = vmatpush2.msra.mxu0 0.0
  %1745 = vmatprep.subr.mxu0 0.0
  %1746 = vmatpush2.msra.mxu0 0.0
  %1747 = vmatprep.subr.mxu0 0.0
  %1748 = vmatpush2.msra.mxu0 0.0
  %1749 = vmatprep.subr.mxu0 0.0
  %1750 = vmatpush2.msra.mxu0 0.0
  %1751 = vmatprep.subr.mxu0 0.0
  %1752 = vmatpush2.msra.mxu0 0.0
  %1753 = vmatprep.subr.mxu0 0.0
  %1754 = vmatpush2.msra.mxu0 0.0
  %1755 = vmatprep.subr.mxu0 0.0
  %1756 = vmatpush2.msra.mxu0 0.0
  %1757 = vmatprep.subr.mxu0 0.0
  %1758 = vmatpush2.msra.mxu0 0.0
  %1759 = vmatprep.subr.mxu0 0.0
  %1760 = vmatpush2.msra.mxu0 0.0
  %1761 = vmatprep.subr.mxu0 0.0
  %1762 = vmatpush2.msra.mxu0 0.0
  %1763 = vmatprep.subr.mxu0 0.0
  %1764 = vmatpush2.msra.mxu0 0.0
  %1765 = vmatprep.mubr.f32.mxu0 0.0
  %v1766 = vand.u32 %v1450, 4294901760
  %v1767 = vsub.f32 %v1450, %v1766
  %1768 = vmatmul.mubr.f32.gmra.mxu0 %v1767
  %v1769 = vpop.f32.mrf.mxu0
  %v1770 = vadd.f32 %v1666, %v1769
  %v1771 = vpop.f32.mrf.mxu0
  %1772 = vmatprep.mubr.f32.mxu0 0.0
  %v1773 = vand.u32 %v1453, 4294901760
  %v1774 = vsub.f32 %v1453, %v1773
  %1775 = vmatmul.mubr.f32.gmra.mxu0 %v1774
  %v1776 = vpop.f32.mrf.mxu0
  %v1777 = vadd.f32 %v1672, %v1776
  %v1778 = vpop.f32.mrf.mxu0
  %1779 = vmatprep.mubr.f32.mxu0 0.0
  %v1780 = vand.u32 %v1456, 4294901760
  %v1781 = vsub.f32 %v1456, %v1780
  %1782 = vmatmul.mubr.f32.gmra.mxu0 %v1781
  %v1783 = vpop.f32.mrf.mxu0
  %v1784 = vadd.f32 %v1678, %v1783
  %v1785 = vpop.f32.mrf.mxu0
  %1786 = vmatprep.mubr.f32.mxu0 0.0
  %v1787 = vand.u32 %v1459, 4294901760
  %v1788 = vsub.f32 %v1459, %v1787
  %1789 = vmatmul.mubr.f32.gmra.mxu0 %v1788
  %v1790 = vpop.f32.mrf.mxu0
  %v1791 = vadd.f32 %v1684, %v1790
  %v1792 = vpop.f32.mrf.mxu0
  %1793 = vmatprep.mubr.f32.mxu0 0.0
  %v1794 = vand.u32 %v1462, 4294901760
  %v1795 = vsub.f32 %v1462, %v1794
  %1796 = vmatmul.mubr.f32.gmra.mxu0 %v1795
  %v1797 = vpop.f32.mrf.mxu0
  %v1798 = vadd.f32 %v1690, %v1797
  %v1799 = vpop.f32.mrf.mxu0
  %1800 = vmatprep.mubr.f32.mxu0 0.0
  %v1801 = vand.u32 %v1465, 4294901760
  %v1802 = vsub.f32 %v1465, %v1801
  %1803 = vmatmul.mubr.f32.gmra.mxu0 %v1802
  %v1804 = vpop.f32.mrf.mxu0
  %v1805 = vadd.f32 %v1696, %v1804
  %v1806 = vpop.f32.mrf.mxu0
  %1807 = vdwg.mxu0
  %1808 = vmatprep.subr.mxu0 0.0
  %1809 = vmatpush1.msra.mxu0 0.0
  %1810 = vmatprep.subr.mxu0 0.0
  %1811 = vmatpush1.msra.mxu0 0.0
  %1812 = vmatprep.subr.mxu0 0.0
  %1813 = vmatpush1.msra.mxu0 0.0
  %1814 = vmatprep.subr.mxu0 0.0
  %1815 = vmatpush1.msra.mxu0 0.0
  %1816 = vmatprep.subr.mxu0 0.0
  %1817 = vmatpush1.msra.mxu0 0.0
  %1818 = vmatprep.subr.mxu0 0.0
  %1819 = vmatpush1.msra.mxu0 0.0
  %1820 = vmatprep.subr.mxu0 0.0
  %1821 = vmatpush1.msra.mxu0 0.0
  %1822 = vmatprep.subr.mxu0 0.0
  %1823 = vmatpush1.msra.mxu0 0.0
  %1824 = vmatprep.subr.mxu0 0.0
  %1825 = vmatpush1.msra.mxu0 0.0
  %1826 = vmatprep.subr.mxu0 0.0
  %1827 = vmatpush1.msra.mxu0 0.0
  %1828 = vmatprep.subr.mxu0 0.0
  %1829 = vmatpush1.msra.mxu0 0.0
  %1830 = vmatprep.subr.mxu0 0.0
  %1831 = vmatpush1.msra.mxu0 0.0
  %1832 = vmatprep.subr.mxu0 0.0
  %1833 = vmatpush1.msra.mxu0 0.0
  %1834 = vmatprep.subr.mxu0 0.0
  %1835 = vmatpush1.msra.mxu0 0.0
  %1836 = vmatprep.subr.mxu0 0.0
  %1837 = vmatpush1.msra.mxu0 0.0
  %1838 = vmatprep.subr.mxu0 0.0
  %v1839 = vand.u32 %v14, 4294901760
  %1840 = vmatpush1.msra.mxu0 %v1839
  %1841 = vmatprep.subr.mxu0 0.0
  %1842 = vmatpush2.msra.mxu0 0.0
  %1843 = vmatprep.subr.mxu0 0.0
  %1844 = vmatpush2.msra.mxu0 0.0
  %1845 = vmatprep.subr.mxu0 0.0
  %1846 = vmatpush2.msra.mxu0 0.0
  %1847 = vmatprep.subr.mxu0 0.0
  %1848 = vmatpush2.msra.mxu0 0.0
  %1849 = vmatprep.subr.mxu0 0.0
  %1850 = vmatpush2.msra.mxu0 0.0
  %1851 = vmatprep.subr.mxu0 0.0
  %1852 = vmatpush2.msra.mxu0 0.0
  %1853 = vmatprep.subr.mxu0 0.0
  %1854 = vmatpush2.msra.mxu0 0.0
  %1855 = vmatprep.subr.mxu0 0.0
  %1856 = vmatpush2.msra.mxu0 0.0
  %1857 = vmatprep.subr.mxu0 0.0
  %1858 = vmatpush2.msra.mxu0 0.0
  %1859 = vmatprep.subr.mxu0 0.0
  %1860 = vmatpush2.msra.mxu0 0.0
  %1861 = vmatprep.subr.mxu0 0.0
  %1862 = vmatpush2.msra.mxu0 0.0
  %1863 = vmatprep.subr.mxu0 0.0
  %1864 = vmatpush2.msra.mxu0 0.0
  %1865 = vmatprep.subr.mxu0 0.0
  %1866 = vmatpush2.msra.mxu0 0.0
  %1867 = vmatprep.subr.mxu0 0.0
  %1868 = vmatpush2.msra.mxu0 0.0
  %1869 = vmatprep.subr.mxu0 0.0
  %1870 = vmatpush2.msra.mxu0 0.0
  %1871 = vmatprep.subr.mxu0 0.0
  %1872 = vmatpush2.msra.mxu0 0.0
  %1873 = vmatprep.mubr.f32.mxu0 0.0
  %v1874 = vand.u32 %v1450, 4294901760
  %v1875 = vsub.f32 %v1450, %v1874
  %v1876 = vand.u32 %v1875, 4294901760
  %1877 = vmatmul.mubr.f32.gmra.mxu0 %v1876
  %v1878 = vpop.f32.mrf.mxu0
  %v1879 = vadd.f32 %v1770, %v1878
  %v1880 = vpop.f32.mrf.mxu0
  %1881 = vmatprep.mubr.f32.mxu0 0.0
  %v1882 = vand.u32 %v1453, 4294901760
  %v1883 = vsub.f32 %v1453, %v1882
  %v1884 = vand.u32 %v1883, 4294901760
  %1885 = vmatmul.mubr.f32.gmra.mxu0 %v1884
  %v1886 = vpop.f32.mrf.mxu0
  %v1887 = vadd.f32 %v1777, %v1886
  %v1888 = vpop.f32.mrf.mxu0
  %1889 = vmatprep.mubr.f32.mxu0 0.0
  %v1890 = vand.u32 %v1456, 4294901760
  %v1891 = vsub.f32 %v1456, %v1890
  %v1892 = vand.u32 %v1891, 4294901760
  %1893 = vmatmul.mubr.f32.gmra.mxu0 %v1892
  %v1894 = vpop.f32.mrf.mxu0
  %v1895 = vadd.f32 %v1784, %v1894
  %v1896 = vpop.f32.mrf.mxu0
  %1897 = vmatprep.mubr.f32.mxu0 0.0
  %v1898 = vand.u32 %v1459, 4294901760
  %v1899 = vsub.f32 %v1459, %v1898
  %v1900 = vand.u32 %v1899, 4294901760
  %1901 = vmatmul.mubr.f32.gmra.mxu0 %v1900
  %v1902 = vpop.f32.mrf.mxu0
  %v1903 = vadd.f32 %v1791, %v1902
  %v1904 = vpop.f32.mrf.mxu0
  %1905 = vmatprep.mubr.f32.mxu0 0.0
  %v1906 = vand.u32 %v1462, 4294901760
  %v1907 = vsub.f32 %v1462, %v1906
  %v1908 = vand.u32 %v1907, 4294901760
  %1909 = vmatmul.mubr.f32.gmra.mxu0 %v1908
  %v1910 = vpop.f32.mrf.mxu0
  %v1911 = vadd.f32 %v1798, %v1910
  %v1912 = vpop.f32.mrf.mxu0
  %1913 = vmatprep.mubr.f32.mxu0 0.0
  %v1914 = vand.u32 %v1465, 4294901760
  %v1915 = vsub.f32 %v1465, %v1914
  %v1916 = vand.u32 %v1915, 4294901760
  %1917 = vmatmul.mubr.f32.gmra.mxu0 %v1916
  %v1918 = vpop.f32.mrf.mxu0
  %v1919 = vadd.f32 %v1805, %v1918
  %v1920 = vpop.f32.mrf.mxu0
  %1921 = vdwg.mxu0
  %1922 = vmatprep.subr.mxu0 0.0
  %1923 = vmatpush1.msra.mxu0 0.0
  %1924 = vmatprep.subr.mxu0 0.0
  %1925 = vmatpush1.msra.mxu0 0.0
  %1926 = vmatprep.subr.mxu0 0.0
  %1927 = vmatpush1.msra.mxu0 0.0
  %1928 = vmatprep.subr.mxu0 0.0
  %1929 = vmatpush1.msra.mxu0 0.0
  %1930 = vmatprep.subr.mxu0 0.0
  %1931 = vmatpush1.msra.mxu0 0.0
  %1932 = vmatprep.subr.mxu0 0.0
  %1933 = vmatpush1.msra.mxu0 0.0
  %1934 = vmatprep.subr.mxu0 0.0
  %1935 = vmatpush1.msra.mxu0 0.0
  %1936 = vmatprep.subr.mxu0 0.0
  %1937 = vmatpush1.msra.mxu0 0.0
  %1938 = vmatprep.subr.mxu0 0.0
  %1939 = vmatpush1.msra.mxu0 0.0
  %1940 = vmatprep.subr.mxu0 0.0
  %1941 = vmatpush1.msra.mxu0 0.0
  %1942 = vmatprep.subr.mxu0 0.0
  %1943 = vmatpush1.msra.mxu0 0.0
  %1944 = vmatprep.subr.mxu0 0.0
  %1945 = vmatpush1.msra.mxu0 0.0
  %1946 = vmatprep.subr.mxu0 0.0
  %1947 = vmatpush1.msra.mxu0 0.0
  %1948 = vmatprep.subr.mxu0 0.0
  %1949 = vmatpush1.msra.mxu0 0.0
  %1950 = vmatprep.subr.mxu0 0.0
  %1951 = vmatpush1.msra.mxu0 0.0
  %1952 = vmatprep.subr.mxu0 0.0
  %v1953 = vand.u32 %v14, 4294901760
  %v1954 = vsub.f32 %v14, %v1953
  %v1955 = vand.u32 %v1954, 4294901760
  %1956 = vmatpush1.msra.mxu0 %v1955
  %1957 = vmatprep.subr.mxu0 0.0
  %1958 = vmatpush2.msra.mxu0 0.0
  %1959 = vmatprep.subr.mxu0 0.0
  %1960 = vmatpush2.msra.mxu0 0.0
  %1961 = vmatprep.subr.mxu0 0.0
  %1962 = vmatpush2.msra.mxu0 0.0
  %1963 = vmatprep.subr.mxu0 0.0
  %1964 = vmatpush2.msra.mxu0 0.0
  %1965 = vmatprep.subr.mxu0 0.0
  %1966 = vmatpush2.msra.mxu0 0.0
  %1967 = vmatprep.subr.mxu0 0.0
  %1968 = vmatpush2.msra.mxu0 0.0
  %1969 = vmatprep.subr.mxu0 0.0
  %1970 = vmatpush2.msra.mxu0 0.0
  %1971 = vmatprep.subr.mxu0 0.0
  %1972 = vmatpush2.msra.mxu0 0.0
  %1973 = vmatprep.subr.mxu0 0.0
  %1974 = vmatpush2.msra.mxu0 0.0
  %1975 = vmatprep.subr.mxu0 0.0
  %1976 = vmatpush2.msra.mxu0 0.0
  %1977 = vmatprep.subr.mxu0 0.0
  %1978 = vmatpush2.msra.mxu0 0.0
  %1979 = vmatprep.subr.mxu0 0.0
  %1980 = vmatpush2.msra.mxu0 0.0
  %1981 = vmatprep.subr.mxu0 0.0
  %1982 = vmatpush2.msra.mxu0 0.0
  %1983 = vmatprep.subr.mxu0 0.0
  %1984 = vmatpush2.msra.mxu0 0.0
  %1985 = vmatprep.subr.mxu0 0.0
  %1986 = vmatpush2.msra.mxu0 0.0
  %1987 = vmatprep.subr.mxu0 0.0
  %1988 = vmatpush2.msra.mxu0 0.0
  %1989 = vmatprep.mubr.f32.mxu0 0.0
  %v1990 = vand.u32 %v1450, 4294901760
  %1991 = vmatmul.mubr.f32.gmra.mxu0 %v1990
  %v1992 = vpop.f32.mrf.mxu0
  %v1993 = vadd.f32 %v1879, %v1992
  %v1994 = vpop.f32.mrf.mxu0
  %1995 = vmatprep.mubr.f32.mxu0 0.0
  %v1996 = vand.u32 %v1453, 4294901760
  %1997 = vmatmul.mubr.f32.gmra.mxu0 %v1996
  %v1998 = vpop.f32.mrf.mxu0
  %v1999 = vadd.f32 %v1887, %v1998
  %v2000 = vpop.f32.mrf.mxu0
  %2001 = vmatprep.mubr.f32.mxu0 0.0
  %v2002 = vand.u32 %v1456, 4294901760
  %2003 = vmatmul.mubr.f32.gmra.mxu0 %v2002
  %v2004 = vpop.f32.mrf.mxu0
  %v2005 = vadd.f32 %v1895, %v2004
  %v2006 = vpop.f32.mrf.mxu0
  %2007 = vmatprep.mubr.f32.mxu0 0.0
  %v2008 = vand.u32 %v1459, 4294901760
  %2009 = vmatmul.mubr.f32.gmra.mxu0 %v2008
  %v2010 = vpop.f32.mrf.mxu0
  %v2011 = vadd.f32 %v1903, %v2010
  %v2012 = vpop.f32.mrf.mxu0
  %2013 = vmatprep.mubr.f32.mxu0 0.0
  %v2014 = vand.u32 %v1462, 4294901760
  %2015 = vmatmul.mubr.f32.gmra.mxu0 %v2014
  %v2016 = vpop.f32.mrf.mxu0
  %v2017 = vadd.f32 %v1911, %v2016
  %v2018 = vpop.f32.mrf.mxu0
  %2019 = vmatprep.mubr.f32.mxu0 0.0
  %v2020 = vand.u32 %v1465, 4294901760
  %2021 = vmatmul.mubr.f32.gmra.mxu0 %v2020
  %v2022 = vpop.f32.mrf.mxu0
  %v2023 = vadd.f32 %v1919, %v2022
  %v2024 = vpop.f32.mrf.mxu0
  %2025 = vdwg.mxu0
  %2026 = vmatprep.subr.mxu0 0.0
  %2027 = vmatpush1.msra.mxu0 0.0
  %2028 = vmatprep.subr.mxu0 0.0
  %2029 = vmatpush1.msra.mxu0 0.0
  %2030 = vmatprep.subr.mxu0 0.0
  %2031 = vmatpush1.msra.mxu0 0.0
  %2032 = vmatprep.subr.mxu0 0.0
  %2033 = vmatpush1.msra.mxu0 0.0
  %2034 = vmatprep.subr.mxu0 0.0
  %2035 = vmatpush1.msra.mxu0 0.0
  %2036 = vmatprep.subr.mxu0 0.0
  %2037 = vmatpush1.msra.mxu0 0.0
  %2038 = vmatprep.subr.mxu0 0.0
  %2039 = vmatpush1.msra.mxu0 0.0
  %2040 = vmatprep.subr.mxu0 0.0
  %2041 = vmatpush1.msra.mxu0 0.0
  %2042 = vmatprep.subr.mxu0 0.0
  %2043 = vmatpush1.msra.mxu0 0.0
  %2044 = vmatprep.subr.mxu0 0.0
  %2045 = vmatpush1.msra.mxu0 0.0
  %2046 = vmatprep.subr.mxu0 0.0
  %2047 = vmatpush1.msra.mxu0 0.0
  %2048 = vmatprep.subr.mxu0 0.0
  %2049 = vmatpush1.msra.mxu0 0.0
  %2050 = vmatprep.subr.mxu0 0.0
  %2051 = vmatpush1.msra.mxu0 0.0
  %2052 = vmatprep.subr.mxu0 0.0
  %2053 = vmatpush1.msra.mxu0 0.0
  %2054 = vmatprep.subr.mxu0 0.0
  %2055 = vmatpush1.msra.mxu0 0.0
  %2056 = vmatprep.subr.mxu0 0.0
  %v2057 = vand.u32 %v14, 4294901760
  %2058 = vmatpush1.msra.mxu0 %v2057
  %2059 = vmatprep.subr.mxu0 0.0
  %2060 = vmatpush2.msra.mxu0 0.0
  %2061 = vmatprep.subr.mxu0 0.0
  %2062 = vmatpush2.msra.mxu0 0.0
  %2063 = vmatprep.subr.mxu0 0.0
  %2064 = vmatpush2.msra.mxu0 0.0
  %2065 = vmatprep.subr.mxu0 0.0
  %2066 = vmatpush2.msra.mxu0 0.0
  %2067 = vmatprep.subr.mxu0 0.0
  %2068 = vmatpush2.msra.mxu0 0.0
  %2069 = vmatprep.subr.mxu0 0.0
  %2070 = vmatpush2.msra.mxu0 0.0
  %2071 = vmatprep.subr.mxu0 0.0
  %2072 = vmatpush2.msra.mxu0 0.0
  %2073 = vmatprep.subr.mxu0 0.0
  %2074 = vmatpush2.msra.mxu0 0.0
  %2075 = vmatprep.subr.mxu0 0.0
  %2076 = vmatpush2.msra.mxu0 0.0
  %2077 = vmatprep.subr.mxu0 0.0
  %2078 = vmatpush2.msra.mxu0 0.0
  %2079 = vmatprep.subr.mxu0 0.0
  %2080 = vmatpush2.msra.mxu0 0.0
  %2081 = vmatprep.subr.mxu0 0.0
  %2082 = vmatpush2.msra.mxu0 0.0
  %2083 = vmatprep.subr.mxu0 0.0
  %2084 = vmatpush2.msra.mxu0 0.0
  %2085 = vmatprep.subr.mxu0 0.0
  %2086 = vmatpush2.msra.mxu0 0.0
  %2087 = vmatprep.subr.mxu0 0.0
  %2088 = vmatpush2.msra.mxu0 0.0
  %2089 = vmatprep.subr.mxu0 0.0
  %2090 = vmatpush2.msra.mxu0 0.0
  %2091 = vmatprep.mubr.f32.mxu0 0.0
  %v2092 = vand.u32 %v1450, 4294901760
  %2093 = vmatmul.mubr.f32.gmra.mxu0 %v2092
  %v2094 = vpop.f32.mrf.mxu0
  %v2095 = vadd.f32 %v1993, %v2094
  %v2096 = vpop.f32.mrf.mxu0
  %2097 = vmatprep.mubr.f32.mxu0 0.0
  %v2098 = vand.u32 %v1453, 4294901760
  %2099 = vmatmul.mubr.f32.gmra.mxu0 %v2098
  %v2100 = vpop.f32.mrf.mxu0
  %v2101 = vadd.f32 %v1999, %v2100
  %v2102 = vpop.f32.mrf.mxu0
  %2103 = vmatprep.mubr.f32.mxu0 0.0
  %v2104 = vand.u32 %v1456, 4294901760
  %2105 = vmatmul.mubr.f32.gmra.mxu0 %v2104
  %v2106 = vpop.f32.mrf.mxu0
  %v2107 = vadd.f32 %v2005, %v2106
  %v2108 = vpop.f32.mrf.mxu0
  %2109 = vmatprep.mubr.f32.mxu0 0.0
  %v2110 = vand.u32 %v1459, 4294901760
  %2111 = vmatmul.mubr.f32.gmra.mxu0 %v2110
  %v2112 = vpop.f32.mrf.mxu0
  %v2113 = vadd.f32 %v2011, %v2112
  %v2114 = vpop.f32.mrf.mxu0
  %2115 = vmatprep.mubr.f32.mxu0 0.0
  %v2116 = vand.u32 %v1462, 4294901760
  %2117 = vmatmul.mubr.f32.gmra.mxu0 %v2116
  %v2118 = vpop.f32.mrf.mxu0
  %v2119 = vadd.f32 %v2017, %v2118
  %v2120 = vpop.f32.mrf.mxu0
  %2121 = vmatprep.mubr.f32.mxu0 0.0
  %v2122 = vand.u32 %v1465, 4294901760
  %2123 = vmatmul.mubr.f32.gmra.mxu0 %v2122
  %v2124 = vpop.f32.mrf.mxu0
  %v2125 = vadd.f32 %v2023, %v2124
  %v2126 = vpop.f32.mrf.mxu0
  %2127 = vdwg.mxu0
  %vm2128 = vcmask 261120
  %v2130 = vsel %vm2128, %v645, 0
  %v2133 = vsel %vm2128, %v651, 0
  %v2136 = vsel %vm2128, %v657, 0
  %v2139 = vsel %vm2128, %v663, 0
  %v2142 = vsel %vm2128, %v1400, 0
  %v2145 = vsel %vm2128, %v1406, 0
  %v2148 = vsel %vm2128, %v1412, 0
  %v2151 = vsel %vm2128, %v1418, 0
  %v2154 = vsel %vm2128, %v1424, 0
  %v2157 = vsel %vm2128, %v1430, 0
  %v2160 = vsel %vm2128, %v13, 0
  %2162 = vmatprep.subr.mxu0 0.0
  %2163 = vmatpush1.xpose.msra.mxu0 0.0
  %2164 = vmatprep.subr.mxu0 0.0
  %2165 = vmatpush1.xpose.msra.mxu0 0.0
  %2166 = vmatprep.subr.mxu0 0.0
  %2167 = vmatpush1.xpose.msra.mxu0 0.0
  %2168 = vmatprep.subr.mxu0 0.0
  %2169 = vmatpush1.xpose.msra.mxu0 0.0
  %2170 = vmatprep.subr.mxu0 0.0
  %2171 = vmatpush1.xpose.msra.mxu0 0.0
  %2172 = vmatprep.subr.mxu0 0.0
  %2173 = vmatpush1.xpose.msra.mxu0 0.0
  %2174 = vmatprep.subr.mxu0 0.0
  %2175 = vmatpush1.xpose.msra.mxu0 0.0
  %2176 = vmatprep.subr.mxu0 0.0
  %2177 = vmatpush1.xpose.msra.mxu0 0.0
  %2178 = vmatprep.subr.mxu0 0.0
  %2179 = vmatpush1.xpose.msra.mxu0 0.0
  %2180 = vmatprep.subr.mxu0 0.0
  %v2181 = vand.u32 %v2160, 4294901760
  %2182 = vmatpush1.xpose.msra.mxu0 %v2181
  %2183 = vmatprep.subr.mxu0 0.0
  %v2184 = vand.u32 %v2157, 4294901760
  %2185 = vmatpush1.xpose.msra.mxu0 %v2184
  %2186 = vmatprep.subr.mxu0 0.0
  %v2187 = vand.u32 %v2154, 4294901760
  %2188 = vmatpush1.xpose.msra.mxu0 %v2187
  %2189 = vmatprep.subr.mxu0 0.0
  %v2190 = vand.u32 %v2151, 4294901760
  %2191 = vmatpush1.xpose.msra.mxu0 %v2190
  %2192 = vmatprep.subr.mxu0 0.0
  %v2193 = vand.u32 %v2148, 4294901760
  %2194 = vmatpush1.xpose.msra.mxu0 %v2193
  %2195 = vmatprep.subr.mxu0 0.0
  %v2196 = vand.u32 %v2145, 4294901760
  %2197 = vmatpush1.xpose.msra.mxu0 %v2196
  %2198 = vmatprep.subr.mxu0 0.0
  %v2199 = vand.u32 %v2142, 4294901760
  %2200 = vmatpush1.xpose.msra.mxu0 %v2199
  %2201 = vmatprep.subr.mxu0 0.0
  %2202 = vmatpush2.xpose.msra.mxu0 0.0
  %2203 = vmatprep.subr.mxu0 0.0
  %2204 = vmatpush2.xpose.msra.mxu0 0.0
  %2205 = vmatprep.subr.mxu0 0.0
  %2206 = vmatpush2.xpose.msra.mxu0 0.0
  %2207 = vmatprep.subr.mxu0 0.0
  %2208 = vmatpush2.xpose.msra.mxu0 0.0
  %2209 = vmatprep.subr.mxu0 0.0
  %2210 = vmatpush2.xpose.msra.mxu0 0.0
  %2211 = vmatprep.subr.mxu0 0.0
  %2212 = vmatpush2.xpose.msra.mxu0 0.0
  %2213 = vmatprep.subr.mxu0 0.0
  %2214 = vmatpush2.xpose.msra.mxu0 0.0
  %2215 = vmatprep.subr.mxu0 0.0
  %2216 = vmatpush2.xpose.msra.mxu0 0.0
  %2217 = vmatprep.subr.mxu0 0.0
  %2218 = vmatpush2.xpose.msra.mxu0 0.0
  %2219 = vmatprep.subr.mxu0 0.0
  %2220 = vmatpush2.xpose.msra.mxu0 0.0
  %2221 = vmatprep.subr.mxu0 0.0
  %2222 = vmatpush2.xpose.msra.mxu0 0.0
  %2223 = vmatprep.subr.mxu0 0.0
  %2224 = vmatpush2.xpose.msra.mxu0 0.0
  %2225 = vmatprep.subr.mxu0 0.0
  %2226 = vmatpush2.xpose.msra.mxu0 0.0
  %2227 = vmatprep.subr.mxu0 0.0
  %2228 = vmatpush2.xpose.msra.mxu0 0.0
  %2229 = vmatprep.subr.mxu0 0.0
  %2230 = vmatpush2.xpose.msra.mxu0 0.0
  %2231 = vmatprep.subr.mxu0 0.0
  %2232 = vmatpush2.xpose.msra.mxu0 0.0
  %2233 = vmatprep.mubr.f32.mxu0 0.0
  %v2234 = vand.u32 %v2130, 4294901760
  %v2235 = vsub.f32 %v2130, %v2234
  %v2236 = vand.u32 %v2235, 4294901760
  %v2237 = vsub.f32 %v2235, %v2236
  %v2238 = vand.u32 %v2237, 4294901760
  %2239 = vmatmul.mubr.f32.gmra.mxu0 %v2238
  %v2240 = vpop.f32.mrf.mxu0
  %v2241 = vadd.f32 0.0, %v2240
  %v2242 = vpop.f32.mrf.mxu0
  %2243 = vmatprep.mubr.f32.mxu0 0.0
  %v2244 = vand.u32 %v2133, 4294901760
  %v2245 = vsub.f32 %v2133, %v2244
  %v2246 = vand.u32 %v2245, 4294901760
  %v2247 = vsub.f32 %v2245, %v2246
  %v2248 = vand.u32 %v2247, 4294901760
  %2249 = vmatmul.mubr.f32.gmra.mxu0 %v2248
  %v2250 = vpop.f32.mrf.mxu0
  %v2251 = vadd.f32 0.0, %v2250
  %v2252 = vpop.f32.mrf.mxu0
  %2253 = vmatprep.mubr.f32.mxu0 0.0
  %v2254 = vand.u32 %v2136, 4294901760
  %v2255 = vsub.f32 %v2136, %v2254
  %v2256 = vand.u32 %v2255, 4294901760
  %v2257 = vsub.f32 %v2255, %v2256
  %v2258 = vand.u32 %v2257, 4294901760
  %2259 = vmatmul.mubr.f32.gmra.mxu0 %v2258
  %v2260 = vpop.f32.mrf.mxu0
  %v2261 = vadd.f32 0.0, %v2260
  %v2262 = vpop.f32.mrf.mxu0
  %2263 = vmatprep.mubr.f32.mxu0 0.0
  %v2264 = vand.u32 %v2139, 4294901760
  %v2265 = vsub.f32 %v2139, %v2264
  %v2266 = vand.u32 %v2265, 4294901760
  %v2267 = vsub.f32 %v2265, %v2266
  %v2268 = vand.u32 %v2267, 4294901760
  %2269 = vmatmul.mubr.f32.gmra.mxu0 %v2268
  %v2270 = vpop.f32.mrf.mxu0
  %v2271 = vadd.f32 0.0, %v2270
  %v2272 = vpop.f32.mrf.mxu0
  %2273 = vdwg.mxu0
  %2274 = vmatprep.subr.mxu0 0.0
  %2275 = vmatpush1.xpose.msra.mxu0 0.0
  %2276 = vmatprep.subr.mxu0 0.0
  %2277 = vmatpush1.xpose.msra.mxu0 0.0
  %2278 = vmatprep.subr.mxu0 0.0
  %2279 = vmatpush1.xpose.msra.mxu0 0.0
  %2280 = vmatprep.subr.mxu0 0.0
  %2281 = vmatpush1.xpose.msra.mxu0 0.0
  %2282 = vmatprep.subr.mxu0 0.0
  %2283 = vmatpush1.xpose.msra.mxu0 0.0
  %2284 = vmatprep.subr.mxu0 0.0
  %2285 = vmatpush1.xpose.msra.mxu0 0.0
  %2286 = vmatprep.subr.mxu0 0.0
  %2287 = vmatpush1.xpose.msra.mxu0 0.0
  %2288 = vmatprep.subr.mxu0 0.0
  %2289 = vmatpush1.xpose.msra.mxu0 0.0
  %2290 = vmatprep.subr.mxu0 0.0
  %2291 = vmatpush1.xpose.msra.mxu0 0.0
  %2292 = vmatprep.subr.mxu0 0.0
  %v2293 = vand.u32 %v2160, 4294901760
  %v2294 = vsub.f32 %v2160, %v2293
  %v2295 = vand.u32 %v2294, 4294901760
  %v2296 = vsub.f32 %v2294, %v2295
  %v2297 = vand.u32 %v2296, 4294901760
  %2298 = vmatpush1.xpose.msra.mxu0 %v2297
  %2299 = vmatprep.subr.mxu0 0.0
  %v2300 = vand.u32 %v2157, 4294901760
  %v2301 = vsub.f32 %v2157, %v2300
  %v2302 = vand.u32 %v2301, 4294901760
  %v2303 = vsub.f32 %v2301, %v2302
  %v2304 = vand.u32 %v2303, 4294901760
  %2305 = vmatpush1.xpose.msra.mxu0 %v2304
  %2306 = vmatprep.subr.mxu0 0.0
  %v2307 = vand.u32 %v2154, 4294901760
  %v2308 = vsub.f32 %v2154, %v2307
  %v2309 = vand.u32 %v2308, 4294901760
  %v2310 = vsub.f32 %v2308, %v2309
  %v2311 = vand.u32 %v2310, 4294901760
  %2312 = vmatpush1.xpose.msra.mxu0 %v2311
  %2313 = vmatprep.subr.mxu0 0.0
  %v2314 = vand.u32 %v2151, 4294901760
  %v2315 = vsub.f32 %v2151, %v2314
  %v2316 = vand.u32 %v2315, 4294901760
  %v2317 = vsub.f32 %v2315, %v2316
  %v2318 = vand.u32 %v2317, 4294901760
  %2319 = vmatpush1.xpose.msra.mxu0 %v2318
  %2320 = vmatprep.subr.mxu0 0.0
  %v2321 = vand.u32 %v2148, 4294901760
  %v2322 = vsub.f32 %v2148, %v2321
  %v2323 = vand.u32 %v2322, 4294901760
  %v2324 = vsub.f32 %v2322, %v2323
  %v2325 = vand.u32 %v2324, 4294901760
  %2326 = vmatpush1.xpose.msra.mxu0 %v2325
  %2327 = vmatprep.subr.mxu0 0.0
  %v2328 = vand.u32 %v2145, 4294901760
  %v2329 = vsub.f32 %v2145, %v2328
  %v2330 = vand.u32 %v2329, 4294901760
  %v2331 = vsub.f32 %v2329, %v2330
  %v2332 = vand.u32 %v2331, 4294901760
  %2333 = vmatpush1.xpose.msra.mxu0 %v2332
  %2334 = vmatprep.subr.mxu0 0.0
  %v2335 = vand.u32 %v2142, 4294901760
  %v2336 = vsub.f32 %v2142, %v2335
  %v2337 = vand.u32 %v2336, 4294901760
  %v2338 = vsub.f32 %v2336, %v2337
  %v2339 = vand.u32 %v2338, 4294901760
  %2340 = vmatpush1.xpose.msra.mxu0 %v2339
  %2341 = vmatprep.subr.mxu0 0.0
  %2342 = vmatpush2.xpose.msra.mxu0 0.0
  %2343 = vmatprep.subr.mxu0 0.0
  %2344 = vmatpush2.xpose.msra.mxu0 0.0
  %2345 = vmatprep.subr.mxu0 0.0
  %2346 = vmatpush2.xpose.msra.mxu0 0.0
  %2347 = vmatprep.subr.mxu0 0.0
  %2348 = vmatpush2.xpose.msra.mxu0 0.0
  %2349 = vmatprep.subr.mxu0 0.0
  %2350 = vmatpush2.xpose.msra.mxu0 0.0
  %2351 = vmatprep.subr.mxu0 0.0
  %2352 = vmatpush2.xpose.msra.mxu0 0.0
  %2353 = vmatprep.subr.mxu0 0.0
  %2354 = vmatpush2.xpose.msra.mxu0 0.0
  %2355 = vmatprep.subr.mxu0 0.0
  %2356 = vmatpush2.xpose.msra.mxu0 0.0
  %2357 = vmatprep.subr.mxu0 0.0
  %2358 = vmatpush2.xpose.msra.mxu0 0.0
  %2359 = vmatprep.subr.mxu0 0.0
  %2360 = vmatpush2.xpose.msra.mxu0 0.0
  %2361 = vmatprep.subr.mxu0 0.0
  %2362 = vmatpush2.xpose.msra.mxu0 0.0
  %2363 = vmatprep.subr.mxu0 0.0
  %2364 = vmatpush2.xpose.msra.mxu0 0.0
  %2365 = vmatprep.subr.mxu0 0.0
  %2366 = vmatpush2.xpose.msra.mxu0 0.0
  %2367 = vmatprep.subr.mxu0 0.0
  %2368 = vmatpush2.xpose.msra.mxu0 0.0
  %2369 = vmatprep.subr.mxu0 0.0
  %2370 = vmatpush2.xpose.msra.mxu0 0.0
  %2371 = vmatprep.subr.mxu0 0.0
  %2372 = vmatpush2.xpose.msra.mxu0 0.0
  %2373 = vmatprep.mubr.f32.mxu0 0.0
  %v2374 = vand.u32 %v2130, 4294901760
  %2375 = vmatmul.mubr.f32.gmra.mxu0 %v2374
  %v2376 = vpop.f32.mrf.mxu0
  %v2377 = vadd.f32 %v2241, %v2376
  %v2378 = vpop.f32.mrf.mxu0
  %2379 = vmatprep.mubr.f32.mxu0 0.0
  %v2380 = vand.u32 %v2133, 4294901760
  %2381 = vmatmul.mubr.f32.gmra.mxu0 %v2380
  %v2382 = vpop.f32.mrf.mxu0
  %v2383 = vadd.f32 %v2251, %v2382
  %v2384 = vpop.f32.mrf.mxu0
  %2385 = vmatprep.mubr.f32.mxu0 0.0
  %v2386 = vand.u32 %v2136, 4294901760
  %2387 = vmatmul.mubr.f32.gmra.mxu0 %v2386
  %v2388 = vpop.f32.mrf.mxu0
  %v2389 = vadd.f32 %v2261, %v2388
  %v2390 = vpop.f32.mrf.mxu0
  %2391 = vmatprep.mubr.f32.mxu0 0.0
  %v2392 = vand.u32 %v2139, 4294901760
  %2393 = vmatmul.mubr.f32.gmra.mxu0 %v2392
  %v2394 = vpop.f32.mrf.mxu0
  %v2395 = vadd.f32 %v2271, %v2394
  %v2396 = vpop.f32.mrf.mxu0
  %2397 = vdwg.mxu0
  %2398 = vmatprep.subr.mxu0 0.0
  %2399 = vmatpush1.xpose.msra.mxu0 0.0
  %2400 = vmatprep.subr.mxu0 0.0
  %2401 = vmatpush1.xpose.msra.mxu0 0.0
  %2402 = vmatprep.subr.mxu0 0.0
  %2403 = vmatpush1.xpose.msra.mxu0 0.0
  %2404 = vmatprep.subr.mxu0 0.0
  %2405 = vmatpush1.xpose.msra.mxu0 0.0
  %2406 = vmatprep.subr.mxu0 0.0
  %2407 = vmatpush1.xpose.msra.mxu0 0.0
  %2408 = vmatprep.subr.mxu0 0.0
  %2409 = vmatpush1.xpose.msra.mxu0 0.0
  %2410 = vmatprep.subr.mxu0 0.0
  %2411 = vmatpush1.xpose.msra.mxu0 0.0
  %2412 = vmatprep.subr.mxu0 0.0
  %2413 = vmatpush1.xpose.msra.mxu0 0.0
  %2414 = vmatprep.subr.mxu0 0.0
  %2415 = vmatpush1.xpose.msra.mxu0 0.0
  %2416 = vmatprep.subr.mxu0 0.0
  %v2417 = vand.u32 %v2160, 4294901760
  %v2418 = vsub.f32 %v2160, %v2417
  %2419 = vmatpush1.xpose.msra.mxu0 %v2418
  %2420 = vmatprep.subr.mxu0 0.0
  %v2421 = vand.u32 %v2157, 4294901760
  %v2422 = vsub.f32 %v2157, %v2421
  %2423 = vmatpush1.xpose.msra.mxu0 %v2422
  %2424 = vmatprep.subr.mxu0 0.0
  %v2425 = vand.u32 %v2154, 4294901760
  %v2426 = vsub.f32 %v2154, %v2425
  %2427 = vmatpush1.xpose.msra.mxu0 %v2426
  %2428 = vmatprep.subr.mxu0 0.0
  %v2429 = vand.u32 %v2151, 4294901760
  %v2430 = vsub.f32 %v2151, %v2429
  %2431 = vmatpush1.xpose.msra.mxu0 %v2430
  %2432 = vmatprep.subr.mxu0 0.0
  %v2433 = vand.u32 %v2148, 4294901760
  %v2434 = vsub.f32 %v2148, %v2433
  %2435 = vmatpush1.xpose.msra.mxu0 %v2434
  %2436 = vmatprep.subr.mxu0 0.0
  %v2437 = vand.u32 %v2145, 4294901760
  %v2438 = vsub.f32 %v2145, %v2437
  %2439 = vmatpush1.xpose.msra.mxu0 %v2438
  %2440 = vmatprep.subr.mxu0 0.0
  %v2441 = vand.u32 %v2142, 4294901760
  %v2442 = vsub.f32 %v2142, %v2441
  %2443 = vmatpush1.xpose.msra.mxu0 %v2442
  %2444 = vmatprep.subr.mxu0 0.0
  %2445 = vmatpush2.xpose.msra.mxu0 0.0
  %2446 = vmatprep.subr.mxu0 0.0
  %2447 = vmatpush2.xpose.msra.mxu0 0.0
  %2448 = vmatprep.subr.mxu0 0.0
  %2449 = vmatpush2.xpose.msra.mxu0 0.0
  %2450 = vmatprep.subr.mxu0 0.0
  %2451 = vmatpush2.xpose.msra.mxu0 0.0
  %2452 = vmatprep.subr.mxu0 0.0
  %2453 = vmatpush2.xpose.msra.mxu0 0.0
  %2454 = vmatprep.subr.mxu0 0.0
  %2455 = vmatpush2.xpose.msra.mxu0 0.0
  %2456 = vmatprep.subr.mxu0 0.0
  %2457 = vmatpush2.xpose.msra.mxu0 0.0
  %2458 = vmatprep.subr.mxu0 0.0
  %2459 = vmatpush2.xpose.msra.mxu0 0.0
  %2460 = vmatprep.subr.mxu0 0.0
  %2461 = vmatpush2.xpose.msra.mxu0 0.0
  %2462 = vmatprep.subr.mxu0 0.0
  %2463 = vmatpush2.xpose.msra.mxu0 0.0
  %2464 = vmatprep.subr.mxu0 0.0
  %2465 = vmatpush2.xpose.msra.mxu0 0.0
  %2466 = vmatprep.subr.mxu0 0.0
  %2467 = vmatpush2.xpose.msra.mxu0 0.0
  %2468 = vmatprep.subr.mxu0 0.0
  %2469 = vmatpush2.xpose.msra.mxu0 0.0
  %2470 = vmatprep.subr.mxu0 0.0
  %2471 = vmatpush2.xpose.msra.mxu0 0.0
  %2472 = vmatprep.subr.mxu0 0.0
  %2473 = vmatpush2.xpose.msra.mxu0 0.0
  %2474 = vmatprep.subr.mxu0 0.0
  %2475 = vmatpush2.xpose.msra.mxu0 0.0
  %2476 = vmatprep.mubr.f32.mxu0 0.0
  %v2477 = vand.u32 %v2130, 4294901760
  %v2478 = vsub.f32 %v2130, %v2477
  %2479 = vmatmul.mubr.f32.gmra.mxu0 %v2478
  %v2480 = vpop.f32.mrf.mxu0
  %v2481 = vadd.f32 %v2377, %v2480
  %v2482 = vpop.f32.mrf.mxu0
  %2483 = vmatprep.mubr.f32.mxu0 0.0
  %v2484 = vand.u32 %v2133, 4294901760
  %v2485 = vsub.f32 %v2133, %v2484
  %2486 = vmatmul.mubr.f32.gmra.mxu0 %v2485
  %v2487 = vpop.f32.mrf.mxu0
  %v2488 = vadd.f32 %v2383, %v2487
  %v2489 = vpop.f32.mrf.mxu0
  %2490 = vmatprep.mubr.f32.mxu0 0.0
  %v2491 = vand.u32 %v2136, 4294901760
  %v2492 = vsub.f32 %v2136, %v2491
  %2493 = vmatmul.mubr.f32.gmra.mxu0 %v2492
  %v2494 = vpop.f32.mrf.mxu0
  %v2495 = vadd.f32 %v2389, %v2494
  %v2496 = vpop.f32.mrf.mxu0
  %2497 = vmatprep.mubr.f32.mxu0 0.0
  %v2498 = vand.u32 %v2139, 4294901760
  %v2499 = vsub.f32 %v2139, %v2498
  %2500 = vmatmul.mubr.f32.gmra.mxu0 %v2499
  %v2501 = vpop.f32.mrf.mxu0
  %v2502 = vadd.f32 %v2395, %v2501
  %v2503 = vpop.f32.mrf.mxu0
  %2504 = vdwg.mxu0
  %2505 = vmatprep.subr.mxu0 0.0
  %2506 = vmatpush1.xpose.msra.mxu0 0.0
  %2507 = vmatprep.subr.mxu0 0.0
  %2508 = vmatpush1.xpose.msra.mxu0 0.0
  %2509 = vmatprep.subr.mxu0 0.0
  %2510 = vmatpush1.xpose.msra.mxu0 0.0
  %2511 = vmatprep.subr.mxu0 0.0
  %2512 = vmatpush1.xpose.msra.mxu0 0.0
  %2513 = vmatprep.subr.mxu0 0.0
  %2514 = vmatpush1.xpose.msra.mxu0 0.0
  %2515 = vmatprep.subr.mxu0 0.0
  %2516 = vmatpush1.xpose.msra.mxu0 0.0
  %2517 = vmatprep.subr.mxu0 0.0
  %2518 = vmatpush1.xpose.msra.mxu0 0.0
  %2519 = vmatprep.subr.mxu0 0.0
  %2520 = vmatpush1.xpose.msra.mxu0 0.0
  %2521 = vmatprep.subr.mxu0 0.0
  %2522 = vmatpush1.xpose.msra.mxu0 0.0
  %2523 = vmatprep.subr.mxu0 0.0
  %v2524 = vand.u32 %v2160, 4294901760
  %2525 = vmatpush1.xpose.msra.mxu0 %v2524
  %2526 = vmatprep.subr.mxu0 0.0
  %v2527 = vand.u32 %v2157, 4294901760
  %2528 = vmatpush1.xpose.msra.mxu0 %v2527
  %2529 = vmatprep.subr.mxu0 0.0
  %v2530 = vand.u32 %v2154, 4294901760
  %2531 = vmatpush1.xpose.msra.mxu0 %v2530
  %2532 = vmatprep.subr.mxu0 0.0
  %v2533 = vand.u32 %v2151, 4294901760
  %2534 = vmatpush1.xpose.msra.mxu0 %v2533
  %2535 = vmatprep.subr.mxu0 0.0
  %v2536 = vand.u32 %v2148, 4294901760
  %2537 = vmatpush1.xpose.msra.mxu0 %v2536
  %2538 = vmatprep.subr.mxu0 0.0
  %v2539 = vand.u32 %v2145, 4294901760
  %2540 = vmatpush1.xpose.msra.mxu0 %v2539
  %2541 = vmatprep.subr.mxu0 0.0
  %v2542 = vand.u32 %v2142, 4294901760
  %2543 = vmatpush1.xpose.msra.mxu0 %v2542
  %2544 = vmatprep.subr.mxu0 0.0
  %2545 = vmatpush2.xpose.msra.mxu0 0.0
  %2546 = vmatprep.subr.mxu0 0.0
  %2547 = vmatpush2.xpose.msra.mxu0 0.0
  %2548 = vmatprep.subr.mxu0 0.0
  %2549 = vmatpush2.xpose.msra.mxu0 0.0
  %2550 = vmatprep.subr.mxu0 0.0
  %2551 = vmatpush2.xpose.msra.mxu0 0.0
  %2552 = vmatprep.subr.mxu0 0.0
  %2553 = vmatpush2.xpose.msra.mxu0 0.0
  %2554 = vmatprep.subr.mxu0 0.0
  %2555 = vmatpush2.xpose.msra.mxu0 0.0
  %2556 = vmatprep.subr.mxu0 0.0
  %2557 = vmatpush2.xpose.msra.mxu0 0.0
  %2558 = vmatprep.subr.mxu0 0.0
  %2559 = vmatpush2.xpose.msra.mxu0 0.0
  %2560 = vmatprep.subr.mxu0 0.0
  %2561 = vmatpush2.xpose.msra.mxu0 0.0
  %2562 = vmatprep.subr.mxu0 0.0
  %2563 = vmatpush2.xpose.msra.mxu0 0.0
  %2564 = vmatprep.subr.mxu0 0.0
  %2565 = vmatpush2.xpose.msra.mxu0 0.0
  %2566 = vmatprep.subr.mxu0 0.0
  %2567 = vmatpush2.xpose.msra.mxu0 0.0
  %2568 = vmatprep.subr.mxu0 0.0
  %2569 = vmatpush2.xpose.msra.mxu0 0.0
  %2570 = vmatprep.subr.mxu0 0.0
  %2571 = vmatpush2.xpose.msra.mxu0 0.0
  %2572 = vmatprep.subr.mxu0 0.0
  %2573 = vmatpush2.xpose.msra.mxu0 0.0
  %2574 = vmatprep.subr.mxu0 0.0
  %2575 = vmatpush2.xpose.msra.mxu0 0.0
  %2576 = vmatprep.mubr.f32.mxu0 0.0
  %v2577 = vand.u32 %v2130, 4294901760
  %v2578 = vsub.f32 %v2130, %v2577
  %v2579 = vand.u32 %v2578, 4294901760
  %2580 = vmatmul.mubr.f32.gmra.mxu0 %v2579
  %v2581 = vpop.f32.mrf.mxu0
  %v2582 = vadd.f32 %v2481, %v2581
  %v2583 = vpop.f32.mrf.mxu0
  %2584 = vmatprep.mubr.f32.mxu0 0.0
  %v2585 = vand.u32 %v2133, 4294901760
  %v2586 = vsub.f32 %v2133, %v2585
  %v2587 = vand.u32 %v2586, 4294901760
  %2588 = vmatmul.mubr.f32.gmra.mxu0 %v2587
  %v2589 = vpop.f32.mrf.mxu0
  %v2590 = vadd.f32 %v2488, %v2589
  %v2591 = vpop.f32.mrf.mxu0
  %2592 = vmatprep.mubr.f32.mxu0 0.0
  %v2593 = vand.u32 %v2136, 4294901760
  %v2594 = vsub.f32 %v2136, %v2593
  %v2595 = vand.u32 %v2594, 4294901760
  %2596 = vmatmul.mubr.f32.gmra.mxu0 %v2595
  %v2597 = vpop.f32.mrf.mxu0
  %v2598 = vadd.f32 %v2495, %v2597
  %v2599 = vpop.f32.mrf.mxu0
  %2600 = vmatprep.mubr.f32.mxu0 0.0
  %v2601 = vand.u32 %v2139, 4294901760
  %v2602 = vsub.f32 %v2139, %v2601
  %v2603 = vand.u32 %v2602, 4294901760
  %2604 = vmatmul.mubr.f32.gmra.mxu0 %v2603
  %v2605 = vpop.f32.mrf.mxu0
  %v2606 = vadd.f32 %v2502, %v2605
  %v2607 = vpop.f32.mrf.mxu0
  %2608 = vdwg.mxu0
  %2609 = vmatprep.subr.mxu0 0.0
  %2610 = vmatpush1.xpose.msra.mxu0 0.0
  %2611 = vmatprep.subr.mxu0 0.0
  %2612 = vmatpush1.xpose.msra.mxu0 0.0
  %2613 = vmatprep.subr.mxu0 0.0
  %2614 = vmatpush1.xpose.msra.mxu0 0.0
  %2615 = vmatprep.subr.mxu0 0.0
  %2616 = vmatpush1.xpose.msra.mxu0 0.0
  %2617 = vmatprep.subr.mxu0 0.0
  %2618 = vmatpush1.xpose.msra.mxu0 0.0
  %2619 = vmatprep.subr.mxu0 0.0
  %2620 = vmatpush1.xpose.msra.mxu0 0.0
  %2621 = vmatprep.subr.mxu0 0.0
  %2622 = vmatpush1.xpose.msra.mxu0 0.0
  %2623 = vmatprep.subr.mxu0 0.0
  %2624 = vmatpush1.xpose.msra.mxu0 0.0
  %2625 = vmatprep.subr.mxu0 0.0
  %2626 = vmatpush1.xpose.msra.mxu0 0.0
  %2627 = vmatprep.subr.mxu0 0.0
  %v2628 = vand.u32 %v2160, 4294901760
  %v2629 = vsub.f32 %v2160, %v2628
  %v2630 = vand.u32 %v2629, 4294901760
  %2631 = vmatpush1.xpose.msra.mxu0 %v2630
  %2632 = vmatprep.subr.mxu0 0.0
  %v2633 = vand.u32 %v2157, 4294901760
  %v2634 = vsub.f32 %v2157, %v2633
  %v2635 = vand.u32 %v2634, 4294901760
  %2636 = vmatpush1.xpose.msra.mxu0 %v2635
  %2637 = vmatprep.subr.mxu0 0.0
  %v2638 = vand.u32 %v2154, 4294901760
  %v2639 = vsub.f32 %v2154, %v2638
  %v2640 = vand.u32 %v2639, 4294901760
  %2641 = vmatpush1.xpose.msra.mxu0 %v2640
  %2642 = vmatprep.subr.mxu0 0.0
  %v2643 = vand.u32 %v2151, 4294901760
  %v2644 = vsub.f32 %v2151, %v2643
  %v2645 = vand.u32 %v2644, 4294901760
  %2646 = vmatpush1.xpose.msra.mxu0 %v2645
  %2647 = vmatprep.subr.mxu0 0.0
  %v2648 = vand.u32 %v2148, 4294901760
  %v2649 = vsub.f32 %v2148, %v2648
  %v2650 = vand.u32 %v2649, 4294901760
  %2651 = vmatpush1.xpose.msra.mxu0 %v2650
  %2652 = vmatprep.subr.mxu0 0.0
  %v2653 = vand.u32 %v2145, 4294901760
  %v2654 = vsub.f32 %v2145, %v2653
  %v2655 = vand.u32 %v2654, 4294901760
  %2656 = vmatpush1.xpose.msra.mxu0 %v2655
  %2657 = vmatprep.subr.mxu0 0.0
  %v2658 = vand.u32 %v2142, 4294901760
  %v2659 = vsub.f32 %v2142, %v2658
  %v2660 = vand.u32 %v2659, 4294901760
  %2661 = vmatpush1.xpose.msra.mxu0 %v2660
  %2662 = vmatprep.subr.mxu0 0.0
  %2663 = vmatpush2.xpose.msra.mxu0 0.0
  %2664 = vmatprep.subr.mxu0 0.0
  %2665 = vmatpush2.xpose.msra.mxu0 0.0
  %2666 = vmatprep.subr.mxu0 0.0
  %2667 = vmatpush2.xpose.msra.mxu0 0.0
  %2668 = vmatprep.subr.mxu0 0.0
  %2669 = vmatpush2.xpose.msra.mxu0 0.0
  %2670 = vmatprep.subr.mxu0 0.0
  %2671 = vmatpush2.xpose.msra.mxu0 0.0
  %2672 = vmatprep.subr.mxu0 0.0
  %2673 = vmatpush2.xpose.msra.mxu0 0.0
  %2674 = vmatprep.subr.mxu0 0.0
  %2675 = vmatpush2.xpose.msra.mxu0 0.0
  %2676 = vmatprep.subr.mxu0 0.0
  %2677 = vmatpush2.xpose.msra.mxu0 0.0
  %2678 = vmatprep.subr.mxu0 0.0
  %2679 = vmatpush2.xpose.msra.mxu0 0.0
  %2680 = vmatprep.subr.mxu0 0.0
  %2681 = vmatpush2.xpose.msra.mxu0 0.0
  %2682 = vmatprep.subr.mxu0 0.0
  %2683 = vmatpush2.xpose.msra.mxu0 0.0
  %2684 = vmatprep.subr.mxu0 0.0
  %2685 = vmatpush2.xpose.msra.mxu0 0.0
  %2686 = vmatprep.subr.mxu0 0.0
  %2687 = vmatpush2.xpose.msra.mxu0 0.0
  %2688 = vmatprep.subr.mxu0 0.0
  %2689 = vmatpush2.xpose.msra.mxu0 0.0
  %2690 = vmatprep.subr.mxu0 0.0
  %2691 = vmatpush2.xpose.msra.mxu0 0.0
  %2692 = vmatprep.subr.mxu0 0.0
  %2693 = vmatpush2.xpose.msra.mxu0 0.0
  %2694 = vmatprep.mubr.f32.mxu0 0.0
  %v2695 = vand.u32 %v2130, 4294901760
  %2696 = vmatmul.mubr.f32.gmra.mxu0 %v2695
  %v2697 = vpop.f32.mrf.mxu0
  %v2698 = vadd.f32 %v2582, %v2697
  %v2699 = vpop.f32.mrf.mxu0
  %2700 = vmatprep.mubr.f32.mxu0 0.0
  %v2701 = vand.u32 %v2133, 4294901760
  %2702 = vmatmul.mubr.f32.gmra.mxu0 %v2701
  %v2703 = vpop.f32.mrf.mxu0
  %v2704 = vadd.f32 %v2590, %v2703
  %v2705 = vpop.f32.mrf.mxu0
  %2706 = vmatprep.mubr.f32.mxu0 0.0
  %v2707 = vand.u32 %v2136, 4294901760
  %2708 = vmatmul.mubr.f32.gmra.mxu0 %v2707
  %v2709 = vpop.f32.mrf.mxu0
  %v2710 = vadd.f32 %v2598, %v2709
  %v2711 = vpop.f32.mrf.mxu0
  %2712 = vmatprep.mubr.f32.mxu0 0.0
  %v2713 = vand.u32 %v2139, 4294901760
  %2714 = vmatmul.mubr.f32.gmra.mxu0 %v2713
  %v2715 = vpop.f32.mrf.mxu0
  %v2716 = vadd.f32 %v2606, %v2715
  %v2717 = vpop.f32.mrf.mxu0
  %2718 = vdwg.mxu0
  %2719 = vmatprep.subr.mxu0 0.0
  %2720 = vmatpush1.xpose.msra.mxu0 0.0
  %2721 = vmatprep.subr.mxu0 0.0
  %2722 = vmatpush1.xpose.msra.mxu0 0.0
  %2723 = vmatprep.subr.mxu0 0.0
  %2724 = vmatpush1.xpose.msra.mxu0 0.0
  %2725 = vmatprep.subr.mxu0 0.0
  %2726 = vmatpush1.xpose.msra.mxu0 0.0
  %2727 = vmatprep.subr.mxu0 0.0
  %2728 = vmatpush1.xpose.msra.mxu0 0.0
  %2729 = vmatprep.subr.mxu0 0.0
  %2730 = vmatpush1.xpose.msra.mxu0 0.0
  %2731 = vmatprep.subr.mxu0 0.0
  %2732 = vmatpush1.xpose.msra.mxu0 0.0
  %2733 = vmatprep.subr.mxu0 0.0
  %2734 = vmatpush1.xpose.msra.mxu0 0.0
  %2735 = vmatprep.subr.mxu0 0.0
  %2736 = vmatpush1.xpose.msra.mxu0 0.0
  %2737 = vmatprep.subr.mxu0 0.0
  %v2738 = vand.u32 %v2160, 4294901760
  %2739 = vmatpush1.xpose.msra.mxu0 %v2738
  %2740 = vmatprep.subr.mxu0 0.0
  %v2741 = vand.u32 %v2157, 4294901760
  %2742 = vmatpush1.xpose.msra.mxu0 %v2741
  %2743 = vmatprep.subr.mxu0 0.0
  %v2744 = vand.u32 %v2154, 4294901760
  %2745 = vmatpush1.xpose.msra.mxu0 %v2744
  %2746 = vmatprep.subr.mxu0 0.0
  %v2747 = vand.u32 %v2151, 4294901760
  %2748 = vmatpush1.xpose.msra.mxu0 %v2747
  %2749 = vmatprep.subr.mxu0 0.0
  %v2750 = vand.u32 %v2148, 4294901760
  %2751 = vmatpush1.xpose.msra.mxu0 %v2750
  %2752 = vmatprep.subr.mxu0 0.0
  %v2753 = vand.u32 %v2145, 4294901760
  %2754 = vmatpush1.xpose.msra.mxu0 %v2753
  %2755 = vmatprep.subr.mxu0 0.0
  %v2756 = vand.u32 %v2142, 4294901760
  %2757 = vmatpush1.xpose.msra.mxu0 %v2756
  %2758 = vmatprep.subr.mxu0 0.0
  %2759 = vmatpush2.xpose.msra.mxu0 0.0
  %2760 = vmatprep.subr.mxu0 0.0
  %2761 = vmatpush2.xpose.msra.mxu0 0.0
  %2762 = vmatprep.subr.mxu0 0.0
  %2763 = vmatpush2.xpose.msra.mxu0 0.0
  %2764 = vmatprep.subr.mxu0 0.0
  %2765 = vmatpush2.xpose.msra.mxu0 0.0
  %2766 = vmatprep.subr.mxu0 0.0
  %2767 = vmatpush2.xpose.msra.mxu0 0.0
  %2768 = vmatprep.subr.mxu0 0.0
  %2769 = vmatpush2.xpose.msra.mxu0 0.0
  %2770 = vmatprep.subr.mxu0 0.0
  %2771 = vmatpush2.xpose.msra.mxu0 0.0
  %2772 = vmatprep.subr.mxu0 0.0
  %2773 = vmatpush2.xpose.msra.mxu0 0.0
  %2774 = vmatprep.subr.mxu0 0.0
  %2775 = vmatpush2.xpose.msra.mxu0 0.0
  %2776 = vmatprep.subr.mxu0 0.0
  %2777 = vmatpush2.xpose.msra.mxu0 0.0
  %2778 = vmatprep.subr.mxu0 0.0
  %2779 = vmatpush2.xpose.msra.mxu0 0.0
  %2780 = vmatprep.subr.mxu0 0.0
  %2781 = vmatpush2.xpose.msra.mxu0 0.0
  %2782 = vmatprep.subr.mxu0 0.0
  %2783 = vmatpush2.xpose.msra.mxu0 0.0
  %2784 = vmatprep.subr.mxu0 0.0
  %2785 = vmatpush2.xpose.msra.mxu0 0.0
  %2786 = vmatprep.subr.mxu0 0.0
  %2787 = vmatpush2.xpose.msra.mxu0 0.0
  %2788 = vmatprep.subr.mxu0 0.0
  %2789 = vmatpush2.xpose.msra.mxu0 0.0
  %2790 = vmatprep.mubr.f32.mxu0 0.0
  %v2791 = vand.u32 %v2130, 4294901760
  %2792 = vmatmul.mubr.f32.gmra.mxu0 %v2791
  %v2793 = vpop.f32.mrf.mxu0
  %v2794 = vadd.f32 %v2698, %v2793
  %v2795 = vpop.f32.mrf.mxu0
  %2796 = vmatprep.mubr.f32.mxu0 0.0
  %v2797 = vand.u32 %v2133, 4294901760
  %2798 = vmatmul.mubr.f32.gmra.mxu0 %v2797
  %v2799 = vpop.f32.mrf.mxu0
  %v2800 = vadd.f32 %v2704, %v2799
  %v2801 = vpop.f32.mrf.mxu0
  %2802 = vmatprep.mubr.f32.mxu0 0.0
  %v2803 = vand.u32 %v2136, 4294901760
  %2804 = vmatmul.mubr.f32.gmra.mxu0 %v2803
  %v2805 = vpop.f32.mrf.mxu0
  %v2806 = vadd.f32 %v2710, %v2805
  %v2807 = vpop.f32.mrf.mxu0
  %2808 = vmatprep.mubr.f32.mxu0 0.0
  %v2809 = vand.u32 %v2139, 4294901760
  %2810 = vmatmul.mubr.f32.gmra.mxu0 %v2809
  %v2811 = vpop.f32.mrf.mxu0
  %v2812 = vadd.f32 %v2716, %v2811
  %v2813 = vpop.f32.mrf.mxu0
  %2814 = vdwg.mxu0
  %v2815 = vlaneseq
  %v2816 = vand.u32 %v2815, 127
  %v2817 = vcvt.s32.f32 %v2816
  %vm2818 = vcmp.eq.s32.totalorder %v2816, 48
  %v2819 = vsel %vm2818, %v2794, -1e+30
  %v2820 = vsel %vm2818, %v2800, -1e+30
  %v2821 = vsel %vm2818, %v2806, -1e+30
  %v2822 = vsel %vm2818, %v2812, -1e+30
  %vm2823 = vcmask 457728
  %v2824 = vsel %vm2823, %v2819, -inf
  %2825 = vmax.xlane.f32.xlu0 %v2824
  %v2826 = vpop.xlane.xlu0 %2825
  %v2827 = vsel %vm2823, %v2820, -inf
  %2828 = vmax.xlane.f32.xlu0 %v2827
  %v2829 = vpop.xlane.xlu0 %2828
  %v2830 = vsel %vm2823, %v2821, -inf
  %2831 = vmax.xlane.f32.xlu0 %v2830
  %v2832 = vpop.xlane.xlu0 %2831
  %v2833 = vsel %vm2823, %v2822, -inf
  %2834 = vmax.xlane.f32.xlu0 %v2833
  %v2835 = vpop.xlane.xlu0 %2834
  %vm2836 = vcmp.ge.s32.totalorder %v2816, 0
  %vm2837 = vcmp.lt.s32.totalorder %v2816, 16
  %vm2838 = vmand %vm2836, %vm2837
  %v2839 = vsel %vm2838, %v2794, -1e+30
  %v2840 = vsel %vm2838, %v2800, -1e+30
  %v2841 = vsel %vm2838, %v2806, -1e+30
  %v2842 = vsel %vm2838, %v2812, -1e+30
  %v2843 = vsel %vm2823, %v2839, -inf
  %2844 = vmax.xlane.f32.xlu0 %v2843
  %v2845 = vpop.xlane.xlu0 %2844
  %v2846 = vsel %vm2823, %v2840, -inf
  %2847 = vmax.xlane.f32.xlu0 %v2846
  %v2848 = vpop.xlane.xlu0 %2847
  %v2849 = vsel %vm2823, %v2841, -inf
  %2850 = vmax.xlane.f32.xlu0 %v2849
  %v2851 = vpop.xlane.xlu0 %2850
  %v2852 = vsel %vm2823, %v2842, -inf
  %2853 = vmax.xlane.f32.xlu0 %v2852
  %v2854 = vpop.xlane.xlu0 %2853
  %vm2855 = vcmp.eq.f32.partialorder %v2839, %v2845
  %vm2856 = vcmp.eq.f32.partialorder %v2840, %v2848
  %vm2857 = vcmp.eq.f32.partialorder %v2841, %v2851
  %vm2858 = vcmp.eq.f32.partialorder %v2842, %v2854
  %v2859 = vsel %vm2855, %v2817, 56.0
  %v2860 = vsel %vm2856, %v2817, 56.0
  %v2861 = vsel %vm2857, %v2817, 56.0
  %v2862 = vsel %vm2858, %v2817, 56.0
  %v2863 = vsel %vm2823, %v2859, inf
  %2864 = vmin.xlane.f32.xlu0 %v2863
  %v2865 = vpop.xlane.xlu0 %2864
  %v2866 = vsel %vm2823, %v2860, inf
  %2867 = vmin.xlane.f32.xlu0 %v2866
  %v2868 = vpop.xlane.xlu0 %2867
  %v2869 = vsel %vm2823, %v2861, inf
  %2870 = vmin.xlane.f32.xlu0 %v2869
  %v2871 = vpop.xlane.xlu0 %2870
  %v2872 = vsel %vm2823, %v2862, inf
  %2873 = vmin.xlane.f32.xlu0 %v2872
  %v2874 = vpop.xlane.xlu0 %2873
  %vm2875 = vcmp.ge.s32.totalorder %v2816, 16
  %vm2876 = vcmp.lt.s32.totalorder %v2816, 32
  %vm2877 = vmand %vm2875, %vm2876
  %v2878 = vsel %vm2877, %v2794, -1e+30
  %v2879 = vsel %vm2877, %v2800, -1e+30
  %v2880 = vsel %vm2877, %v2806, -1e+30
  %v2881 = vsel %vm2877, %v2812, -1e+30
  %v2882 = vsel %vm2823, %v2878, -inf
  %2883 = vmax.xlane.f32.xlu0 %v2882
  %v2884 = vpop.xlane.xlu0 %2883
  %v2885 = vsel %vm2823, %v2879, -inf
  %2886 = vmax.xlane.f32.xlu0 %v2885
  %v2887 = vpop.xlane.xlu0 %2886
  %v2888 = vsel %vm2823, %v2880, -inf
  %2889 = vmax.xlane.f32.xlu0 %v2888
  %v2890 = vpop.xlane.xlu0 %2889
  %v2891 = vsel %vm2823, %v2881, -inf
  %2892 = vmax.xlane.f32.xlu0 %v2891
  %v2893 = vpop.xlane.xlu0 %2892
  %vm2894 = vcmp.eq.f32.partialorder %v2878, %v2884
  %vm2895 = vcmp.eq.f32.partialorder %v2879, %v2887
  %vm2896 = vcmp.eq.f32.partialorder %v2880, %v2890
  %vm2897 = vcmp.eq.f32.partialorder %v2881, %v2893
  %v2898 = vsel %vm2894, %v2817, 56.0
  %v2899 = vsel %vm2895, %v2817, 56.0
  %v2900 = vsel %vm2896, %v2817, 56.0
  %v2901 = vsel %vm2897, %v2817, 56.0
  %v2902 = vsel %vm2823, %v2898, inf
  %2903 = vmin.xlane.f32.xlu0 %v2902
  %v2904 = vpop.xlane.xlu0 %2903
  %v2905 = vsel %vm2823, %v2899, inf
  %2906 = vmin.xlane.f32.xlu0 %v2905
  %v2907 = vpop.xlane.xlu0 %2906
  %v2908 = vsel %vm2823, %v2900, inf
  %2909 = vmin.xlane.f32.xlu0 %v2908
  %v2910 = vpop.xlane.xlu0 %2909
  %v2911 = vsel %vm2823, %v2901, inf
  %2912 = vmin.xlane.f32.xlu0 %v2911
  %v2913 = vpop.xlane.xlu0 %2912
  %vm2914 = vcmp.ge.s32.totalorder %v2816, 32
  %vm2915 = vcmp.lt.s32.totalorder %v2816, 48
  %vm2916 = vmand %vm2914, %vm2915
  %v2917 = vsel %vm2916, %v2794, -1e+30
  %v2918 = vsel %vm2916, %v2800, -1e+30
  %v2919 = vsel %vm2916, %v2806, -1e+30
  %v2920 = vsel %vm2916, %v2812, -1e+30
  %v2921 = vsel %vm2823, %v2917, -inf
  %2922 = vmax.xlane.f32.xlu0 %v2921
  %v2923 = vpop.xlane.xlu0 %2922
  %v2924 = vsel %vm2823, %v2918, -inf
  %2925 = vmax.xlane.f32.xlu0 %v2924
  %v2926 = vpop.xlane.xlu0 %2925
  %v2927 = vsel %vm2823, %v2919, -inf
  %2928 = vmax.xlane.f32.xlu0 %v2927
  %v2929 = vpop.xlane.xlu0 %2928
  %v2930 = vsel %vm2823, %v2920, -inf
  %2931 = vmax.xlane.f32.xlu0 %v2930
  %v2932 = vpop.xlane.xlu0 %2931
  %vm2933 = vcmp.eq.f32.partialorder %v2917, %v2923
  %vm2934 = vcmp.eq.f32.partialorder %v2918, %v2926
  %vm2935 = vcmp.eq.f32.partialorder %v2919, %v2929
  %vm2936 = vcmp.eq.f32.partialorder %v2920, %v2932
  %v2937 = vsel %vm2933, %v2817, 56.0
  %v2938 = vsel %vm2934, %v2817, 56.0
  %v2939 = vsel %vm2935, %v2817, 56.0
  %v2940 = vsel %vm2936, %v2817, 56.0
  %v2941 = vsel %vm2823, %v2937, inf
  %2942 = vmin.xlane.f32.xlu0 %v2941
  %v2943 = vpop.xlane.xlu0 %2942
  %v2944 = vsel %vm2823, %v2938, inf
  %2945 = vmin.xlane.f32.xlu0 %v2944
  %v2946 = vpop.xlane.xlu0 %2945
  %v2947 = vsel %vm2823, %v2939, inf
  %2948 = vmin.xlane.f32.xlu0 %v2947
  %v2949 = vpop.xlane.xlu0 %2948
  %v2950 = vsel %vm2823, %v2940, inf
  %2951 = vmin.xlane.f32.xlu0 %v2950
  %v2952 = vpop.xlane.xlu0 %2951
  %v2953 = vmax.f32 %v2826, %v2845
  %v2954 = vmax.f32 %v2829, %v2848
  %v2955 = vmax.f32 %v2832, %v2851
  %v2956 = vmax.f32 %v2835, %v2854
  %v2957 = vmax.f32 %v2953, %v2884
  %v2958 = vmax.f32 %v2954, %v2887
  %v2959 = vmax.f32 %v2955, %v2890
  %v2960 = vmax.f32 %v2956, %v2893
  %v2961 = vmax.f32 %v2957, %v2923
  %v2962 = vmax.f32 %v2958, %v2926
  %v2963 = vmax.f32 %v2959, %v2929
  %v2964 = vmax.f32 %v2960, %v2932
  %v2965 = vsub.f32 %v2845, %v2961
  %v2966 = vsub.f32 %v2848, %v2962
  %v2967 = vsub.f32 %v2851, %v2963
  %v2968 = vsub.f32 %v2854, %v2964
  %v2969 = vmul.f32 %v2965, 1.442695
  %v2970 = vpow.pop %v2969
  %v2971 = vmul.f32 %v2966, 1.442695
  %v2972 = vpow.pop %v2971
  %v2973 = vmul.f32 %v2967, 1.442695
  %v2974 = vpow.pop %v2973
  %v2975 = vmul.f32 %v2968, 1.442695
  %v2976 = vpow.pop %v2975
  %v2977 = vsub.f32 %v2884, %v2961
  %v2978 = vsub.f32 %v2887, %v2962
  %v2979 = vsub.f32 %v2890, %v2963
  %v2980 = vsub.f32 %v2893, %v2964
  %v2981 = vmul.f32 %v2977, 1.442695
  %v2982 = vpow.pop %v2981
  %v2983 = vmul.f32 %v2978, 1.442695
  %v2984 = vpow.pop %v2983
  %v2985 = vmul.f32 %v2979, 1.442695
  %v2986 = vpow.pop %v2985
  %v2987 = vmul.f32 %v2980, 1.442695
  %v2988 = vpow.pop %v2987
  %v2989 = vsub.f32 %v2923, %v2961
  %v2990 = vsub.f32 %v2926, %v2962
  %v2991 = vsub.f32 %v2929, %v2963
  %v2992 = vsub.f32 %v2932, %v2964
  %v2993 = vmul.f32 %v2989, 1.442695
  %v2994 = vpow.pop %v2993
  %v2995 = vmul.f32 %v2990, 1.442695
  %v2996 = vpow.pop %v2995
  %v2997 = vmul.f32 %v2991, 1.442695
  %v2998 = vpow.pop %v2997
  %v2999 = vmul.f32 %v2992, 1.442695
  %v3000 = vpow.pop %v2999
  %v3001 = vsub.f32 %v2826, %v2961
  %v3002 = vsub.f32 %v2829, %v2962
  %v3003 = vsub.f32 %v2832, %v2963
  %v3004 = vsub.f32 %v2835, %v2964
  %v3005 = vmul.f32 %v3001, 1.442695
  %v3006 = vpow.pop %v3005
  %v3007 = vmul.f32 %v3002, 1.442695
  %v3008 = vpow.pop %v3007
  %v3009 = vmul.f32 %v3003, 1.442695
  %v3010 = vpow.pop %v3009
  %v3011 = vmul.f32 %v3004, 1.442695
  %v3012 = vpow.pop %v3011
  %v3013 = vadd.f32 %v2970, 0.0
  %v3014 = vadd.f32 %v2972, 0.0
  %v3015 = vadd.f32 %v2974, 0.0
  %v3016 = vadd.f32 %v2976, 0.0
  %v3017 = vadd.f32 %v3013, %v2982
  %v3018 = vadd.f32 %v3014, %v2984
  %v3019 = vadd.f32 %v3015, %v2986
  %v3020 = vadd.f32 %v3016, %v2988
  %v3021 = vadd.f32 %v3017, %v2994
  %v3022 = vadd.f32 %v3018, %v2996
  %v3023 = vadd.f32 %v3019, %v2998
  %v3024 = vadd.f32 %v3020, %v3000
  %v3025 = vadd.f32 %v3021, %v3006
  %v3026 = vadd.f32 %v3022, %v3008
  %v3027 = vadd.f32 %v3023, %v3010
  %v3028 = vadd.f32 %v3024, %v3012
  %v3029 = vrcp.pop %v3025
  %v3030 = vmul.f32 1.0, %v3029
  %v3031 = vrcp.pop %v3026
  %v3032 = vmul.f32 1.0, %v3031
  %v3033 = vrcp.pop %v3027
  %v3034 = vmul.f32 1.0, %v3033
  %v3035 = vrcp.pop %v3028
  %v3036 = vmul.f32 1.0, %v3035
  %vm3037 = vcmp.eq.f32.partialorder %v2817, %v2865
  %vm3038 = vcmp.eq.f32.partialorder %v2817, %v2868
  %vm3039 = vcmp.eq.f32.partialorder %v2817, %v2871
  %vm3040 = vcmp.eq.f32.partialorder %v2817, %v2874
  %v3041 = vmul.f32 %v2970, %v3030
  %v3042 = vmul.f32 %v2972, %v3032
  %v3043 = vmul.f32 %v2974, %v3034
  %v3044 = vmul.f32 %v2976, %v3036
  %v3045 = vsel %vm3037, %v3041, 0.0
  %v3046 = vsel %vm3038, %v3042, 0.0
  %v3047 = vsel %vm3039, %v3043, 0.0
  %v3048 = vsel %vm3040, %v3044, 0.0
  %v3049 = vadd.f32 %v3045, 0.0
  %v3050 = vadd.f32 %v3046, 0.0
  %v3051 = vadd.f32 %v3047, 0.0
  %v3052 = vadd.f32 %v3048, 0.0
  %vm3053 = vcmp.eq.f32.partialorder %v2817, %v2904
  %vm3054 = vcmp.eq.f32.partialorder %v2817, %v2907
  %vm3055 = vcmp.eq.f32.partialorder %v2817, %v2910
  %vm3056 = vcmp.eq.f32.partialorder %v2817, %v2913
  %v3057 = vmul.f32 %v2982, %v3030
  %v3058 = vmul.f32 %v2984, %v3032
  %v3059 = vmul.f32 %v2986, %v3034
  %v3060 = vmul.f32 %v2988, %v3036
  %v3061 = vsel %vm3053, %v3057, 0.0
  %v3062 = vsel %vm3054, %v3058, 0.0
  %v3063 = vsel %vm3055, %v3059, 0.0
  %v3064 = vsel %vm3056, %v3060, 0.0
  %v3065 = vadd.f32 %v3049, %v3061
  %v3066 = vadd.f32 %v3050, %v3062
  %v3067 = vadd.f32 %v3051, %v3063
  %v3068 = vadd.f32 %v3052, %v3064
  %vm3069 = vcmp.eq.f32.partialorder %v2817, %v2943
  %vm3070 = vcmp.eq.f32.partialorder %v2817, %v2946
  %vm3071 = vcmp.eq.f32.partialorder %v2817, %v2949
  %vm3072 = vcmp.eq.f32.partialorder %v2817, %v2952
  %v3073 = vmul.f32 %v2994, %v3030
  %v3074 = vmul.f32 %v2996, %v3032
  %v3075 = vmul.f32 %v2998, %v3034
  %v3076 = vmul.f32 %v3000, %v3036
  %v3077 = vsel %vm3069, %v3073, 0.0
  %v3078 = vsel %vm3070, %v3074, 0.0
  %v3079 = vsel %vm3071, %v3075, 0.0
  %v3080 = vsel %vm3072, %v3076, 0.0
  %v3081 = vadd.f32 %v3065, %v3077
  %v3082 = vadd.f32 %v3066, %v3078
  %v3083 = vadd.f32 %v3067, %v3079
  %v3084 = vadd.f32 %v3068, %v3080
  %vm3085 = vcmp.lt.s32.totalorder %v2816, 12
  %vm3086 = vmand %vm2836, %vm3085
  %v3087 = vsel %vm3086, %v2794, -1e+30
  %v3088 = vsel %vm3086, %v2800, -1e+30
  %v3089 = vsel %vm3086, %v2806, -1e+30
  %v3090 = vsel %vm3086, %v2812, -1e+30
  %v3091 = vsel %vm2823, %v3087, -inf
  %3092 = vmax.xlane.f32.xlu0 %v3091
  %v3093 = vpop.xlane.xlu0 %3092
  %v3094 = vsel %vm2823, %v3088, -inf
  %3095 = vmax.xlane.f32.xlu0 %v3094
  %v3096 = vpop.xlane.xlu0 %3095
  %v3097 = vsel %vm2823, %v3089, -inf
  %3098 = vmax.xlane.f32.xlu0 %v3097
  %v3099 = vpop.xlane.xlu0 %3098
  %v3100 = vsel %vm2823, %v3090, -inf
  %3101 = vmax.xlane.f32.xlu0 %v3100
  %v3102 = vpop.xlane.xlu0 %3101
  %vm3103 = vcmp.eq.f32.partialorder %v3087, %v3093
  %vm3104 = vcmp.eq.f32.partialorder %v3088, %v3096
  %vm3105 = vcmp.eq.f32.partialorder %v3089, %v3099
  %vm3106 = vcmp.eq.f32.partialorder %v3090, %v3102
  %v3107 = vsel %vm3103, %v2817, 56.0
  %v3108 = vsel %vm3104, %v2817, 56.0
  %v3109 = vsel %vm3105, %v2817, 56.0
  %v3110 = vsel %vm3106, %v2817, 56.0
  %v3111 = vsel %vm2823, %v3107, inf
  %3112 = vmin.xlane.f32.xlu0 %v3111
  %v3113 = vpop.xlane.xlu0 %3112
  %v3114 = vsel %vm2823, %v3108, inf
  %3115 = vmin.xlane.f32.xlu0 %v3114
  %v3116 = vpop.xlane.xlu0 %3115
  %v3117 = vsel %vm2823, %v3109, inf
  %3118 = vmin.xlane.f32.xlu0 %v3117
  %v3119 = vpop.xlane.xlu0 %3118
  %v3120 = vsel %vm2823, %v3110, inf
  %3121 = vmin.xlane.f32.xlu0 %v3120
  %v3122 = vpop.xlane.xlu0 %3121
  %vm3123 = vcmp.lt.s32.totalorder %v2816, 28
  %vm3124 = vmand %vm2875, %vm3123
  %v3125 = vsel %vm3124, %v2794, -1e+30
  %v3126 = vsel %vm3124, %v2800, -1e+30
  %v3127 = vsel %vm3124, %v2806, -1e+30
  %v3128 = vsel %vm3124, %v2812, -1e+30
  %v3129 = vsel %vm2823, %v3125, -inf
  %3130 = vmax.xlane.f32.xlu0 %v3129
  %v3131 = vpop.xlane.xlu0 %3130
  %v3132 = vsel %vm2823, %v3126, -inf
  %3133 = vmax.xlane.f32.xlu0 %v3132
  %v3134 = vpop.xlane.xlu0 %3133
  %v3135 = vsel %vm2823, %v3127, -inf
  %3136 = vmax.xlane.f32.xlu0 %v3135
  %v3137 = vpop.xlane.xlu0 %3136
  %v3138 = vsel %vm2823, %v3128, -inf
  %3139 = vmax.xlane.f32.xlu0 %v3138
  %v3140 = vpop.xlane.xlu0 %3139
  %vm3141 = vcmp.eq.f32.partialorder %v3125, %v3131
  %vm3142 = vcmp.eq.f32.partialorder %v3126, %v3134
  %vm3143 = vcmp.eq.f32.partialorder %v3127, %v3137
  %vm3144 = vcmp.eq.f32.partialorder %v3128, %v3140
  %v3145 = vsel %vm3141, %v2817, 56.0
  %v3146 = vsel %vm3142, %v2817, 56.0
  %v3147 = vsel %vm3143, %v2817, 56.0
  %v3148 = vsel %vm3144, %v2817, 56.0
  %v3149 = vsel %vm2823, %v3145, inf
  %3150 = vmin.xlane.f32.xlu0 %v3149
  %v3151 = vpop.xlane.xlu0 %3150
  %v3152 = vsel %vm2823, %v3146, inf
  %3153 = vmin.xlane.f32.xlu0 %v3152
  %v3154 = vpop.xlane.xlu0 %3153
  %v3155 = vsel %vm2823, %v3147, inf
  %3156 = vmin.xlane.f32.xlu0 %v3155
  %v3157 = vpop.xlane.xlu0 %3156
  %v3158 = vsel %vm2823, %v3148, inf
  %3159 = vmin.xlane.f32.xlu0 %v3158
  %v3160 = vpop.xlane.xlu0 %3159
  %vm3161 = vcmp.lt.s32.totalorder %v2816, 44
  %vm3162 = vmand %vm2914, %vm3161
  %v3163 = vsel %vm3162, %v2794, -1e+30
  %v3164 = vsel %vm3162, %v2800, -1e+30
  %v3165 = vsel %vm3162, %v2806, -1e+30
  %v3166 = vsel %vm3162, %v2812, -1e+30
  %v3167 = vsel %vm2823, %v3163, -inf
  %3168 = vmax.xlane.f32.xlu0 %v3167
  %v3169 = vpop.xlane.xlu0 %3168
  %v3170 = vsel %vm2823, %v3164, -inf
  %3171 = vmax.xlane.f32.xlu0 %v3170
  %v3172 = vpop.xlane.xlu0 %3171
  %v3173 = vsel %vm2823, %v3165, -inf
  %3174 = vmax.xlane.f32.xlu0 %v3173
  %v3175 = vpop.xlane.xlu0 %3174
  %v3176 = vsel %vm2823, %v3166, -inf
  %3177 = vmax.xlane.f32.xlu0 %v3176
  %v3178 = vpop.xlane.xlu0 %3177
  %vm3179 = vcmp.eq.f32.partialorder %v3163, %v3169
  %vm3180 = vcmp.eq.f32.partialorder %v3164, %v3172
  %vm3181 = vcmp.eq.f32.partialorder %v3165, %v3175
  %vm3182 = vcmp.eq.f32.partialorder %v3166, %v3178
  %v3183 = vsel %vm3179, %v2817, 56.0
  %v3184 = vsel %vm3180, %v2817, 56.0
  %v3185 = vsel %vm3181, %v2817, 56.0
  %v3186 = vsel %vm3182, %v2817, 56.0
  %v3187 = vsel %vm2823, %v3183, inf
  %3188 = vmin.xlane.f32.xlu0 %v3187
  %v3189 = vpop.xlane.xlu0 %3188
  %v3190 = vsel %vm2823, %v3184, inf
  %3191 = vmin.xlane.f32.xlu0 %v3190
  %v3192 = vpop.xlane.xlu0 %3191
  %v3193 = vsel %vm2823, %v3185, inf
  %3194 = vmin.xlane.f32.xlu0 %v3193
  %v3195 = vpop.xlane.xlu0 %3194
  %v3196 = vsel %vm2823, %v3186, inf
  %3197 = vmin.xlane.f32.xlu0 %v3196
  %v3198 = vpop.xlane.xlu0 %3197
  %v3199 = vmax.f32 %v2826, %v3093
  %v3200 = vmax.f32 %v2829, %v3096
  %v3201 = vmax.f32 %v2832, %v3099
  %v3202 = vmax.f32 %v2835, %v3102
  %v3203 = vmax.f32 %v3199, %v3131
  %v3204 = vmax.f32 %v3200, %v3134
  %v3205 = vmax.f32 %v3201, %v3137
  %v3206 = vmax.f32 %v3202, %v3140
  %v3207 = vmax.f32 %v3203, %v3169
  %v3208 = vmax.f32 %v3204, %v3172
  %v3209 = vmax.f32 %v3205, %v3175
  %v3210 = vmax.f32 %v3206, %v3178
  %v3211 = vsub.f32 %v3093, %v3207
  %v3212 = vsub.f32 %v3096, %v3208
  %v3213 = vsub.f32 %v3099, %v3209
  %v3214 = vsub.f32 %v3102, %v3210
  %v3215 = vmul.f32 %v3211, 1.442695
  %v3216 = vpow.pop %v3215
  %v3217 = vmul.f32 %v3212, 1.442695
  %v3218 = vpow.pop %v3217
  %v3219 = vmul.f32 %v3213, 1.442695
  %v3220 = vpow.pop %v3219
  %v3221 = vmul.f32 %v3214, 1.442695
  %v3222 = vpow.pop %v3221
  %v3223 = vsub.f32 %v3131, %v3207
  %v3224 = vsub.f32 %v3134, %v3208
  %v3225 = vsub.f32 %v3137, %v3209
  %v3226 = vsub.f32 %v3140, %v3210
  %v3227 = vmul.f32 %v3223, 1.442695
  %v3228 = vpow.pop %v3227
  %v3229 = vmul.f32 %v3224, 1.442695
  %v3230 = vpow.pop %v3229
  %v3231 = vmul.f32 %v3225, 1.442695
  %v3232 = vpow.pop %v3231
  %v3233 = vmul.f32 %v3226, 1.442695
  %v3234 = vpow.pop %v3233
  %v3235 = vsub.f32 %v3169, %v3207
  %v3236 = vsub.f32 %v3172, %v3208
  %v3237 = vsub.f32 %v3175, %v3209
  %v3238 = vsub.f32 %v3178, %v3210
  %v3239 = vmul.f32 %v3235, 1.442695
  %v3240 = vpow.pop %v3239
  %v3241 = vmul.f32 %v3236, 1.442695
  %v3242 = vpow.pop %v3241
  %v3243 = vmul.f32 %v3237, 1.442695
  %v3244 = vpow.pop %v3243
  %v3245 = vmul.f32 %v3238, 1.442695
  %v3246 = vpow.pop %v3245
  %v3247 = vsub.f32 %v2826, %v3207
  %v3248 = vsub.f32 %v2829, %v3208
  %v3249 = vsub.f32 %v2832, %v3209
  %v3250 = vsub.f32 %v2835, %v3210
  %v3251 = vmul.f32 %v3247, 1.442695
  %v3252 = vpow.pop %v3251
  %v3253 = vmul.f32 %v3248, 1.442695
  %v3254 = vpow.pop %v3253
  %v3255 = vmul.f32 %v3249, 1.442695
  %v3256 = vpow.pop %v3255
  %v3257 = vmul.f32 %v3250, 1.442695
  %v3258 = vpow.pop %v3257
  %v3259 = vadd.f32 %v3216, 0.0
  %v3260 = vadd.f32 %v3218, 0.0
  %v3261 = vadd.f32 %v3220, 0.0
  %v3262 = vadd.f32 %v3222, 0.0
  %v3263 = vadd.f32 %v3259, %v3228
  %v3264 = vadd.f32 %v3260, %v3230
  %v3265 = vadd.f32 %v3261, %v3232
  %v3266 = vadd.f32 %v3262, %v3234
  %v3267 = vadd.f32 %v3263, %v3240
  %v3268 = vadd.f32 %v3264, %v3242
  %v3269 = vadd.f32 %v3265, %v3244
  %v3270 = vadd.f32 %v3266, %v3246
  %v3271 = vadd.f32 %v3267, %v3252
  %v3272 = vadd.f32 %v3268, %v3254
  %v3273 = vadd.f32 %v3269, %v3256
  %v3274 = vadd.f32 %v3270, %v3258
  %v3275 = vrcp.pop %v3271
  %v3276 = vmul.f32 1.0, %v3275
  %v3277 = vrcp.pop %v3272
  %v3278 = vmul.f32 1.0, %v3277
  %v3279 = vrcp.pop %v3273
  %v3280 = vmul.f32 1.0, %v3279
  %v3281 = vrcp.pop %v3274
  %v3282 = vmul.f32 1.0, %v3281
  %vm3283 = vcmp.eq.f32.partialorder %v2817, %v3113
  %vm3284 = vcmp.eq.f32.partialorder %v2817, %v3116
  %vm3285 = vcmp.eq.f32.partialorder %v2817, %v3119
  %vm3286 = vcmp.eq.f32.partialorder %v2817, %v3122
  %v3287 = vmul.f32 %v3216, %v3276
  %v3288 = vmul.f32 %v3218, %v3278
  %v3289 = vmul.f32 %v3220, %v3280
  %v3290 = vmul.f32 %v3222, %v3282
  %v3291 = vsel %vm3283, %v3287, 0.0
  %v3292 = vsel %vm3284, %v3288, 0.0
  %v3293 = vsel %vm3285, %v3289, 0.0
  %v3294 = vsel %vm3286, %v3290, 0.0
  %v3295 = vadd.f32 %v3291, 0.0
  %v3296 = vadd.f32 %v3292, 0.0
  %v3297 = vadd.f32 %v3293, 0.0
  %v3298 = vadd.f32 %v3294, 0.0
  %vm3299 = vcmp.eq.f32.partialorder %v2817, %v3151
  %vm3300 = vcmp.eq.f32.partialorder %v2817, %v3154
  %vm3301 = vcmp.eq.f32.partialorder %v2817, %v3157
  %vm3302 = vcmp.eq.f32.partialorder %v2817, %v3160
  %v3303 = vmul.f32 %v3228, %v3276
  %v3304 = vmul.f32 %v3230, %v3278
  %v3305 = vmul.f32 %v3232, %v3280
  %v3306 = vmul.f32 %v3234, %v3282
  %v3307 = vsel %vm3299, %v3303, 0.0
  %v3308 = vsel %vm3300, %v3304, 0.0
  %v3309 = vsel %vm3301, %v3305, 0.0
  %v3310 = vsel %vm3302, %v3306, 0.0
  %v3311 = vadd.f32 %v3295, %v3307
  %v3312 = vadd.f32 %v3296, %v3308
  %v3313 = vadd.f32 %v3297, %v3309
  %v3314 = vadd.f32 %v3298, %v3310
  %vm3315 = vcmp.eq.f32.partialorder %v2817, %v3189
  %vm3316 = vcmp.eq.f32.partialorder %v2817, %v3192
  %vm3317 = vcmp.eq.f32.partialorder %v2817, %v3195
  %vm3318 = vcmp.eq.f32.partialorder %v2817, %v3198
  %v3319 = vmul.f32 %v3240, %v3276
  %v3320 = vmul.f32 %v3242, %v3278
  %v3321 = vmul.f32 %v3244, %v3280
  %v3322 = vmul.f32 %v3246, %v3282
  %v3323 = vsel %vm3315, %v3319, 0.0
  %v3324 = vsel %vm3316, %v3320, 0.0
  %v3325 = vsel %vm3317, %v3321, 0.0
  %v3326 = vsel %vm3318, %v3322, 0.0
  %v3327 = vadd.f32 %v3311, %v3323
  %v3328 = vadd.f32 %v3312, %v3324
  %v3329 = vadd.f32 %v3313, %v3325
  %v3330 = vadd.f32 %v3314, %v3326
  %v3332 = vsel %vm2823, %v3081, 0
  %v3335 = vsel %vm2823, %v3082, 0
  %v3338 = vsel %vm2823, %v3083, 0
  %v3341 = vsel %vm2823, %v3084, 0
  %v3344 = vsel %vm2823, %v3327, 0
  %v3347 = vsel %vm2823, %v3328, 0
  %v3350 = vsel %vm2823, %v3329, 0
  %v3353 = vsel %vm2823, %v3330, 0
  %3355 = vmatprep.subr.mxu0 0.0
  %3356 = vmatpush1.msra.mxu0 0.0
  %3357 = vmatprep.subr.mxu0 0.0
  %3358 = vmatpush1.msra.mxu0 0.0
  %3359 = vmatprep.subr.mxu0 0.0
  %3360 = vmatpush1.msra.mxu0 0.0
  %3361 = vmatprep.subr.mxu0 0.0
  %3362 = vmatpush1.msra.mxu0 0.0
  %3363 = vmatprep.subr.mxu0 0.0
  %3364 = vmatpush1.msra.mxu0 0.0
  %3365 = vmatprep.subr.mxu0 0.0
  %3366 = vmatpush1.msra.mxu0 0.0
  %3367 = vmatprep.subr.mxu0 0.0
  %3368 = vmatpush1.msra.mxu0 0.0
  %3369 = vmatprep.subr.mxu0 0.0
  %3370 = vmatpush1.msra.mxu0 0.0
  %3371 = vmatprep.subr.mxu0 0.0
  %3372 = vmatpush1.msra.mxu0 0.0
  %3373 = vmatprep.subr.mxu0 0.0
  %3374 = vmatpush1.msra.mxu0 0.0
  %3375 = vmatprep.subr.mxu0 0.0
  %v3376 = vand.u32 %v2125, 4294901760
  %3377 = vmatpush1.msra.mxu0 %v3376
  %3378 = vmatprep.subr.mxu0 0.0
  %v3379 = vand.u32 %v2119, 4294901760
  %3380 = vmatpush1.msra.mxu0 %v3379
  %3381 = vmatprep.subr.mxu0 0.0
  %v3382 = vand.u32 %v2113, 4294901760
  %3383 = vmatpush1.msra.mxu0 %v3382
  %3384 = vmatprep.subr.mxu0 0.0
  %v3385 = vand.u32 %v2107, 4294901760
  %3386 = vmatpush1.msra.mxu0 %v3385
  %3387 = vmatprep.subr.mxu0 0.0
  %v3388 = vand.u32 %v2101, 4294901760
  %3389 = vmatpush1.msra.mxu0 %v3388
  %3390 = vmatprep.subr.mxu0 0.0
  %v3391 = vand.u32 %v2095, 4294901760
  %3392 = vmatpush1.msra.mxu0 %v3391
  %3393 = vmatprep.subr.mxu0 0.0
  %3394 = vmatpush2.msra.mxu0 0.0
  %3395 = vmatprep.subr.mxu0 0.0
  %3396 = vmatpush2.msra.mxu0 0.0
  %3397 = vmatprep.subr.mxu0 0.0
  %3398 = vmatpush2.msra.mxu0 0.0
  %3399 = vmatprep.subr.mxu0 0.0
  %3400 = vmatpush2.msra.mxu0 0.0
  %3401 = vmatprep.subr.mxu0 0.0
  %3402 = vmatpush2.msra.mxu0 0.0
  %3403 = vmatprep.subr.mxu0 0.0
  %3404 = vmatpush2.msra.mxu0 0.0
  %3405 = vmatprep.subr.mxu0 0.0
  %3406 = vmatpush2.msra.mxu0 0.0
  %3407 = vmatprep.subr.mxu0 0.0
  %3408 = vmatpush2.msra.mxu0 0.0
  %3409 = vmatprep.subr.mxu0 0.0
  %3410 = vmatpush2.msra.mxu0 0.0
  %3411 = vmatprep.subr.mxu0 0.0
  %3412 = vmatpush2.msra.mxu0 0.0
  %3413 = vmatprep.subr.mxu0 0.0
  %3414 = vmatpush2.msra.mxu0 0.0
  %3415 = vmatprep.subr.mxu0 0.0
  %3416 = vmatpush2.msra.mxu0 0.0
  %3417 = vmatprep.subr.mxu0 0.0
  %3418 = vmatpush2.msra.mxu0 0.0
  %3419 = vmatprep.subr.mxu0 0.0
  %3420 = vmatpush2.msra.mxu0 0.0
  %3421 = vmatprep.subr.mxu0 0.0
  %3422 = vmatpush2.msra.mxu0 0.0
  %3423 = vmatprep.subr.mxu0 0.0
  %3424 = vmatpush2.msra.mxu0 0.0
  %3425 = vmatprep.mubr.f32.mxu0 0.0
  %v3426 = vand.u32 %v3332, 4294901760
  %v3427 = vsub.f32 %v3332, %v3426
  %v3428 = vand.u32 %v3427, 4294901760
  %v3429 = vsub.f32 %v3427, %v3428
  %v3430 = vand.u32 %v3429, 4294901760
  %3431 = vmatmul.mubr.f32.gmra.mxu0 %v3430
  %v3432 = vpop.f32.mrf.mxu0
  %v3433 = vadd.f32 0.0, %v3432
  %v3434 = vpop.f32.mrf.mxu0
  %3435 = vmatprep.mubr.f32.mxu0 0.0
  %v3436 = vand.u32 %v3335, 4294901760
  %v3437 = vsub.f32 %v3335, %v3436
  %v3438 = vand.u32 %v3437, 4294901760
  %v3439 = vsub.f32 %v3437, %v3438
  %v3440 = vand.u32 %v3439, 4294901760
  %3441 = vmatmul.mubr.f32.gmra.mxu0 %v3440
  %v3442 = vpop.f32.mrf.mxu0
  %v3443 = vadd.f32 0.0, %v3442
  %v3444 = vpop.f32.mrf.mxu0
  %3445 = vmatprep.mubr.f32.mxu0 0.0
  %v3446 = vand.u32 %v3338, 4294901760
  %v3447 = vsub.f32 %v3338, %v3446
  %v3448 = vand.u32 %v3447, 4294901760
  %v3449 = vsub.f32 %v3447, %v3448
  %v3450 = vand.u32 %v3449, 4294901760
  %3451 = vmatmul.mubr.f32.gmra.mxu0 %v3450
  %v3452 = vpop.f32.mrf.mxu0
  %v3453 = vadd.f32 0.0, %v3452
  %v3454 = vpop.f32.mrf.mxu0
  %3455 = vmatprep.mubr.f32.mxu0 0.0
  %v3456 = vand.u32 %v3341, 4294901760
  %v3457 = vsub.f32 %v3341, %v3456
  %v3458 = vand.u32 %v3457, 4294901760
  %v3459 = vsub.f32 %v3457, %v3458
  %v3460 = vand.u32 %v3459, 4294901760
  %3461 = vmatmul.mubr.f32.gmra.mxu0 %v3460
  %v3462 = vpop.f32.mrf.mxu0
  %v3463 = vadd.f32 0.0, %v3462
  %v3464 = vpop.f32.mrf.mxu0
  %3465 = vmatprep.mubr.f32.mxu0 0.0
  %v3466 = vand.u32 %v3344, 4294901760
  %v3467 = vsub.f32 %v3344, %v3466
  %v3468 = vand.u32 %v3467, 4294901760
  %v3469 = vsub.f32 %v3467, %v3468
  %v3470 = vand.u32 %v3469, 4294901760
  %3471 = vmatmul.mubr.f32.gmra.mxu0 %v3470
  %v3472 = vpop.f32.mrf.mxu0
  %v3473 = vadd.f32 0.0, %v3472
  %v3474 = vpop.f32.mrf.mxu0
  %3475 = vmatprep.mubr.f32.mxu0 0.0
  %v3476 = vand.u32 %v3347, 4294901760
  %v3477 = vsub.f32 %v3347, %v3476
  %v3478 = vand.u32 %v3477, 4294901760
  %v3479 = vsub.f32 %v3477, %v3478
  %v3480 = vand.u32 %v3479, 4294901760
  %3481 = vmatmul.mubr.f32.gmra.mxu0 %v3480
  %v3482 = vpop.f32.mrf.mxu0
  %v3483 = vadd.f32 0.0, %v3482
  %v3484 = vpop.f32.mrf.mxu0
  %3485 = vmatprep.mubr.f32.mxu0 0.0
  %v3486 = vand.u32 %v3350, 4294901760
  %v3487 = vsub.f32 %v3350, %v3486
  %v3488 = vand.u32 %v3487, 4294901760
  %v3489 = vsub.f32 %v3487, %v3488
  %v3490 = vand.u32 %v3489, 4294901760
  %3491 = vmatmul.mubr.f32.gmra.mxu0 %v3490
  %v3492 = vpop.f32.mrf.mxu0
  %v3493 = vadd.f32 0.0, %v3492
  %v3494 = vpop.f32.mrf.mxu0
  %3495 = vmatprep.mubr.f32.mxu0 0.0
  %v3496 = vand.u32 %v3353, 4294901760
  %v3497 = vsub.f32 %v3353, %v3496
  %v3498 = vand.u32 %v3497, 4294901760
  %v3499 = vsub.f32 %v3497, %v3498
  %v3500 = vand.u32 %v3499, 4294901760
  %3501 = vmatmul.mubr.f32.gmra.mxu0 %v3500
  %v3502 = vpop.f32.mrf.mxu0
  %v3503 = vadd.f32 0.0, %v3502
  %v3504 = vpop.f32.mrf.mxu0
  %3505 = vdwg.mxu0
  %3506 = vmatprep.subr.mxu0 0.0
  %3507 = vmatpush1.msra.mxu0 0.0
  %3508 = vmatprep.subr.mxu0 0.0
  %3509 = vmatpush1.msra.mxu0 0.0
  %3510 = vmatprep.subr.mxu0 0.0
  %3511 = vmatpush1.msra.mxu0 0.0
  %3512 = vmatprep.subr.mxu0 0.0
  %3513 = vmatpush1.msra.mxu0 0.0
  %3514 = vmatprep.subr.mxu0 0.0
  %3515 = vmatpush1.msra.mxu0 0.0
  %3516 = vmatprep.subr.mxu0 0.0
  %3517 = vmatpush1.msra.mxu0 0.0
  %3518 = vmatprep.subr.mxu0 0.0
  %3519 = vmatpush1.msra.mxu0 0.0
  %3520 = vmatprep.subr.mxu0 0.0
  %3521 = vmatpush1.msra.mxu0 0.0
  %3522 = vmatprep.subr.mxu0 0.0
  %3523 = vmatpush1.msra.mxu0 0.0
  %3524 = vmatprep.subr.mxu0 0.0
  %3525 = vmatpush1.msra.mxu0 0.0
  %3526 = vmatprep.subr.mxu0 0.0
  %v3527 = vand.u32 %v2125, 4294901760
  %v3528 = vsub.f32 %v2125, %v3527
  %v3529 = vand.u32 %v3528, 4294901760
  %v3530 = vsub.f32 %v3528, %v3529
  %v3531 = vand.u32 %v3530, 4294901760
  %3532 = vmatpush1.msra.mxu0 %v3531
  %3533 = vmatprep.subr.mxu0 0.0
  %v3534 = vand.u32 %v2119, 4294901760
  %v3535 = vsub.f32 %v2119, %v3534
  %v3536 = vand.u32 %v3535, 4294901760
  %v3537 = vsub.f32 %v3535, %v3536
  %v3538 = vand.u32 %v3537, 4294901760
  %3539 = vmatpush1.msra.mxu0 %v3538
  %3540 = vmatprep.subr.mxu0 0.0
  %v3541 = vand.u32 %v2113, 4294901760
  %v3542 = vsub.f32 %v2113, %v3541
  %v3543 = vand.u32 %v3542, 4294901760
  %v3544 = vsub.f32 %v3542, %v3543
  %v3545 = vand.u32 %v3544, 4294901760
  %3546 = vmatpush1.msra.mxu0 %v3545
  %3547 = vmatprep.subr.mxu0 0.0
  %v3548 = vand.u32 %v2107, 4294901760
  %v3549 = vsub.f32 %v2107, %v3548
  %v3550 = vand.u32 %v3549, 4294901760
  %v3551 = vsub.f32 %v3549, %v3550
  %v3552 = vand.u32 %v3551, 4294901760
  %3553 = vmatpush1.msra.mxu0 %v3552
  %3554 = vmatprep.subr.mxu0 0.0
  %v3555 = vand.u32 %v2101, 4294901760
  %v3556 = vsub.f32 %v2101, %v3555
  %v3557 = vand.u32 %v3556, 4294901760
  %v3558 = vsub.f32 %v3556, %v3557
  %v3559 = vand.u32 %v3558, 4294901760
  %3560 = vmatpush1.msra.mxu0 %v3559
  %3561 = vmatprep.subr.mxu0 0.0
  %v3562 = vand.u32 %v2095, 4294901760
  %v3563 = vsub.f32 %v2095, %v3562
  %v3564 = vand.u32 %v3563, 4294901760
  %v3565 = vsub.f32 %v3563, %v3564
  %v3566 = vand.u32 %v3565, 4294901760
  %3567 = vmatpush1.msra.mxu0 %v3566
  %3568 = vmatprep.subr.mxu0 0.0
  %3569 = vmatpush2.msra.mxu0 0.0
  %3570 = vmatprep.subr.mxu0 0.0
  %3571 = vmatpush2.msra.mxu0 0.0
  %3572 = vmatprep.subr.mxu0 0.0
  %3573 = vmatpush2.msra.mxu0 0.0
  %3574 = vmatprep.subr.mxu0 0.0
  %3575 = vmatpush2.msra.mxu0 0.0
  %3576 = vmatprep.subr.mxu0 0.0
  %3577 = vmatpush2.msra.mxu0 0.0
  %3578 = vmatprep.subr.mxu0 0.0
  %3579 = vmatpush2.msra.mxu0 0.0
  %3580 = vmatprep.subr.mxu0 0.0
  %3581 = vmatpush2.msra.mxu0 0.0
  %3582 = vmatprep.subr.mxu0 0.0
  %3583 = vmatpush2.msra.mxu0 0.0
  %3584 = vmatprep.subr.mxu0 0.0
  %3585 = vmatpush2.msra.mxu0 0.0
  %3586 = vmatprep.subr.mxu0 0.0
  %3587 = vmatpush2.msra.mxu0 0.0
  %3588 = vmatprep.subr.mxu0 0.0
  %3589 = vmatpush2.msra.mxu0 0.0
  %3590 = vmatprep.subr.mxu0 0.0
  %3591 = vmatpush2.msra.mxu0 0.0
  %3592 = vmatprep.subr.mxu0 0.0
  %3593 = vmatpush2.msra.mxu0 0.0
  %3594 = vmatprep.subr.mxu0 0.0
  %3595 = vmatpush2.msra.mxu0 0.0
  %3596 = vmatprep.subr.mxu0 0.0
  %3597 = vmatpush2.msra.mxu0 0.0
  %3598 = vmatprep.subr.mxu0 0.0
  %3599 = vmatpush2.msra.mxu0 0.0
  %3600 = vmatprep.mubr.f32.mxu0 0.0
  %v3601 = vand.u32 %v3332, 4294901760
  %3602 = vmatmul.mubr.f32.gmra.mxu0 %v3601
  %v3603 = vpop.f32.mrf.mxu0
  %v3604 = vadd.f32 %v3433, %v3603
  %v3605 = vpop.f32.mrf.mxu0
  %3606 = vmatprep.mubr.f32.mxu0 0.0
  %v3607 = vand.u32 %v3335, 4294901760
  %3608 = vmatmul.mubr.f32.gmra.mxu0 %v3607
  %v3609 = vpop.f32.mrf.mxu0
  %v3610 = vadd.f32 %v3443, %v3609
  %v3611 = vpop.f32.mrf.mxu0
  %3612 = vmatprep.mubr.f32.mxu0 0.0
  %v3613 = vand.u32 %v3338, 4294901760
  %3614 = vmatmul.mubr.f32.gmra.mxu0 %v3613
  %v3615 = vpop.f32.mrf.mxu0
  %v3616 = vadd.f32 %v3453, %v3615
  %v3617 = vpop.f32.mrf.mxu0
  %3618 = vmatprep.mubr.f32.mxu0 0.0
  %v3619 = vand.u32 %v3341, 4294901760
  %3620 = vmatmul.mubr.f32.gmra.mxu0 %v3619
  %v3621 = vpop.f32.mrf.mxu0
  %v3622 = vadd.f32 %v3463, %v3621
  %v3623 = vpop.f32.mrf.mxu0
  %3624 = vmatprep.mubr.f32.mxu0 0.0
  %v3625 = vand.u32 %v3344, 4294901760
  %3626 = vmatmul.mubr.f32.gmra.mxu0 %v3625
  %v3627 = vpop.f32.mrf.mxu0
  %v3628 = vadd.f32 %v3473, %v3627
  %v3629 = vpop.f32.mrf.mxu0
  %3630 = vmatprep.mubr.f32.mxu0 0.0
  %v3631 = vand.u32 %v3347, 4294901760
  %3632 = vmatmul.mubr.f32.gmra.mxu0 %v3631
  %v3633 = vpop.f32.mrf.mxu0
  %v3634 = vadd.f32 %v3483, %v3633
  %v3635 = vpop.f32.mrf.mxu0
  %3636 = vmatprep.mubr.f32.mxu0 0.0
  %v3637 = vand.u32 %v3350, 4294901760
  %3638 = vmatmul.mubr.f32.gmra.mxu0 %v3637
  %v3639 = vpop.f32.mrf.mxu0
  %v3640 = vadd.f32 %v3493, %v3639
  %v3641 = vpop.f32.mrf.mxu0
  %3642 = vmatprep.mubr.f32.mxu0 0.0
  %v3643 = vand.u32 %v3353, 4294901760
  %3644 = vmatmul.mubr.f32.gmra.mxu0 %v3643
  %v3645 = vpop.f32.mrf.mxu0
  %v3646 = vadd.f32 %v3503, %v3645
  %v3647 = vpop.f32.mrf.mxu0
  %3648 = vdwg.mxu0
  %3649 = vmatprep.subr.mxu0 0.0
  %3650 = vmatpush1.msra.mxu0 0.0
  %3651 = vmatprep.subr.mxu0 0.0
  %3652 = vmatpush1.msra.mxu0 0.0
  %3653 = vmatprep.subr.mxu0 0.0
  %3654 = vmatpush1.msra.mxu0 0.0
  %3655 = vmatprep.subr.mxu0 0.0
  %3656 = vmatpush1.msra.mxu0 0.0
  %3657 = vmatprep.subr.mxu0 0.0
  %3658 = vmatpush1.msra.mxu0 0.0
  %3659 = vmatprep.subr.mxu0 0.0
  %3660 = vmatpush1.msra.mxu0 0.0
  %3661 = vmatprep.subr.mxu0 0.0
  %3662 = vmatpush1.msra.mxu0 0.0
  %3663 = vmatprep.subr.mxu0 0.0
  %3664 = vmatpush1.msra.mxu0 0.0
  %3665 = vmatprep.subr.mxu0 0.0
  %3666 = vmatpush1.msra.mxu0 0.0
  %3667 = vmatprep.subr.mxu0 0.0
  %3668 = vmatpush1.msra.mxu0 0.0
  %3669 = vmatprep.subr.mxu0 0.0
  %v3670 = vand.u32 %v2125, 4294901760
  %v3671 = vsub.f32 %v2125, %v3670
  %3672 = vmatpush1.msra.mxu0 %v3671
  %3673 = vmatprep.subr.mxu0 0.0
  %v3674 = vand.u32 %v2119, 4294901760
  %v3675 = vsub.f32 %v2119, %v3674
  %3676 = vmatpush1.msra.mxu0 %v3675
  %3677 = vmatprep.subr.mxu0 0.0
  %v3678 = vand.u32 %v2113, 4294901760
  %v3679 = vsub.f32 %v2113, %v3678
  %3680 = vmatpush1.msra.mxu0 %v3679
  %3681 = vmatprep.subr.mxu0 0.0
  %v3682 = vand.u32 %v2107, 4294901760
  %v3683 = vsub.f32 %v2107, %v3682
  %3684 = vmatpush1.msra.mxu0 %v3683
  %3685 = vmatprep.subr.mxu0 0.0
  %v3686 = vand.u32 %v2101, 4294901760
  %v3687 = vsub.f32 %v2101, %v3686
  %3688 = vmatpush1.msra.mxu0 %v3687
  %3689 = vmatprep.subr.mxu0 0.0
  %v3690 = vand.u32 %v2095, 4294901760
  %v3691 = vsub.f32 %v2095, %v3690
  %3692 = vmatpush1.msra.mxu0 %v3691
  %3693 = vmatprep.subr.mxu0 0.0
  %3694 = vmatpush2.msra.mxu0 0.0
  %3695 = vmatprep.subr.mxu0 0.0
  %3696 = vmatpush2.msra.mxu0 0.0
  %3697 = vmatprep.subr.mxu0 0.0
  %3698 = vmatpush2.msra.mxu0 0.0
  %3699 = vmatprep.subr.mxu0 0.0
  %3700 = vmatpush2.msra.mxu0 0.0
  %3701 = vmatprep.subr.mxu0 0.0
  %3702 = vmatpush2.msra.mxu0 0.0
  %3703 = vmatprep.subr.mxu0 0.0
  %3704 = vmatpush2.msra.mxu0 0.0
  %3705 = vmatprep.subr.mxu0 0.0
  %3706 = vmatpush2.msra.mxu0 0.0
  %3707 = vmatprep.subr.mxu0 0.0
  %3708 = vmatpush2.msra.mxu0 0.0
  %3709 = vmatprep.subr.mxu0 0.0
  %3710 = vmatpush2.msra.mxu0 0.0
  %3711 = vmatprep.subr.mxu0 0.0
  %3712 = vmatpush2.msra.mxu0 0.0
  %3713 = vmatprep.subr.mxu0 0.0
  %3714 = vmatpush2.msra.mxu0 0.0
  %3715 = vmatprep.subr.mxu0 0.0
  %3716 = vmatpush2.msra.mxu0 0.0
  %3717 = vmatprep.subr.mxu0 0.0
  %3718 = vmatpush2.msra.mxu0 0.0
  %3719 = vmatprep.subr.mxu0 0.0
  %3720 = vmatpush2.msra.mxu0 0.0
  %3721 = vmatprep.subr.mxu0 0.0
  %3722 = vmatpush2.msra.mxu0 0.0
  %3723 = vmatprep.subr.mxu0 0.0
  %3724 = vmatpush2.msra.mxu0 0.0
  %3725 = vmatprep.mubr.f32.mxu0 0.0
  %v3726 = vand.u32 %v3332, 4294901760
  %v3727 = vsub.f32 %v3332, %v3726
  %3728 = vmatmul.mubr.f32.gmra.mxu0 %v3727
  %v3729 = vpop.f32.mrf.mxu0
  %v3730 = vadd.f32 %v3604, %v3729
  %v3731 = vpop.f32.mrf.mxu0
  %3732 = vmatprep.mubr.f32.mxu0 0.0
  %v3733 = vand.u32 %v3335, 4294901760
  %v3734 = vsub.f32 %v3335, %v3733
  %3735 = vmatmul.mubr.f32.gmra.mxu0 %v3734
  %v3736 = vpop.f32.mrf.mxu0
  %v3737 = vadd.f32 %v3610, %v3736
  %v3738 = vpop.f32.mrf.mxu0
  %3739 = vmatprep.mubr.f32.mxu0 0.0
  %v3740 = vand.u32 %v3338, 4294901760
  %v3741 = vsub.f32 %v3338, %v3740
  %3742 = vmatmul.mubr.f32.gmra.mxu0 %v3741
  %v3743 = vpop.f32.mrf.mxu0
  %v3744 = vadd.f32 %v3616, %v3743
  %v3745 = vpop.f32.mrf.mxu0
  %3746 = vmatprep.mubr.f32.mxu0 0.0
  %v3747 = vand.u32 %v3341, 4294901760
  %v3748 = vsub.f32 %v3341, %v3747
  %3749 = vmatmul.mubr.f32.gmra.mxu0 %v3748
  %v3750 = vpop.f32.mrf.mxu0
  %v3751 = vadd.f32 %v3622, %v3750
  %v3752 = vpop.f32.mrf.mxu0
  %3753 = vmatprep.mubr.f32.mxu0 0.0
  %v3754 = vand.u32 %v3344, 4294901760
  %v3755 = vsub.f32 %v3344, %v3754
  %3756 = vmatmul.mubr.f32.gmra.mxu0 %v3755
  %v3757 = vpop.f32.mrf.mxu0
  %v3758 = vadd.f32 %v3628, %v3757
  %v3759 = vpop.f32.mrf.mxu0
  %3760 = vmatprep.mubr.f32.mxu0 0.0
  %v3761 = vand.u32 %v3347, 4294901760
  %v3762 = vsub.f32 %v3347, %v3761
  %3763 = vmatmul.mubr.f32.gmra.mxu0 %v3762
  %v3764 = vpop.f32.mrf.mxu0
  %v3765 = vadd.f32 %v3634, %v3764
  %v3766 = vpop.f32.mrf.mxu0
  %3767 = vmatprep.mubr.f32.mxu0 0.0
  %v3768 = vand.u32 %v3350, 4294901760
  %v3769 = vsub.f32 %v3350, %v3768
  %3770 = vmatmul.mubr.f32.gmra.mxu0 %v3769
  %v3771 = vpop.f32.mrf.mxu0
  %v3772 = vadd.f32 %v3640, %v3771
  %v3773 = vpop.f32.mrf.mxu0
  %3774 = vmatprep.mubr.f32.mxu0 0.0
  %v3775 = vand.u32 %v3353, 4294901760
  %v3776 = vsub.f32 %v3353, %v3775
  %3777 = vmatmul.mubr.f32.gmra.mxu0 %v3776
  %v3778 = vpop.f32.mrf.mxu0
  %v3779 = vadd.f32 %v3646, %v3778
  %v3780 = vpop.f32.mrf.mxu0
  %3781 = vdwg.mxu0
  %3782 = vmatprep.subr.mxu0 0.0
  %3783 = vmatpush1.msra.mxu0 0.0
  %3784 = vmatprep.subr.mxu0 0.0
  %3785 = vmatpush1.msra.mxu0 0.0
  %3786 = vmatprep.subr.mxu0 0.0
  %3787 = vmatpush1.msra.mxu0 0.0
  %3788 = vmatprep.subr.mxu0 0.0
  %3789 = vmatpush1.msra.mxu0 0.0
  %3790 = vmatprep.subr.mxu0 0.0
  %3791 = vmatpush1.msra.mxu0 0.0
  %3792 = vmatprep.subr.mxu0 0.0
  %3793 = vmatpush1.msra.mxu0 0.0
  %3794 = vmatprep.subr.mxu0 0.0
  %3795 = vmatpush1.msra.mxu0 0.0
  %3796 = vmatprep.subr.mxu0 0.0
  %3797 = vmatpush1.msra.mxu0 0.0
  %3798 = vmatprep.subr.mxu0 0.0
  %3799 = vmatpush1.msra.mxu0 0.0
  %3800 = vmatprep.subr.mxu0 0.0
  %3801 = vmatpush1.msra.mxu0 0.0
  %3802 = vmatprep.subr.mxu0 0.0
  %v3803 = vand.u32 %v2125, 4294901760
  %3804 = vmatpush1.msra.mxu0 %v3803
  %3805 = vmatprep.subr.mxu0 0.0
  %v3806 = vand.u32 %v2119, 4294901760
  %3807 = vmatpush1.msra.mxu0 %v3806
  %3808 = vmatprep.subr.mxu0 0.0
  %v3809 = vand.u32 %v2113, 4294901760
  %3810 = vmatpush1.msra.mxu0 %v3809
  %3811 = vmatprep.subr.mxu0 0.0
  %v3812 = vand.u32 %v2107, 4294901760
  %3813 = vmatpush1.msra.mxu0 %v3812
  %3814 = vmatprep.subr.mxu0 0.0
  %v3815 = vand.u32 %v2101, 4294901760
  %3816 = vmatpush1.msra.mxu0 %v3815
  %3817 = vmatprep.subr.mxu0 0.0
  %v3818 = vand.u32 %v2095, 4294901760
  %3819 = vmatpush1.msra.mxu0 %v3818
  %3820 = vmatprep.subr.mxu0 0.0
  %3821 = vmatpush2.msra.mxu0 0.0
  %3822 = vmatprep.subr.mxu0 0.0
  %3823 = vmatpush2.msra.mxu0 0.0
  %3824 = vmatprep.subr.mxu0 0.0
  %3825 = vmatpush2.msra.mxu0 0.0
  %3826 = vmatprep.subr.mxu0 0.0
  %3827 = vmatpush2.msra.mxu0 0.0
  %3828 = vmatprep.subr.mxu0 0.0
  %3829 = vmatpush2.msra.mxu0 0.0
  %3830 = vmatprep.subr.mxu0 0.0
  %3831 = vmatpush2.msra.mxu0 0.0
  %3832 = vmatprep.subr.mxu0 0.0
  %3833 = vmatpush2.msra.mxu0 0.0
  %3834 = vmatprep.subr.mxu0 0.0
  %3835 = vmatpush2.msra.mxu0 0.0
  %3836 = vmatprep.subr.mxu0 0.0
  %3837 = vmatpush2.msra.mxu0 0.0
  %3838 = vmatprep.subr.mxu0 0.0
  %3839 = vmatpush2.msra.mxu0 0.0
  %3840 = vmatprep.subr.mxu0 0.0
  %3841 = vmatpush2.msra.mxu0 0.0
  %3842 = vmatprep.subr.mxu0 0.0
  %3843 = vmatpush2.msra.mxu0 0.0
  %3844 = vmatprep.subr.mxu0 0.0
  %3845 = vmatpush2.msra.mxu0 0.0
  %3846 = vmatprep.subr.mxu0 0.0
  %3847 = vmatpush2.msra.mxu0 0.0
  %3848 = vmatprep.subr.mxu0 0.0
  %3849 = vmatpush2.msra.mxu0 0.0
  %3850 = vmatprep.subr.mxu0 0.0
  %3851 = vmatpush2.msra.mxu0 0.0
  %3852 = vmatprep.mubr.f32.mxu0 0.0
  %v3853 = vand.u32 %v3332, 4294901760
  %v3854 = vsub.f32 %v3332, %v3853
  %v3855 = vand.u32 %v3854, 4294901760
  %3856 = vmatmul.mubr.f32.gmra.mxu0 %v3855
  %v3857 = vpop.f32.mrf.mxu0
  %v3858 = vadd.f32 %v3730, %v3857
  %v3859 = vpop.f32.mrf.mxu0
  %3860 = vmatprep.mubr.f32.mxu0 0.0
  %v3861 = vand.u32 %v3335, 4294901760
  %v3862 = vsub.f32 %v3335, %v3861
  %v3863 = vand.u32 %v3862, 4294901760
  %3864 = vmatmul.mubr.f32.gmra.mxu0 %v3863
  %v3865 = vpop.f32.mrf.mxu0
  %v3866 = vadd.f32 %v3737, %v3865
  %v3867 = vpop.f32.mrf.mxu0
  %3868 = vmatprep.mubr.f32.mxu0 0.0
  %v3869 = vand.u32 %v3338, 4294901760
  %v3870 = vsub.f32 %v3338, %v3869
  %v3871 = vand.u32 %v3870, 4294901760
  %3872 = vmatmul.mubr.f32.gmra.mxu0 %v3871
  %v3873 = vpop.f32.mrf.mxu0
  %v3874 = vadd.f32 %v3744, %v3873
  %v3875 = vpop.f32.mrf.mxu0
  %3876 = vmatprep.mubr.f32.mxu0 0.0
  %v3877 = vand.u32 %v3341, 4294901760
  %v3878 = vsub.f32 %v3341, %v3877
  %v3879 = vand.u32 %v3878, 4294901760
  %3880 = vmatmul.mubr.f32.gmra.mxu0 %v3879
  %v3881 = vpop.f32.mrf.mxu0
  %v3882 = vadd.f32 %v3751, %v3881
  %v3883 = vpop.f32.mrf.mxu0
  %3884 = vmatprep.mubr.f32.mxu0 0.0
  %v3885 = vand.u32 %v3344, 4294901760
  %v3886 = vsub.f32 %v3344, %v3885
  %v3887 = vand.u32 %v3886, 4294901760
  %3888 = vmatmul.mubr.f32.gmra.mxu0 %v3887
  %v3889 = vpop.f32.mrf.mxu0
  %v3890 = vadd.f32 %v3758, %v3889
  %v3891 = vpop.f32.mrf.mxu0
  %3892 = vmatprep.mubr.f32.mxu0 0.0
  %v3893 = vand.u32 %v3347, 4294901760
  %v3894 = vsub.f32 %v3347, %v3893
  %v3895 = vand.u32 %v3894, 4294901760
  %3896 = vmatmul.mubr.f32.gmra.mxu0 %v3895
  %v3897 = vpop.f32.mrf.mxu0
  %v3898 = vadd.f32 %v3765, %v3897
  %v3899 = vpop.f32.mrf.mxu0
  %3900 = vmatprep.mubr.f32.mxu0 0.0
  %v3901 = vand.u32 %v3350, 4294901760
  %v3902 = vsub.f32 %v3350, %v3901
  %v3903 = vand.u32 %v3902, 4294901760
  %3904 = vmatmul.mubr.f32.gmra.mxu0 %v3903
  %v3905 = vpop.f32.mrf.mxu0
  %v3906 = vadd.f32 %v3772, %v3905
  %v3907 = vpop.f32.mrf.mxu0
  %3908 = vmatprep.mubr.f32.mxu0 0.0
  %v3909 = vand.u32 %v3353, 4294901760
  %v3910 = vsub.f32 %v3353, %v3909
  %v3911 = vand.u32 %v3910, 4294901760
  %3912 = vmatmul.mubr.f32.gmra.mxu0 %v3911
  %v3913 = vpop.f32.mrf.mxu0
  %v3914 = vadd.f32 %v3779, %v3913
  %v3915 = vpop.f32.mrf.mxu0
  %3916 = vdwg.mxu0
  %3917 = vmatprep.subr.mxu0 0.0
  %3918 = vmatpush1.msra.mxu0 0.0
  %3919 = vmatprep.subr.mxu0 0.0
  %3920 = vmatpush1.msra.mxu0 0.0
  %3921 = vmatprep.subr.mxu0 0.0
  %3922 = vmatpush1.msra.mxu0 0.0
  %3923 = vmatprep.subr.mxu0 0.0
  %3924 = vmatpush1.msra.mxu0 0.0
  %3925 = vmatprep.subr.mxu0 0.0
  %3926 = vmatpush1.msra.mxu0 0.0
  %3927 = vmatprep.subr.mxu0 0.0
  %3928 = vmatpush1.msra.mxu0 0.0
  %3929 = vmatprep.subr.mxu0 0.0
  %3930 = vmatpush1.msra.mxu0 0.0
  %3931 = vmatprep.subr.mxu0 0.0
  %3932 = vmatpush1.msra.mxu0 0.0
  %3933 = vmatprep.subr.mxu0 0.0
  %3934 = vmatpush1.msra.mxu0 0.0
  %3935 = vmatprep.subr.mxu0 0.0
  %3936 = vmatpush1.msra.mxu0 0.0
  %3937 = vmatprep.subr.mxu0 0.0
  %v3938 = vand.u32 %v2125, 4294901760
  %v3939 = vsub.f32 %v2125, %v3938
  %v3940 = vand.u32 %v3939, 4294901760
  %3941 = vmatpush1.msra.mxu0 %v3940
  %3942 = vmatprep.subr.mxu0 0.0
  %v3943 = vand.u32 %v2119, 4294901760
  %v3944 = vsub.f32 %v2119, %v3943
  %v3945 = vand.u32 %v3944, 4294901760
  %3946 = vmatpush1.msra.mxu0 %v3945
  %3947 = vmatprep.subr.mxu0 0.0
  %v3948 = vand.u32 %v2113, 4294901760
  %v3949 = vsub.f32 %v2113, %v3948
  %v3950 = vand.u32 %v3949, 4294901760
  %3951 = vmatpush1.msra.mxu0 %v3950
  %3952 = vmatprep.subr.mxu0 0.0
  %v3953 = vand.u32 %v2107, 4294901760
  %v3954 = vsub.f32 %v2107, %v3953
  %v3955 = vand.u32 %v3954, 4294901760
  %3956 = vmatpush1.msra.mxu0 %v3955
  %3957 = vmatprep.subr.mxu0 0.0
  %v3958 = vand.u32 %v2101, 4294901760
  %v3959 = vsub.f32 %v2101, %v3958
  %v3960 = vand.u32 %v3959, 4294901760
  %3961 = vmatpush1.msra.mxu0 %v3960
  %3962 = vmatprep.subr.mxu0 0.0
  %v3963 = vand.u32 %v2095, 4294901760
  %v3964 = vsub.f32 %v2095, %v3963
  %v3965 = vand.u32 %v3964, 4294901760
  %3966 = vmatpush1.msra.mxu0 %v3965
  %3967 = vmatprep.subr.mxu0 0.0
  %3968 = vmatpush2.msra.mxu0 0.0
  %3969 = vmatprep.subr.mxu0 0.0
  %3970 = vmatpush2.msra.mxu0 0.0
  %3971 = vmatprep.subr.mxu0 0.0
  %3972 = vmatpush2.msra.mxu0 0.0
  %3973 = vmatprep.subr.mxu0 0.0
  %3974 = vmatpush2.msra.mxu0 0.0
  %3975 = vmatprep.subr.mxu0 0.0
  %3976 = vmatpush2.msra.mxu0 0.0
  %3977 = vmatprep.subr.mxu0 0.0
  %3978 = vmatpush2.msra.mxu0 0.0
  %3979 = vmatprep.subr.mxu0 0.0
  %3980 = vmatpush2.msra.mxu0 0.0
  %3981 = vmatprep.subr.mxu0 0.0
  %3982 = vmatpush2.msra.mxu0 0.0
  %3983 = vmatprep.subr.mxu0 0.0
  %3984 = vmatpush2.msra.mxu0 0.0
  %3985 = vmatprep.subr.mxu0 0.0
  %3986 = vmatpush2.msra.mxu0 0.0
  %3987 = vmatprep.subr.mxu0 0.0
  %3988 = vmatpush2.msra.mxu0 0.0
  %3989 = vmatprep.subr.mxu0 0.0
  %3990 = vmatpush2.msra.mxu0 0.0
  %3991 = vmatprep.subr.mxu0 0.0
  %3992 = vmatpush2.msra.mxu0 0.0
  %3993 = vmatprep.subr.mxu0 0.0
  %3994 = vmatpush2.msra.mxu0 0.0
  %3995 = vmatprep.subr.mxu0 0.0
  %3996 = vmatpush2.msra.mxu0 0.0
  %3997 = vmatprep.subr.mxu0 0.0
  %3998 = vmatpush2.msra.mxu0 0.0
  %3999 = vmatprep.mubr.f32.mxu0 0.0
  %v4000 = vand.u32 %v3332, 4294901760
  %4001 = vmatmul.mubr.f32.gmra.mxu0 %v4000
  %v4002 = vpop.f32.mrf.mxu0
  %v4003 = vadd.f32 %v3858, %v4002
  %v4004 = vpop.f32.mrf.mxu0
  %4005 = vmatprep.mubr.f32.mxu0 0.0
  %v4006 = vand.u32 %v3335, 4294901760
  %4007 = vmatmul.mubr.f32.gmra.mxu0 %v4006
  %v4008 = vpop.f32.mrf.mxu0
  %v4009 = vadd.f32 %v3866, %v4008
  %v4010 = vpop.f32.mrf.mxu0
  %4011 = vmatprep.mubr.f32.mxu0 0.0
  %v4012 = vand.u32 %v3338, 4294901760
  %4013 = vmatmul.mubr.f32.gmra.mxu0 %v4012
  %v4014 = vpop.f32.mrf.mxu0
  %v4015 = vadd.f32 %v3874, %v4014
  %v4016 = vpop.f32.mrf.mxu0
  %4017 = vmatprep.mubr.f32.mxu0 0.0
  %v4018 = vand.u32 %v3341, 4294901760
  %4019 = vmatmul.mubr.f32.gmra.mxu0 %v4018
  %v4020 = vpop.f32.mrf.mxu0
  %v4021 = vadd.f32 %v3882, %v4020
  %v4022 = vpop.f32.mrf.mxu0
  %4023 = vmatprep.mubr.f32.mxu0 0.0
  %v4024 = vand.u32 %v3344, 4294901760
  %4025 = vmatmul.mubr.f32.gmra.mxu0 %v4024
  %v4026 = vpop.f32.mrf.mxu0
  %v4027 = vadd.f32 %v3890, %v4026
  %v4028 = vpop.f32.mrf.mxu0
  %4029 = vmatprep.mubr.f32.mxu0 0.0
  %v4030 = vand.u32 %v3347, 4294901760
  %4031 = vmatmul.mubr.f32.gmra.mxu0 %v4030
  %v4032 = vpop.f32.mrf.mxu0
  %v4033 = vadd.f32 %v3898, %v4032
  %v4034 = vpop.f32.mrf.mxu0
  %4035 = vmatprep.mubr.f32.mxu0 0.0
  %v4036 = vand.u32 %v3350, 4294901760
  %4037 = vmatmul.mubr.f32.gmra.mxu0 %v4036
  %v4038 = vpop.f32.mrf.mxu0
  %v4039 = vadd.f32 %v3906, %v4038
  %v4040 = vpop.f32.mrf.mxu0
  %4041 = vmatprep.mubr.f32.mxu0 0.0
  %v4042 = vand.u32 %v3353, 4294901760
  %4043 = vmatmul.mubr.f32.gmra.mxu0 %v4042
  %v4044 = vpop.f32.mrf.mxu0
  %v4045 = vadd.f32 %v3914, %v4044
  %v4046 = vpop.f32.mrf.mxu0
  %4047 = vdwg.mxu0
  %4048 = vmatprep.subr.mxu0 0.0
  %4049 = vmatpush1.msra.mxu0 0.0
  %4050 = vmatprep.subr.mxu0 0.0
  %4051 = vmatpush1.msra.mxu0 0.0
  %4052 = vmatprep.subr.mxu0 0.0
  %4053 = vmatpush1.msra.mxu0 0.0
  %4054 = vmatprep.subr.mxu0 0.0
  %4055 = vmatpush1.msra.mxu0 0.0
  %4056 = vmatprep.subr.mxu0 0.0
  %4057 = vmatpush1.msra.mxu0 0.0
  %4058 = vmatprep.subr.mxu0 0.0
  %4059 = vmatpush1.msra.mxu0 0.0
  %4060 = vmatprep.subr.mxu0 0.0
  %4061 = vmatpush1.msra.mxu0 0.0
  %4062 = vmatprep.subr.mxu0 0.0
  %4063 = vmatpush1.msra.mxu0 0.0
  %4064 = vmatprep.subr.mxu0 0.0
  %4065 = vmatpush1.msra.mxu0 0.0
  %4066 = vmatprep.subr.mxu0 0.0
  %4067 = vmatpush1.msra.mxu0 0.0
  %4068 = vmatprep.subr.mxu0 0.0
  %v4069 = vand.u32 %v2125, 4294901760
  %4070 = vmatpush1.msra.mxu0 %v4069
  %4071 = vmatprep.subr.mxu0 0.0
  %v4072 = vand.u32 %v2119, 4294901760
  %4073 = vmatpush1.msra.mxu0 %v4072
  %4074 = vmatprep.subr.mxu0 0.0
  %v4075 = vand.u32 %v2113, 4294901760
  %4076 = vmatpush1.msra.mxu0 %v4075
  %4077 = vmatprep.subr.mxu0 0.0
  %v4078 = vand.u32 %v2107, 4294901760
  %4079 = vmatpush1.msra.mxu0 %v4078
  %4080 = vmatprep.subr.mxu0 0.0
  %v4081 = vand.u32 %v2101, 4294901760
  %4082 = vmatpush1.msra.mxu0 %v4081
  %4083 = vmatprep.subr.mxu0 0.0
  %v4084 = vand.u32 %v2095, 4294901760
  %4085 = vmatpush1.msra.mxu0 %v4084
  %4086 = vmatprep.subr.mxu0 0.0
  %4087 = vmatpush2.msra.mxu0 0.0
  %4088 = vmatprep.subr.mxu0 0.0
  %4089 = vmatpush2.msra.mxu0 0.0
  %4090 = vmatprep.subr.mxu0 0.0
  %4091 = vmatpush2.msra.mxu0 0.0
  %4092 = vmatprep.subr.mxu0 0.0
  %4093 = vmatpush2.msra.mxu0 0.0
  %4094 = vmatprep.subr.mxu0 0.0
  %4095 = vmatpush2.msra.mxu0 0.0
  %4096 = vmatprep.subr.mxu0 0.0
  %4097 = vmatpush2.msra.mxu0 0.0
  %4098 = vmatprep.subr.mxu0 0.0
  %4099 = vmatpush2.msra.mxu0 0.0
  %4100 = vmatprep.subr.mxu0 0.0
  %4101 = vmatpush2.msra.mxu0 0.0
  %4102 = vmatprep.subr.mxu0 0.0
  %4103 = vmatpush2.msra.mxu0 0.0
  %4104 = vmatprep.subr.mxu0 0.0
  %4105 = vmatpush2.msra.mxu0 0.0
  %4106 = vmatprep.subr.mxu0 0.0
  %4107 = vmatpush2.msra.mxu0 0.0
  %4108 = vmatprep.subr.mxu0 0.0
  %4109 = vmatpush2.msra.mxu0 0.0
  %4110 = vmatprep.subr.mxu0 0.0
  %4111 = vmatpush2.msra.mxu0 0.0
  %4112 = vmatprep.subr.mxu0 0.0
  %4113 = vmatpush2.msra.mxu0 0.0
  %4114 = vmatprep.subr.mxu0 0.0
  %4115 = vmatpush2.msra.mxu0 0.0
  %4116 = vmatprep.subr.mxu0 0.0
  %4117 = vmatpush2.msra.mxu0 0.0
  %4118 = vmatprep.mubr.f32.mxu0 0.0
  %v4119 = vand.u32 %v3332, 4294901760
  %4120 = vmatmul.mubr.f32.gmra.mxu0 %v4119
  %v4121 = vpop.f32.mrf.mxu0
  %v4122 = vadd.f32 %v4003, %v4121
  %v4123 = vpop.f32.mrf.mxu0
  %4124 = vmatprep.mubr.f32.mxu0 0.0
  %v4125 = vand.u32 %v3335, 4294901760
  %4126 = vmatmul.mubr.f32.gmra.mxu0 %v4125
  %v4127 = vpop.f32.mrf.mxu0
  %v4128 = vadd.f32 %v4009, %v4127
  %v4129 = vpop.f32.mrf.mxu0
  %4130 = vmatprep.mubr.f32.mxu0 0.0
  %v4131 = vand.u32 %v3338, 4294901760
  %4132 = vmatmul.mubr.f32.gmra.mxu0 %v4131
  %v4133 = vpop.f32.mrf.mxu0
  %v4134 = vadd.f32 %v4015, %v4133
  %v4135 = vpop.f32.mrf.mxu0
  %4136 = vmatprep.mubr.f32.mxu0 0.0
  %v4137 = vand.u32 %v3341, 4294901760
  %4138 = vmatmul.mubr.f32.gmra.mxu0 %v4137
  %v4139 = vpop.f32.mrf.mxu0
  %v4140 = vadd.f32 %v4021, %v4139
  %v4141 = vpop.f32.mrf.mxu0
  %4142 = vmatprep.mubr.f32.mxu0 0.0
  %v4143 = vand.u32 %v3344, 4294901760
  %4144 = vmatmul.mubr.f32.gmra.mxu0 %v4143
  %v4145 = vpop.f32.mrf.mxu0
  %v4146 = vadd.f32 %v4027, %v4145
  %v4147 = vpop.f32.mrf.mxu0
  %4148 = vmatprep.mubr.f32.mxu0 0.0
  %v4149 = vand.u32 %v3347, 4294901760
  %4150 = vmatmul.mubr.f32.gmra.mxu0 %v4149
  %v4151 = vpop.f32.mrf.mxu0
  %v4152 = vadd.f32 %v4033, %v4151
  %v4153 = vpop.f32.mrf.mxu0
  %4154 = vmatprep.mubr.f32.mxu0 0.0
  %v4155 = vand.u32 %v3350, 4294901760
  %4156 = vmatmul.mubr.f32.gmra.mxu0 %v4155
  %v4157 = vpop.f32.mrf.mxu0
  %v4158 = vadd.f32 %v4039, %v4157
  %v4159 = vpop.f32.mrf.mxu0
  %4160 = vmatprep.mubr.f32.mxu0 0.0
  %v4161 = vand.u32 %v3353, 4294901760
  %4162 = vmatmul.mubr.f32.gmra.mxu0 %v4161
  %v4163 = vpop.f32.mrf.mxu0
  %v4164 = vadd.f32 %v4045, %v4163
  %v4165 = vpop.f32.mrf.mxu0
  %4166 = vdwg.mxu0
  %4168 = vset.pattern.permute.xlu0 0
  %4169 = vperm.xlu0 %4168, %v55
  %v4170 = vpop.permute.xlu0 %4169
  %4173 = vset.pattern.permute.xlu0 0
  %4174 = vperm.xlu0 %4173, %v56
  %v4175 = vpop.permute.xlu0 %4174
  %4178 = vset.pattern.permute.xlu0 0
  %4179 = vperm.xlu0 %4178, %v57
  %v4180 = vpop.permute.xlu0 %4179
  %4183 = vset.pattern.permute.xlu0 0
  %4184 = vperm.xlu0 %4183, %v58
  %v4185 = vpop.permute.xlu0 %4184
  %v4187 = vmul.f32 %v4122, %v4170
  %v4188 = vmul.f32 %v4128, %v4175
  %v4189 = vmul.f32 %v4134, %v4180
  %v4190 = vmul.f32 %v4140, %v4185
  %v4191 = vmul.f32 %v4146, %v4170
  %v4192 = vmul.f32 %v4152, %v4175
  %v4193 = vmul.f32 %v4158, %v4180
  %v4194 = vmul.f32 %v4164, %v4185
  %4195 = vst.msk [vmem:[%s2] sm:$0xff] %vm2128, %v4187
  %4196 = vst.msk [vmem:[%s2 + $0x8] sm:$0xff] %vm2128, %v4188
  %4197 = vst.msk [vmem:[%s2 + $0x10] sm:$0xff] %vm2128, %v4189
  %4198 = vst.msk [vmem:[%s2 + $0x18] sm:$0xff] %vm2128, %v4190
  %4199 = vst.msk [vmem:[%s2 + $0x20] sm:$0xff] %vm2128, %v4191
  %4200 = vst.msk [vmem:[%s2 + $0x28] sm:$0xff] %vm2128, %v4192
  %4201 = vst.msk [vmem:[%s2 + $0x30] sm:$0xff] %vm2128, %v4193
  %4202 = vst.msk [vmem:[%s2 + $0x38] sm:$0xff] %vm2128, %v4194
  // Predicated region
  $region10: #{tpu_custom_call.1} parent=0 // pred_check
    _
  $region11: #{tpu_custom_call.1} parent=0 // pred_check_branch
    %4204 = sbr.rel (0) target = $region13
  $region12: #{tpu_custom_call.1} parent=0 // pred_region
    _
  $region13: #{tpu_custom_call.1} parent=0 // pred_fallthru
    _
  // Predicated region
  $region14: #{tpu_custom_call.1} parent=0 // pred_check
    _
  $region15: #{tpu_custom_call.1} parent=0 // pred_check_branch
    %4206 = sbr.rel (0) target = $region17
  $region16: #{tpu_custom_call.1} parent=0 // pred_region
    _
  $region17: #{tpu_custom_call.1} parent=0 // pred_fallthru
    _

</llo_original>
